<compile_context>
chip_gen: v5e
topology: v5e:2x2
jax: 0.10.0
libtpu: 0.0.40
codegen_flags: <defaults>
</compile_context>

<pallas_src>
import functools

import jax
import jax.numpy as jnp
from jax.experimental import pallas as pl
from jax.experimental.pallas import tpu as pltpu


def _zero_tap_margins(tap_ref, c):
    """Zero the out-of-range rows of every tap band of an im2col buffer.

    tap_ref: VMEM ref (Bt, L, 5*c).  Band k, output row l reads x[l + k - 2]; rows
    with l + k - 2 outside [0, L) must contribute zero.  The margins are never
    touched by _write_tap_bands, so zeroing once per grid step (not once per conv
    layer) is enough.  All slice bounds are static Python ints -> plain stores.
    """
    bt, seq_len, _ = tap_ref.shape
    dt = tap_ref.dtype
    for k in range(5):
        lo = max(0, 2 - k)
        hi = min(seq_len, seq_len + 2 - k)
        c0 = k * c
        if lo > 0:
            tap_ref[:, 0:lo, c0:c0 + c] = jnp.zeros((bt, lo, c), dt)
        if hi < seq_len:
            tap_ref[:, hi:seq_len, c0:c0 + c] = jnp.zeros((bt, seq_len - hi, c), dt)


def _write_tap_bands(tap_ref, x, c):
    """Write the in-range rows of each tap band (kernel-5 'same'-padded conv im2col).

    tap_ref: VMEM ref (Bt, L, 5*c);  x: (Bt, L, c) array.  Band k, output row l
    gets x[l + k - 2].  Static slice bounds -> plain sliced stores.
    """
    bt, seq_len, _ = x.shape
    for k in range(5):
        lo = max(0, 2 - k)
        hi = min(seq_len, seq_len + 2 - k)
        c0 = k * c
        if hi > lo:
            tap_ref[:, lo:hi, c0:c0 + c] = x[:, lo + k - 2:hi + k - 2, :]


def _decnn_kernel(emb_ref,
                  w12, b12, w3, b3, w4, b4, w5, b5,
                  wl1h, wl1e, bl1, wl2, bl2,
                  out_ref,
                  tap1, tapm):
    """One batch-block forward.  emb_ref: (Bt, L, C_pad) bf16, out_ref: (Bt, L, 128)."""
    bt, seq_len, c_pad = emb_ref.shape
    rows = bt * seq_len
    f32, bf16 = jnp.float32, jnp.bfloat16

    x = emb_ref[...]                                   # (Bt, L, C_pad) bf16
    x2 = x.reshape(rows, c_pad)                        # reused for the dom term below

    # --- conv1(k5) + conv2(k3) fused: build taps, one MXU dot (K=5*C_pad), relu ---
    _zero_tap_margins(tap1, c_pad)
    _write_tap_bands(tap1, x, c_pad)
    h = jnp.dot(tap1[...].reshape(rows, 5 * c_pad), w12[...],
                preferred_element_type=f32) + b12[...]
    hb = jnp.maximum(h, 0.0).astype(bf16)              # (rows, 256) bf16

    # --- conv3/4/5 (kernel 5, same padding), each one im2col matmul (K=1280) ---
    _zero_tap_margins(tapm, 256)                       # margins shared by all 3 layers
    for w, b in ((w3, b3), (w4, b4), (w5, b5)):
        _write_tap_bands(tapm, hb.reshape(bt, seq_len, 256), 256)
        h = jnp.dot(tapm[...].reshape(rows, 5 * 256), w[...],
                    preferred_element_type=f32) + b[...]
        hb = jnp.maximum(h, 0.0).astype(bf16)          # (rows, 256) bf16

    # --- linear_ae1 over [conv_out | domain_emb]; dom term folded into wl1e ---
    z = (jnp.dot(hb, wl1h[...], preferred_element_type=f32)
         + jnp.dot(x2, wl1e[...], preferred_element_type=f32)
         + bl1[...])
    zb = jnp.maximum(z, 0.0).astype(bf16)              # (rows, 128) bf16

    # --- linear_ae2 (classes padded to 128; pad bias = -1e30) ---
    logit = jnp.dot(zb, wl2[...], preferred_element_type=f32) + bl2[...]

    # --- log_softmax over classes (pad classes contribute exp(-1e30) == 0) ---
    m = jnp.max(logit, axis=1, keepdims=True)
    s = logit - m
    lse = jnp.log(jnp.sum(jnp.exp(s), axis=1, keepdims=True))
    out_ref[...] = (s - lse).reshape(bt, seq_len, logit.shape[1]).astype(out_ref.dtype)


def _prepare_weights(params, gen_dim, dom_dim, c_pad, h2_pad, nc_pad):
    """Host-side (jit-constant-folded) weight prep: fuse, pad, im2col-reshape, bf16."""
    f32, bf16 = jnp.float32, jnp.bfloat16
    c_in = gen_dim + dom_dim

    # conv1 (k=5) and conv2 (k=3, centered) fused along the output dim.
    w12 = jnp.zeros((5, c_pad, 256), f32)
    w12 = w12.at[:, :c_in, :128].set(params["w1"])
    w12 = w12.at[1:4, :c_in, 128:].set(params["w2"])
    w12 = w12.reshape(5 * c_pad, 256).astype(bf16)
    b12 = jnp.concatenate([params["b1"], params["b2"]], axis=1).astype(f32)

    def conv_flat(w):  # (5, 256, 256) -> (1280, 256) im2col weight
        return w.reshape(5 * 256, 256).astype(bf16)

    # linear_ae1 input order in the reference model: [conv_out(256) | dom(dom_dim)].
    wl1 = params["wl1"]                                # (256 + dom_dim, 50)
    nh = wl1.shape[1]
    wl1h = jnp.zeros((256, h2_pad), f32).at[:, :nh].set(wl1[:256]).astype(bf16)
    wl1e = (jnp.zeros((c_pad, h2_pad), f32)
            .at[gen_dim:gen_dim + dom_dim, :nh].set(wl1[256:]).astype(bf16))
    bl1 = jnp.zeros((1, h2_pad), f32).at[:, :nh].set(params["bl1"])

    wl2 = params["wl2"]                                # (50, NC)
    nc = wl2.shape[1]
    wl2p = jnp.zeros((h2_pad, nc_pad), f32).at[:nh, :nc].set(wl2).astype(bf16)
    bl2p = jnp.full((1, nc_pad), -1e30, f32).at[:, :nc].set(params["bl2"])

    return [w12, b12,
            conv_flat(params["w3"]), params["b3"].astype(f32),
            conv_flat(params["w4"]), params["b4"].astype(f32),
            conv_flat(params["w5"]), params["b5"].astype(f32),
            wl1h, wl1e, bl1, wl2p, bl2p]


def decnn_forward(x, x_len, x_mask, x_tag, params, block_b=None):
    """x: [B, L] int32 token ids.  Returns log-softmax scores [B, L, num_classes]."""
    del x_len, x_mask, x_tag  # unused in the testing / no-CRF / tag=False path
    bf16 = jnp.bfloat16

    gen_tab = params["gen_emb"].astype(bf16)
    dom_tab = params["dom_emb"].astype(bf16)
    gen_dim, dom_dim = gen_tab.shape[1], dom_tab.shape[1]
    c_in = gen_dim + dom_dim
    c_pad = ((c_in + 127) // 128) * 128
    h2_pad = 128                                       # linear_ae1 width 50 -> 128
    nc = params["wl2"].shape[1]
    nc_pad = 128                                       # lane-dense output store

    # Embedding gathers stay in plain JAX (glue); hot path is the Pallas kernel.
    emb = jnp.concatenate([jnp.take(gen_tab, x, axis=0),
                           jnp.take(dom_tab, x, axis=0)], axis=2)   # [B, L, C_in] bf16
    B, L, _ = emb.shape
    if c_pad > c_in:
        emb = jnp.pad(emb, ((0, 0), (0, 0), (0, c_pad - c_in)))

    # Batch block size: ~1024 matmul rows per grid step (amortizes per-step overhead,
    # keeps the MXU pipeline full), but always at least two -- and an even number of --
    # grid steps when B >= 2 so the "parallel" axis can split across v7x's two
    # TensorCores.  Override with block_b to take full manual control.
    if block_b is None:
        blk = max(1, min(B, -(-1024 // L)))            # ~1024 rows / step target
        steps = max(2 if B >= 2 else 1, -(-B // blk))  # >= 2 steps for megacore
        if steps > 1 and steps % 2:
            steps += 1                                 # even split over the 2 TCs
        block_b = -(-B // steps)
    b_pad = -(-B // block_b) * block_b
    if b_pad > B:
        emb = jnp.pad(emb, ((0, b_pad - B), (0, 0), (0, 0)))

    weights = _prepare_weights(params, gen_dim, dom_dim, c_pad, h2_pad, nc_pad)

    def full_spec(a):
        nd = a.ndim
        return pl.BlockSpec(a.shape, lambda b, _nd=nd: (0,) * _nd)

    grid_spec = pltpu.PrefetchScalarGridSpec(
        num_scalar_prefetch=0,
        grid=(b_pad // block_b,),
        in_specs=[pl.BlockSpec((block_b, L, c_pad), lambda b: (b, 0, 0))]
                 + [full_spec(w) for w in weights],
        out_specs=pl.BlockSpec((block_b, L, nc_pad), lambda b: (b, 0, 0)),
        scratch_shapes=[pltpu.VMEM((block_b, L, 5 * c_pad), bf16),   # conv1/2 taps
                        pltpu.VMEM((block_b, L, 5 * 256), bf16)],    # conv3-5 taps
    )

    out = pl.pallas_call(
        _decnn_kernel,
        out_shape=jax.ShapeDtypeStruct((b_pad, L, nc_pad), jnp.float32),
        grid_spec=grid_spec,
        compiler_params=pltpu.CompilerParams(
            dimension_semantics=("parallel",),         # each step is self-contained
            vmem_limit_bytes=32 * 1024 * 1024),        # headroom over v5e's 16 MiB default
    )(emb, *weights)

    return out[:B, :, :nc]


def init_params(key, vocab=50, gen_dim=32, dom_dim=16, num_classes=3):
    ks = jax.random.split(key, 16)
    c_in = gen_dim + dom_dim
    n = lambda k, shape, s=0.05: (jax.random.normal(k, shape, jnp.float32) * s)
    return {
        "gen_emb": n(ks[0], (vocab, gen_dim), 0.5),
        "dom_emb": n(ks[1], (vocab, dom_dim), 0.5),
        # conv weights: [K, C_in, C_out]  (torch Conv1d weight permuted (2, 1, 0))
        "w1": n(ks[2], (5, c_in, 128)), "b1": n(ks[3], (1, 128)),
        "w2": n(ks[4], (3, c_in, 128)), "b2": n(ks[5], (1, 128)),
        "w3": n(ks[6], (5, 256, 256)), "b3": n(ks[7], (1, 256)),
        "w4": n(ks[8], (5, 256, 256)), "b4": n(ks[9], (1, 256)),
        "w5": n(ks[10], (5, 256, 256)), "b5": n(ks[11], (1, 256)),
        # linear weights: [In, Out]
        "wl1": n(ks[12], (256 + dom_dim, 50)), "bl1": n(ks[13], (1, 50)),
        "wl2": n(ks[14], (50, num_classes)), "bl2": n(ks[15], (1, num_classes)),
    }


if __name__ == "__main__":
    key = jax.random.PRNGKey(0)
    pkey, xkey = jax.random.split(key)

    B, L, vocab = 2, 16, 50
    params = init_params(pkey, vocab=vocab, gen_dim=32, dom_dim=16, num_classes=3)

    x = jax.random.randint(xkey, (B, L), 0, vocab, dtype=jnp.int32)
    x_len = jnp.full((B,), L, dtype=jnp.int32)
    x_mask = jnp.ones((B, L), dtype=jnp.int32)
    x_tag = jnp.zeros((B, L, 0), dtype=jnp.float32)   # tag=False -> tag_dim == 0

    fwd = jax.jit(functools.partial(decnn_forward, params=params))
    out = fwd(x, x_len, x_mask, x_tag)
    jax.block_until_ready(out)

    assert out.shape == (B, L, 3), out.shape
    # rows of log-softmax should exp-sum to 1
    assert jnp.allclose(jnp.sum(jnp.exp(out), axis=-1), 1.0, atol=1e-3)
    assert bool(jnp.all(jnp.isfinite(out)))
    print("KERNEL_OK")
</pallas_src>

<mosaic_0001>
module attributes {stable_mosaic.version = 11 : i64} {
  func.func @_decnn_kernel(%arg0: i32, %arg1: memref<1x16x128xbf16, #tpu.memory_space<vmem>>, %arg2: memref<640x256xbf16, #tpu.memory_space<vmem>>, %arg3: memref<1x256xf32, #tpu.memory_space<vmem>>, %arg4: memref<1280x256xbf16, #tpu.memory_space<vmem>>, %arg5: memref<1x256xf32, #tpu.memory_space<vmem>>, %arg6: memref<1280x256xbf16, #tpu.memory_space<vmem>>, %arg7: memref<1x256xf32, #tpu.memory_space<vmem>>, %arg8: memref<1280x256xbf16, #tpu.memory_space<vmem>>, %arg9: memref<1x256xf32, #tpu.memory_space<vmem>>, %arg10: memref<256x128xbf16, #tpu.memory_space<vmem>>, %arg11: memref<128x128xbf16, #tpu.memory_space<vmem>>, %arg12: memref<1x128xf32, #tpu.memory_space<vmem>>, %arg13: memref<128x128xbf16, #tpu.memory_space<vmem>>, %arg14: memref<1x128xf32, #tpu.memory_space<vmem>>, %arg15: memref<1x16x128xf32, #tpu.memory_space<vmem>>, %arg16: memref<1x16x640xbf16, #tpu.memory_space<vmem>>, %arg17: memref<1x16x1280xbf16, #tpu.memory_space<vmem>>) attributes {dimension_semantics = [#tpu.dimension_semantics<parallel>], iteration_bounds = array<i64: 2>, scalar_prefetch = 0 : i64, scratch_operands = 2 : i64, tpu.core_type = #tpu.core_type<tc>, window_params = [{transform_indices = @transform_0, window_bounds = array<i64: 1, 16, 128>}, {pipeline_mode = #tpu.pipeline_mode<synchronous>, transform_indices = @transform_1, window_bounds = array<i64: 640, 256>}, {pipeline_mode = #tpu.pipeline_mode<synchronous>, transform_indices = @transform_2, window_bounds = array<i64: 1, 256>}, {pipeline_mode = #tpu.pipeline_mode<synchronous>, transform_indices = @transform_3, window_bounds = array<i64: 1280, 256>}, {pipeline_mode = #tpu.pipeline_mode<synchronous>, transform_indices = @transform_4, window_bounds = array<i64: 1, 256>}, {pipeline_mode = #tpu.pipeline_mode<synchronous>, transform_indices = @transform_5, window_bounds = array<i64: 1280, 256>}, {pipeline_mode = #tpu.pipeline_mode<synchronous>, transform_indices = @transform_6, window_bounds = array<i64: 1, 256>}, {pipeline_mode = #tpu.pipeline_mode<synchronous>, transform_indices = @transform_7, window_bounds = array<i64: 1280, 256>}, {pipeline_mode = #tpu.pipeline_mode<synchronous>, transform_indices = @transform_8, window_bounds = array<i64: 1, 256>}, {pipeline_mode = #tpu.pipeline_mode<synchronous>, transform_indices = @transform_9, window_bounds = array<i64: 256, 128>}, {pipeline_mode = #tpu.pipeline_mode<synchronous>, transform_indices = @transform_10, window_bounds = array<i64: 128, 128>}, {pipeline_mode = #tpu.pipeline_mode<synchronous>, transform_indices = @transform_11, window_bounds = array<i64: 1, 128>}, {pipeline_mode = #tpu.pipeline_mode<synchronous>, transform_indices = @transform_12, window_bounds = array<i64: 128, 128>}, {pipeline_mode = #tpu.pipeline_mode<synchronous>, transform_indices = @transform_13, window_bounds = array<i64: 1, 128>}, {transform_indices = @transform_14, window_bounds = array<i64: 1, 16, 128>}]} {
    %c0 = arith.constant 0 : index
    %c0_0 = arith.constant 0 : index
    %c0_1 = arith.constant 0 : index
    %0 = vector.load %arg1[%c0, %c0_0, %c0_1] : memref<1x16x128xbf16, #tpu.memory_space<vmem>>, vector<1x16x128xbf16>
    %1 = vector.shape_cast %0 : vector<1x16x128xbf16> to vector<16x128xbf16>
    %cst = arith.constant 0.000000e+00 : bf16
    %2 = vector.broadcast %cst : bf16 to vector<1x2x128xbf16>
    %c0_2 = arith.constant 0 : index
    %c0_3 = arith.constant 0 : index
    %c0_4 = arith.constant 0 : index
    %3 = vector.load %arg16[%c0_2, %c0_3, %c0_4] : memref<1x16x640xbf16, #tpu.memory_space<vmem>>, vector<1x2x128xbf16>
    tpu.vector_store %arg16[%c0_2, %c0_3, %c0_4], %2 {strides = array<i32>} : memref<1x16x640xbf16, #tpu.memory_space<vmem>>, vector<1x2x128xbf16>,
    %cst_5 = arith.constant 0.000000e+00 : bf16
    %4 = vector.broadcast %cst_5 : bf16 to vector<1x1x128xbf16>
    %c0_6 = arith.constant 0 : index
    %c0_7 = arith.constant 0 : index
    %c128 = arith.constant 128 : index
    %5 = vector.load %arg16[%c0_6, %c0_7, %c128] : memref<1x16x640xbf16, #tpu.memory_space<vmem>>, vector<1x1x128xbf16>
    tpu.vector_store %arg16[%c0_6, %c0_7, %c128], %4 {strides = array<i32>} : memref<1x16x640xbf16, #tpu.memory_space<vmem>>, vector<1x1x128xbf16>,
    %cst_8 = arith.constant 0.000000e+00 : bf16
    %6 = vector.broadcast %cst_8 : bf16 to vector<1x1x128xbf16>
    %c0_9 = arith.constant 0 : index
    %c15 = arith.constant 15 : index
    %c384 = arith.constant 384 : index
    %7 = vector.load %arg16[%c0_9, %c15, %c384] : memref<1x16x640xbf16, #tpu.memory_space<vmem>>, vector<1x1x128xbf16>
    tpu.vector_store %arg16[%c0_9, %c15, %c384], %6 {strides = array<i32>} : memref<1x16x640xbf16, #tpu.memory_space<vmem>>, vector<1x1x128xbf16>,
    %cst_10 = arith.constant 0.000000e+00 : bf16
    %8 = vector.broadcast %cst_10 : bf16 to vector<1x2x128xbf16>
    %c0_11 = arith.constant 0 : index
    %c14 = arith.constant 14 : index
    %c512 = arith.constant 512 : index
    %9 = vector.load %arg16[%c0_11, %c14, %c512] : memref<1x16x640xbf16, #tpu.memory_space<vmem>>, vector<1x2x128xbf16>
    tpu.vector_store %arg16[%c0_11, %c14, %c512], %8 {strides = array<i32>} : memref<1x16x640xbf16, #tpu.memory_space<vmem>>, vector<1x2x128xbf16>,
    %10 = vector.extract_strided_slice %0 {offsets = [0, 0, 0], sizes = [1, 14, 128], strides = [1, 1, 1]} : vector<1x16x128xbf16> to vector<1x14x128xbf16>
    %c0_12 = arith.constant 0 : index
    %c2 = arith.constant 2 : index
    %c0_13 = arith.constant 0 : index
    %11 = vector.load %arg16[%c0_12, %c2, %c0_13] : memref<1x16x640xbf16, #tpu.memory_space<vmem>>, vector<1x14x128xbf16>
    tpu.vector_store %arg16[%c0_12, %c2, %c0_13], %10 {strides = array<i32>} : memref<1x16x640xbf16, #tpu.memory_space<vmem>>, vector<1x14x128xbf16>,
    %12 = vector.extract_strided_slice %0 {offsets = [0, 0, 0], sizes = [1, 15, 128], strides = [1, 1, 1]} : vector<1x16x128xbf16> to vector<1x15x128xbf16>
    %c0_14 = arith.constant 0 : index
    %c1 = arith.constant 1 : index
    %c128_15 = arith.constant 128 : index
    %13 = vector.load %arg16[%c0_14, %c1, %c128_15] : memref<1x16x640xbf16, #tpu.memory_space<vmem>>, vector<1x15x128xbf16>
    tpu.vector_store %arg16[%c0_14, %c1, %c128_15], %12 {strides = array<i32>} : memref<1x16x640xbf16, #tpu.memory_space<vmem>>, vector<1x15x128xbf16>,
    %c0_16 = arith.constant 0 : index
    %c0_17 = arith.constant 0 : index
    %c256 = arith.constant 256 : index
    %14 = vector.load %arg16[%c0_16, %c0_17, %c256] : memref<1x16x640xbf16, #tpu.memory_space<vmem>>, vector<1x16x128xbf16>
    tpu.vector_store %arg16[%c0_16, %c0_17, %c256], %0 {strides = array<i32>} : memref<1x16x640xbf16, #tpu.memory_space<vmem>>, vector<1x16x128xbf16>,
    %15 = vector.extract_strided_slice %0 {offsets = [0, 1, 0], sizes = [1, 15, 128], strides = [1, 1, 1]} : vector<1x16x128xbf16> to vector<1x15x128xbf16>
    %c0_18 = arith.constant 0 : index
    %c0_19 = arith.constant 0 : index
    %c384_20 = arith.constant 384 : index
    %16 = vector.load %arg16[%c0_18, %c0_19, %c384_20] : memref<1x16x640xbf16, #tpu.memory_space<vmem>>, vector<1x15x128xbf16>
    tpu.vector_store %arg16[%c0_18, %c0_19, %c384_20], %15 {strides = array<i32>} : memref<1x16x640xbf16, #tpu.memory_space<vmem>>, vector<1x15x128xbf16>,
    %17 = vector.extract_strided_slice %0 {offsets = [0, 2, 0], sizes = [1, 14, 128], strides = [1, 1, 1]} : vector<1x16x128xbf16> to vector<1x14x128xbf16>
    %c0_21 = arith.constant 0 : index
    %c0_22 = arith.constant 0 : index
    %c512_23 = arith.constant 512 : index
    %18 = vector.load %arg16[%c0_21, %c0_22, %c512_23] : memref<1x16x640xbf16, #tpu.memory_space<vmem>>, vector<1x14x128xbf16>
    tpu.vector_store %arg16[%c0_21, %c0_22, %c512_23], %17 {strides = array<i32>} : memref<1x16x640xbf16, #tpu.memory_space<vmem>>, vector<1x14x128xbf16>,
    %c0_24 = arith.constant 0 : index
    %c0_25 = arith.constant 0 : index
    %c0_26 = arith.constant 0 : index
    %19 = vector.load %arg16[%c0_24, %c0_25, %c0_26] : memref<1x16x640xbf16, #tpu.memory_space<vmem>>, vector<1x16x640xbf16>
    %20 = vector.shape_cast %19 : vector<1x16x640xbf16> to vector<16x640xbf16>
    %c0_27 = arith.constant 0 : index
    %c0_28 = arith.constant 0 : index
    %21 = vector.load %arg2[%c0_27, %c0_28] : memref<640x256xbf16, #tpu.memory_space<vmem>>, vector<640x256xbf16>
    %cst_29 = arith.constant dense<0.000000e+00> : vector<16x256xf32>
    %22 = tpu.matmul %20, %21, %cst_29 {dimension_numbers = #tpu.dot_dimension_numbers<[1], [0], [0], [1], [0, 0, 1, 1], [], []>} : vector<16x640xbf16>, vector<640x256xbf16>, vector<16x256xf32> -> vector<16x256xf32>
    %c0_30 = arith.constant 0 : index
    %c0_31 = arith.constant 0 : index
    %23 = vector.load %arg3[%c0_30, %c0_31] : memref<1x256xf32, #tpu.memory_space<vmem>>, vector<1x256xf32>
    %24 = vector.broadcast %23 : vector<1x256xf32> to vector<16x256xf32>
    %25 = arith.addf %22, %24 : vector<16x256xf32>
    %cst_32 = arith.constant 0.000000e+00 : f32
    %26 = vector.broadcast %cst_32 : f32 to vector<16x256xf32>
    %27 = arith.maximumf %25, %26 : vector<16x256xf32>
    %28 = arith.truncf %27 : vector<16x256xf32> to vector<16x256xbf16>
    %cst_33 = arith.constant 0.000000e+00 : bf16
    %29 = vector.broadcast %cst_33 : bf16 to vector<1x2x256xbf16>
    %c0_34 = arith.constant 0 : index
    %c0_35 = arith.constant 0 : index
    %c0_36 = arith.constant 0 : index
    %30 = vector.load %arg17[%c0_34, %c0_35, %c0_36] : memref<1x16x1280xbf16, #tpu.memory_space<vmem>>, vector<1x2x256xbf16>
    tpu.vector_store %arg17[%c0_34, %c0_35, %c0_36], %29 {strides = array<i32>} : memref<1x16x1280xbf16, #tpu.memory_space<vmem>>, vector<1x2x256xbf16>,
    %cst_37 = arith.constant 0.000000e+00 : bf16
    %31 = vector.broadcast %cst_37 : bf16 to vector<1x1x256xbf16>
    %c0_38 = arith.constant 0 : index
    %c0_39 = arith.constant 0 : index
    %c256_40 = arith.constant 256 : index
    %32 = vector.load %arg17[%c0_38, %c0_39, %c256_40] : memref<1x16x1280xbf16, #tpu.memory_space<vmem>>, vector<1x1x256xbf16>
    tpu.vector_store %arg17[%c0_38, %c0_39, %c256_40], %31 {strides = array<i32>} : memref<1x16x1280xbf16, #tpu.memory_space<vmem>>, vector<1x1x256xbf16>,
    %cst_41 = arith.constant 0.000000e+00 : bf16
    %33 = vector.broadcast %cst_41 : bf16 to vector<1x1x256xbf16>
    %c0_42 = arith.constant 0 : index
    %c15_43 = arith.constant 15 : index
    %c768 = arith.constant 768 : index
    %34 = vector.load %arg17[%c0_42, %c15_43, %c768] : memref<1x16x1280xbf16, #tpu.memory_space<vmem>>, vector<1x1x256xbf16>
    tpu.vector_store %arg17[%c0_42, %c15_43, %c768], %33 {strides = array<i32>} : memref<1x16x1280xbf16, #tpu.memory_space<vmem>>, vector<1x1x256xbf16>,
    %cst_44 = arith.constant 0.000000e+00 : bf16
    %35 = vector.broadcast %cst_44 : bf16 to vector<1x2x256xbf16>
    %c0_45 = arith.constant 0 : index
    %c14_46 = arith.constant 14 : index
    %c1024 = arith.constant 1024 : index
    %36 = vector.load %arg17[%c0_45, %c14_46, %c1024] : memref<1x16x1280xbf16, #tpu.memory_space<vmem>>, vector<1x2x256xbf16>
    tpu.vector_store %arg17[%c0_45, %c14_46, %c1024], %35 {strides = array<i32>} : memref<1x16x1280xbf16, #tpu.memory_space<vmem>>, vector<1x2x256xbf16>,
    %37 = vector.shape_cast %28 : vector<16x256xbf16> to vector<1x16x256xbf16>
    %38 = vector.extract_strided_slice %37 {offsets = [0, 0, 0], sizes = [1, 14, 256], strides = [1, 1, 1]} : vector<1x16x256xbf16> to vector<1x14x256xbf16>
    %c0_47 = arith.constant 0 : index
    %c2_48 = arith.constant 2 : index
    %c0_49 = arith.constant 0 : index
    %39 = vector.load %arg17[%c0_47, %c2_48, %c0_49] : memref<1x16x1280xbf16, #tpu.memory_space<vmem>>, vector<1x14x256xbf16>
    tpu.vector_store %arg17[%c0_47, %c2_48, %c0_49], %38 {strides = array<i32>} : memref<1x16x1280xbf16, #tpu.memory_space<vmem>>, vector<1x14x256xbf16>,
    %40 = vector.extract_strided_slice %37 {offsets = [0, 0, 0], sizes = [1, 15, 256], strides = [1, 1, 1]} : vector<1x16x256xbf16> to vector<1x15x256xbf16>
    %c0_50 = arith.constant 0 : index
    %c1_51 = arith.constant 1 : index
    %c256_52 = arith.constant 256 : index
    %41 = vector.load %arg17[%c0_50, %c1_51, %c256_52] : memref<1x16x1280xbf16, #tpu.memory_space<vmem>>, vector<1x15x256xbf16>
    tpu.vector_store %arg17[%c0_50, %c1_51, %c256_52], %40 {strides = array<i32>} : memref<1x16x1280xbf16, #tpu.memory_space<vmem>>, vector<1x15x256xbf16>,
    %c0_53 = arith.constant 0 : index
    %c0_54 = arith.constant 0 : index
    %c512_55 = arith.constant 512 : index
    %42 = vector.load %arg17[%c0_53, %c0_54, %c512_55] : memref<1x16x1280xbf16, #tpu.memory_space<vmem>>, vector<1x16x256xbf16>
    tpu.vector_store %arg17[%c0_53, %c0_54, %c512_55], %37 {strides = array<i32>} : memref<1x16x1280xbf16, #tpu.memory_space<vmem>>, vector<1x16x256xbf16>,
    %43 = vector.extract_strided_slice %37 {offsets = [0, 1, 0], sizes = [1, 15, 256], strides = [1, 1, 1]} : vector<1x16x256xbf16> to vector<1x15x256xbf16>
    %c0_56 = arith.constant 0 : index
    %c0_57 = arith.constant 0 : index
    %c768_58 = arith.constant 768 : index
    %44 = vector.load %arg17[%c0_56, %c0_57, %c768_58] : memref<1x16x1280xbf16, #tpu.memory_space<vmem>>, vector<1x15x256xbf16>
    tpu.vector_store %arg17[%c0_56, %c0_57, %c768_58], %43 {strides = array<i32>} : memref<1x16x1280xbf16, #tpu.memory_space<vmem>>, vector<1x15x256xbf16>,
    %45 = vector.extract_strided_slice %37 {offsets = [0, 2, 0], sizes = [1, 14, 256], strides = [1, 1, 1]} : vector<1x16x256xbf16> to vector<1x14x256xbf16>
    %c0_59 = arith.constant 0 : index
    %c0_60 = arith.constant 0 : index
    %c1024_61 = arith.constant 1024 : index
    %46 = vector.load %arg17[%c0_59, %c0_60, %c1024_61] : memref<1x16x1280xbf16, #tpu.memory_space<vmem>>, vector<1x14x256xbf16>
    tpu.vector_store %arg17[%c0_59, %c0_60, %c1024_61], %45 {strides = array<i32>} : memref<1x16x1280xbf16, #tpu.memory_space<vmem>>, vector<1x14x256xbf16>,
    %c0_62 = arith.constant 0 : index
    %c0_63 = arith.constant 0 : index
    %c0_64 = arith.constant 0 : index
    %47 = vector.load %arg17[%c0_62, %c0_63, %c0_64] : memref<1x16x1280xbf16, #tpu.memory_space<vmem>>, vector<1x16x1280xbf16>
    %48 = vector.shape_cast %47 : vector<1x16x1280xbf16> to vector<16x1280xbf16>
    %c0_65 = arith.constant 0 : index
    %c0_66 = arith.constant 0 : index
    %49 = vector.load %arg4[%c0_65, %c0_66] : memref<1280x256xbf16, #tpu.memory_space<vmem>>, vector<1280x256xbf16>
    %cst_67 = arith.constant dense<0.000000e+00> : vector<16x256xf32>
    %50 = tpu.matmul %48, %49, %cst_67 {dimension_numbers = #tpu.dot_dimension_numbers<[1], [0], [0], [1], [0, 0, 1, 1], [], []>} : vector<16x1280xbf16>, vector<1280x256xbf16>, vector<16x256xf32> -> vector<16x256xf32>
    %c0_68 = arith.constant 0 : index
    %c0_69 = arith.constant 0 : index
    %51 = vector.load %arg5[%c0_68, %c0_69] : memref<1x256xf32, #tpu.memory_space<vmem>>, vector<1x256xf32>
    %52 = vector.broadcast %51 : vector<1x256xf32> to vector<16x256xf32>
    %53 = arith.addf %50, %52 : vector<16x256xf32>
    %cst_70 = arith.constant 0.000000e+00 : f32
    %54 = vector.broadcast %cst_70 : f32 to vector<16x256xf32>
    %55 = arith.maximumf %53, %54 : vector<16x256xf32>
    %56 = arith.truncf %55 : vector<16x256xf32> to vector<16x256xbf16>
    %57 = vector.shape_cast %56 : vector<16x256xbf16> to vector<1x16x256xbf16>
    %58 = vector.extract_strided_slice %57 {offsets = [0, 0, 0], sizes = [1, 14, 256], strides = [1, 1, 1]} : vector<1x16x256xbf16> to vector<1x14x256xbf16>
    %c0_71 = arith.constant 0 : index
    %c2_72 = arith.constant 2 : index
    %c0_73 = arith.constant 0 : index
    %59 = vector.load %arg17[%c0_71, %c2_72, %c0_73] : memref<1x16x1280xbf16, #tpu.memory_space<vmem>>, vector<1x14x256xbf16>
    tpu.vector_store %arg17[%c0_71, %c2_72, %c0_73], %58 {strides = array<i32>} : memref<1x16x1280xbf16, #tpu.memory_space<vmem>>, vector<1x14x256xbf16>,
    %60 = vector.extract_strided_slice %57 {offsets = [0, 0, 0], sizes = [1, 15, 256], strides = [1, 1, 1]} : vector<1x16x256xbf16> to vector<1x15x256xbf16>
    %c0_74 = arith.constant 0 : index
    %c1_75 = arith.constant 1 : index
    %c256_76 = arith.constant 256 : index
    %61 = vector.load %arg17[%c0_74, %c1_75, %c256_76] : memref<1x16x1280xbf16, #tpu.memory_space<vmem>>, vector<1x15x256xbf16>
    tpu.vector_store %arg17[%c0_74, %c1_75, %c256_76], %60 {strides = array<i32>} : memref<1x16x1280xbf16, #tpu.memory_space<vmem>>, vector<1x15x256xbf16>,
    %c0_77 = arith.constant 0 : index
    %c0_78 = arith.constant 0 : index
    %c512_79 = arith.constant 512 : index
    %62 = vector.load %arg17[%c0_77, %c0_78, %c512_79] : memref<1x16x1280xbf16, #tpu.memory_space<vmem>>, vector<1x16x256xbf16>
    tpu.vector_store %arg17[%c0_77, %c0_78, %c512_79], %57 {strides = array<i32>} : memref<1x16x1280xbf16, #tpu.memory_space<vmem>>, vector<1x16x256xbf16>,
    %63 = vector.extract_strided_slice %57 {offsets = [0, 1, 0], sizes = [1, 15, 256], strides = [1, 1, 1]} : vector<1x16x256xbf16> to vector<1x15x256xbf16>
    %c0_80 = arith.constant 0 : index
    %c0_81 = arith.constant 0 : index
    %c768_82 = arith.constant 768 : index
    %64 = vector.load %arg17[%c0_80, %c0_81, %c768_82] : memref<1x16x1280xbf16, #tpu.memory_space<vmem>>, vector<1x15x256xbf16>
    tpu.vector_store %arg17[%c0_80, %c0_81, %c768_82], %63 {strides = array<i32>} : memref<1x16x1280xbf16, #tpu.memory_space<vmem>>, vector<1x15x256xbf16>,
    %65 = vector.extract_strided_slice %57 {offsets = [0, 2, 0], sizes = [1, 14, 256], strides = [1, 1, 1]} : vector<1x16x256xbf16> to vector<1x14x256xbf16>
    %c0_83 = arith.constant 0 : index
    %c0_84 = arith.constant 0 : index
    %c1024_85 = arith.constant 1024 : index
    %66 = vector.load %arg17[%c0_83, %c0_84, %c1024_85] : memref<1x16x1280xbf16, #tpu.memory_space<vmem>>, vector<1x14x256xbf16>
    tpu.vector_store %arg17[%c0_83, %c0_84, %c1024_85], %65 {strides = array<i32>} : memref<1x16x1280xbf16, #tpu.memory_space<vmem>>, vector<1x14x256xbf16>,
    %c0_86 = arith.constant 0 : index
    %c0_87 = arith.constant 0 : index
    %c0_88 = arith.constant 0 : index
    %67 = vector.load %arg17[%c0_86, %c0_87, %c0_88] : memref<1x16x1280xbf16, #tpu.memory_space<vmem>>, vector<1x16x1280xbf16>
    %68 = vector.shape_cast %67 : vector<1x16x1280xbf16> to vector<16x1280xbf16>
    %c0_89 = arith.constant 0 : index
    %c0_90 = arith.constant 0 : index
    %69 = vector.load %arg6[%c0_89, %c0_90] : memref<1280x256xbf16, #tpu.memory_space<vmem>>, vector<1280x256xbf16>
    %cst_91 = arith.constant dense<0.000000e+00> : vector<16x256xf32>
    %70 = tpu.matmul %68, %69, %cst_91 {dimension_numbers = #tpu.dot_dimension_numbers<[1], [0], [0], [1], [0, 0, 1, 1], [], []>} : vector<16x1280xbf16>, vector<1280x256xbf16>, vector<16x256xf32> -> vector<16x256xf32>
    %c0_92 = arith.constant 0 : index
    %c0_93 = arith.constant 0 : index
    %71 = vector.load %arg7[%c0_92, %c0_93] : memref<1x256xf32, #tpu.memory_space<vmem>>, vector<1x256xf32>
    %72 = vector.broadcast %71 : vector<1x256xf32> to vector<16x256xf32>
    %73 = arith.addf %70, %72 : vector<16x256xf32>
    %cst_94 = arith.constant 0.000000e+00 : f32
    %74 = vector.broadcast %cst_94 : f32 to vector<16x256xf32>
    %75 = arith.maximumf %73, %74 : vector<16x256xf32>
    %76 = arith.truncf %75 : vector<16x256xf32> to vector<16x256xbf16>
    %77 = vector.shape_cast %76 : vector<16x256xbf16> to vector<1x16x256xbf16>
    %78 = vector.extract_strided_slice %77 {offsets = [0, 0, 0], sizes = [1, 14, 256], strides = [1, 1, 1]} : vector<1x16x256xbf16> to vector<1x14x256xbf16>
    %c0_95 = arith.constant 0 : index
    %c2_96 = arith.constant 2 : index
    %c0_97 = arith.constant 0 : index
    %79 = vector.load %arg17[%c0_95, %c2_96, %c0_97] : memref<1x16x1280xbf16, #tpu.memory_space<vmem>>, vector<1x14x256xbf16>
    tpu.vector_store %arg17[%c0_95, %c2_96, %c0_97], %78 {strides = array<i32>} : memref<1x16x1280xbf16, #tpu.memory_space<vmem>>, vector<1x14x256xbf16>,
    %80 = vector.extract_strided_slice %77 {offsets = [0, 0, 0], sizes = [1, 15, 256], strides = [1, 1, 1]} : vector<1x16x256xbf16> to vector<1x15x256xbf16>
    %c0_98 = arith.constant 0 : index
    %c1_99 = arith.constant 1 : index
    %c256_100 = arith.constant 256 : index
    %81 = vector.load %arg17[%c0_98, %c1_99, %c256_100] : memref<1x16x1280xbf16, #tpu.memory_space<vmem>>, vector<1x15x256xbf16>
    tpu.vector_store %arg17[%c0_98, %c1_99, %c256_100], %80 {strides = array<i32>} : memref<1x16x1280xbf16, #tpu.memory_space<vmem>>, vector<1x15x256xbf16>,
    %c0_101 = arith.constant 0 : index
    %c0_102 = arith.constant 0 : index
    %c512_103 = arith.constant 512 : index
    %82 = vector.load %arg17[%c0_101, %c0_102, %c512_103] : memref<1x16x1280xbf16, #tpu.memory_space<vmem>>, vector<1x16x256xbf16>
    tpu.vector_store %arg17[%c0_101, %c0_102, %c512_103], %77 {strides = array<i32>} : memref<1x16x1280xbf16, #tpu.memory_space<vmem>>, vector<1x16x256xbf16>,
    %83 = vector.extract_strided_slice %77 {offsets = [0, 1, 0], sizes = [1, 15, 256], strides = [1, 1, 1]} : vector<1x16x256xbf16> to vector<1x15x256xbf16>
    %c0_104 = arith.constant 0 : index
    %c0_105 = arith.constant 0 : index
    %c768_106 = arith.constant 768 : index
    %84 = vector.load %arg17[%c0_104, %c0_105, %c768_106] : memref<1x16x1280xbf16, #tpu.memory_space<vmem>>, vector<1x15x256xbf16>
    tpu.vector_store %arg17[%c0_104, %c0_105, %c768_106], %83 {strides = array<i32>} : memref<1x16x1280xbf16, #tpu.memory_space<vmem>>, vector<1x15x256xbf16>,
    %85 = vector.extract_strided_slice %77 {offsets = [0, 2, 0], sizes = [1, 14, 256], strides = [1, 1, 1]} : vector<1x16x256xbf16> to vector<1x14x256xbf16>
    %c0_107 = arith.constant 0 : index
    %c0_108 = arith.constant 0 : index
    %c1024_109 = arith.constant 1024 : index
    %86 = vector.load %arg17[%c0_107, %c0_108, %c1024_109] : memref<1x16x1280xbf16, #tpu.memory_space<vmem>>, vector<1x14x256xbf16>
    tpu.vector_store %arg17[%c0_107, %c0_108, %c1024_109], %85 {strides = array<i32>} : memref<1x16x1280xbf16, #tpu.memory_space<vmem>>, vector<1x14x256xbf16>,
    %c0_110 = arith.constant 0 : index
    %c0_111 = arith.constant 0 : index
    %c0_112 = arith.constant 0 : index
    %87 = vector.load %arg17[%c0_110, %c0_111, %c0_112] : memref<1x16x1280xbf16, #tpu.memory_space<vmem>>, vector<1x16x1280xbf16>
    %88 = vector.shape_cast %87 : vector<1x16x1280xbf16> to vector<16x1280xbf16>
    %c0_113 = arith.constant 0 : index
    %c0_114 = arith.constant 0 : index
    %89 = vector.load %arg8[%c0_113, %c0_114] : memref<1280x256xbf16, #tpu.memory_space<vmem>>, vector<1280x256xbf16>
    %cst_115 = arith.constant dense<0.000000e+00> : vector<16x256xf32>
    %90 = tpu.matmul %88, %89, %cst_115 {dimension_numbers = #tpu.dot_dimension_numbers<[1], [0], [0], [1], [0, 0, 1, 1], [], []>} : vector<16x1280xbf16>, vector<1280x256xbf16>, vector<16x256xf32> -> vector<16x256xf32>
    %c0_116 = arith.constant 0 : index
    %c0_117 = arith.constant 0 : index
    %91 = vector.load %arg9[%c0_116, %c0_117] : memref<1x256xf32, #tpu.memory_space<vmem>>, vector<1x256xf32>
    %92 = vector.broadcast %91 : vector<1x256xf32> to vector<16x256xf32>
    %93 = arith.addf %90, %92 : vector<16x256xf32>
    %cst_118 = arith.constant 0.000000e+00 : f32
    %94 = vector.broadcast %cst_118 : f32 to vector<16x256xf32>
    %95 = arith.maximumf %93, %94 : vector<16x256xf32>
    %96 = arith.truncf %95 : vector<16x256xf32> to vector<16x256xbf16>
    %c0_119 = arith.constant 0 : index
    %c0_120 = arith.constant 0 : index
    %97 = vector.load %arg10[%c0_119, %c0_120] : memref<256x128xbf16, #tpu.memory_space<vmem>>, vector<256x128xbf16>
    %cst_121 = arith.constant dense<0.000000e+00> : vector<16x128xf32>
    %98 = tpu.matmul %96, %97, %cst_121 {dimension_numbers = #tpu.dot_dimension_numbers<[1], [0], [0], [1], [0, 0, 1, 1], [], []>} : vector<16x256xbf16>, vector<256x128xbf16>, vector<16x128xf32> -> vector<16x128xf32>
    %c0_122 = arith.constant 0 : index
    %c0_123 = arith.constant 0 : index
    %99 = vector.load %arg11[%c0_122, %c0_123] : memref<128x128xbf16, #tpu.memory_space<vmem>>, vector<128x128xbf16>
    %cst_124 = arith.constant dense<0.000000e+00> : vector<16x128xf32>
    %100 = tpu.matmul %1, %99, %cst_124 {dimension_numbers = #tpu.dot_dimension_numbers<[1], [0], [0], [1], [0, 0, 1, 1], [], []>} : vector<16x128xbf16>, vector<128x128xbf16>, vector<16x128xf32> -> vector<16x128xf32>
    %101 = arith.addf %98, %100 : vector<16x128xf32>
    %c0_125 = arith.constant 0 : index
    %c0_126 = arith.constant 0 : index
    %102 = vector.load %arg12[%c0_125, %c0_126] : memref<1x128xf32, #tpu.memory_space<vmem>>, vector<1x128xf32>
    %103 = vector.broadcast %102 : vector<1x128xf32> to vector<16x128xf32>
    %104 = arith.addf %101, %103 : vector<16x128xf32>
    %cst_127 = arith.constant 0.000000e+00 : f32
    %105 = vector.broadcast %cst_127 : f32 to vector<16x128xf32>
    %106 = arith.maximumf %104, %105 : vector<16x128xf32>
    %107 = arith.truncf %106 : vector<16x128xf32> to vector<16x128xbf16>
    %c0_128 = arith.constant 0 : index
    %c0_129 = arith.constant 0 : index
    %108 = vector.load %arg13[%c0_128, %c0_129] : memref<128x128xbf16, #tpu.memory_space<vmem>>, vector<128x128xbf16>
    %cst_130 = arith.constant dense<0.000000e+00> : vector<16x128xf32>
    %109 = tpu.matmul %107, %108, %cst_130 {dimension_numbers = #tpu.dot_dimension_numbers<[1], [0], [0], [1], [0, 0, 1, 1], [], []>} : vector<16x128xbf16>, vector<128x128xbf16>, vector<16x128xf32> -> vector<16x128xf32>
    %c0_131 = arith.constant 0 : index
    %c0_132 = arith.constant 0 : index
    %110 = vector.load %arg14[%c0_131, %c0_132] : memref<1x128xf32, #tpu.memory_space<vmem>>, vector<1x128xf32>
    %111 = vector.broadcast %110 : vector<1x128xf32> to vector<16x128xf32>
    %112 = arith.addf %109, %111 : vector<16x128xf32>
    %cst_133 = arith.constant dense<0xFF800000> : vector<16xf32>
    %113 = vector.multi_reduction <maximumf>, %112, %cst_133 [1] : vector<16x128xf32> to vector<16xf32>
    %114 = vector.shape_cast %113 : vector<16xf32> to vector<16x1xf32>
    %115 = vector.broadcast %114 : vector<16x1xf32> to vector<16x128xf32>
    %116 = arith.subf %112, %115 : vector<16x128xf32>
    %117 = math.exp %116 : vector<16x128xf32>
    %cst_134 = arith.constant dense<0.000000e+00> : vector<16xf32>
    %118 = vector.multi_reduction <add>, %117, %cst_134 [1] : vector<16x128xf32> to vector<16xf32>
    %119 = vector.shape_cast %118 : vector<16xf32> to vector<16x1xf32>
    %120 = math.log %119 : vector<16x1xf32>
    %121 = vector.broadcast %120 : vector<16x1xf32> to vector<16x128xf32>
    %122 = arith.subf %116, %121 : vector<16x128xf32>
    %123 = vector.shape_cast %122 : vector<16x128xf32> to vector<1x16x128xf32>
    %c0_135 = arith.constant 0 : index
    %c0_136 = arith.constant 0 : index
    %c0_137 = arith.constant 0 : index
    %124 = vector.load %arg15[%c0_135, %c0_136, %c0_137] : memref<1x16x128xf32, #tpu.memory_space<vmem>>, vector<1x16x128xf32>
    tpu.vector_store %arg15[%c0_135, %c0_136, %c0_137], %123 {strides = array<i32>} : memref<1x16x128xf32, #tpu.memory_space<vmem>>, vector<1x16x128xf32>,
    return
  }
  func.func @transform_0(%arg0: i32) -> (i32, i32, i32) {
    %c0_i32 = arith.constant 0 : i32
    %c0_i32_0 = arith.constant 0 : i32
    %c0_i32_1 = arith.constant 0 : i32
    return %arg0, %c0_i32, %c0_i32_0 : i32, i32, i32
  }
  func.func @transform_1(%arg0: i32) -> (i32, i32) {
    %c0_i32 = arith.constant 0 : i32
    %c0_i32_0 = arith.constant 0 : i32
    %c0_i32_1 = arith.constant 0 : i32
    return %c0_i32, %c0_i32_0 : i32, i32
  }
  func.func @transform_2(%arg0: i32) -> (i32, i32) {
    %c0_i32 = arith.constant 0 : i32
    %c0_i32_0 = arith.constant 0 : i32
    %c0_i32_1 = arith.constant 0 : i32
    return %c0_i32, %c0_i32_0 : i32, i32
  }
  func.func @transform_3(%arg0: i32) -> (i32, i32) {
    %c0_i32 = arith.constant 0 : i32
    %c0_i32_0 = arith.constant 0 : i32
    %c0_i32_1 = arith.constant 0 : i32
    return %c0_i32, %c0_i32_0 : i32, i32
  }
  func.func @transform_4(%arg0: i32) -> (i32, i32) {
    %c0_i32 = arith.constant 0 : i32
    %c0_i32_0 = arith.constant 0 : i32
    %c0_i32_1 = arith.constant 0 : i32
    return %c0_i32, %c0_i32_0 : i32, i32
  }
  func.func @transform_5(%arg0: i32) -> (i32, i32) {
    %c0_i32 = arith.constant 0 : i32
    %c0_i32_0 = arith.constant 0 : i32
    %c0_i32_1 = arith.constant 0 : i32
    return %c0_i32, %c0_i32_0 : i32, i32
  }
  func.func @transform_6(%arg0: i32) -> (i32, i32) {
    %c0_i32 = arith.constant 0 : i32
    %c0_i32_0 = arith.constant 0 : i32
    %c0_i32_1 = arith.constant 0 : i32
    return %c0_i32, %c0_i32_0 : i32, i32
  }
  func.func @transform_7(%arg0: i32) -> (i32, i32) {
    %c0_i32 = arith.constant 0 : i32
    %c0_i32_0 = arith.constant 0 : i32
    %c0_i32_1 = arith.constant 0 : i32
    return %c0_i32, %c0_i32_0 : i32, i32
  }
  func.func @transform_8(%arg0: i32) -> (i32, i32) {
    %c0_i32 = arith.constant 0 : i32
    %c0_i32_0 = arith.constant 0 : i32
    %c0_i32_1 = arith.constant 0 : i32
    return %c0_i32, %c0_i32_0 : i32, i32
  }
  func.func @transform_9(%arg0: i32) -> (i32, i32) {
    %c0_i32 = arith.constant 0 : i32
    %c0_i32_0 = arith.constant 0 : i32
    %c0_i32_1 = arith.constant 0 : i32
    return %c0_i32, %c0_i32_0 : i32, i32
  }
  func.func @transform_10(%arg0: i32) -> (i32, i32) {
    %c0_i32 = arith.constant 0 : i32
    %c0_i32_0 = arith.constant 0 : i32
    %c0_i32_1 = arith.constant 0 : i32
    return %c0_i32, %c0_i32_0 : i32, i32
  }
  func.func @transform_11(%arg0: i32) -> (i32, i32) {
    %c0_i32 = arith.constant 0 : i32
    %c0_i32_0 = arith.constant 0 : i32
    %c0_i32_1 = arith.constant 0 : i32
    return %c0_i32, %c0_i32_0 : i32, i32
  }
  func.func @transform_12(%arg0: i32) -> (i32, i32) {
    %c0_i32 = arith.constant 0 : i32
    %c0_i32_0 = arith.constant 0 : i32
    %c0_i32_1 = arith.constant 0 : i32
    return %c0_i32, %c0_i32_0 : i32, i32
  }
  func.func @transform_13(%arg0: i32) -> (i32, i32) {
    %c0_i32 = arith.constant 0 : i32
    %c0_i32_0 = arith.constant 0 : i32
    %c0_i32_1 = arith.constant 0 : i32
    return %c0_i32, %c0_i32_0 : i32, i32
  }
  func.func @transform_14(%arg0: i32) -> (i32, i32, i32) {
    %c0_i32 = arith.constant 0 : i32
    %c0_i32_0 = arith.constant 0 : i32
    %c0_i32_1 = arith.constant 0 : i32
    return %arg0, %c0_i32, %c0_i32_0 : i32, i32, i32
  }
}

</mosaic_0001>

<llo_original>
// kernel: decnn_forward.1
$region0: #{decnn_forward.1}
  #allocation0 [shape = 'u32[]', space=smem, size = 0x4, offset = 0x4, fixed_abs, tag = 'smem constant byte address 0x4 - core index']
  #allocation1 [shape = 'u32[72,128]{1,0:T(1,128)}', space=vmem, size = 0x9000, scoped, tag = 'internal scratch']
  #allocation2 [shape = 'bf16[1,16,640]{2,1,0:T(8,128)(2,1)}', space=vmem, size = 0x5000, scoped, tag = 'scratch operand']
  #allocation3 [shape = 'bf16[1,16,1280]{2,1,0:T(8,128)(2,1)}', space=vmem, size = 0xa000, scoped, tag = 'scratch operand']
  %s0 = inlined_call_operand.vmem [shape: bf16[2,16,128], index: 0, kind: input, shape index: {}]
  %s1 = inlined_call_operand.hbm [shape: bf16[640,256], index: 1, kind: input, shape index: {}]
  %s2 = inlined_call_operand.vmem [shape: f32[1,256], index: 2, kind: input, shape index: {}]
  %s3 = inlined_call_operand.hbm [shape: bf16[1280,256], index: 3, kind: input, shape index: {}]
  %s4 = inlined_call_operand.vmem [shape: f32[1,256], index: 4, kind: input, shape index: {}]
  %s5 = inlined_call_operand.hbm [shape: bf16[1280,256], index: 5, kind: input, shape index: {}]
  %s6 = inlined_call_operand.vmem [shape: f32[1,256], index: 6, kind: input, shape index: {}]
  %s7 = inlined_call_operand.hbm [shape: bf16[1280,256], index: 7, kind: input, shape index: {}]
  %s8 = inlined_call_operand.vmem [shape: f32[1,256], index: 8, kind: input, shape index: {}]
  %s9 = inlined_call_operand.vmem [shape: bf16[256,128], index: 9, kind: input, shape index: {}]
  %s10 = inlined_call_operand.vmem [shape: bf16[128,128], index: 10, kind: input, shape index: {}]
  %s11 = inlined_call_operand.vmem [shape: f32[1,128], index: 11, kind: input, shape index: {}]
  %s12 = inlined_call_operand.vmem [shape: bf16[128,128], index: 12, kind: input, shape index: {}]
  %s13 = inlined_call_operand.vmem [shape: f32[1,128], index: 13, kind: input, shape index: {}]
  %s14 = inlined_call_operand.vmem [shape: f32[2,16,128], index: 14, kind: output, shape index: {}]
  %s15 = sld [smem:[#allocation0]]
  $region105: #{decnn_forward.1} parent=0
    _
  %s17 = ssub.s32 1, %s15
  %s18 = scalar_select 0, %s17, %s15
  $region1: #{decnn_forward.1} parent=0
    #allocation4 [shape = 'u8[327680]{0}', space=vmem, size = 0x50000, scoped, tag = 'input window, operand 1, single buffered']
    #allocation5 [shape = 's32[2]{0}', space=sflag, size = 0x8, scoped, tag = 'scoped memory for decnn_forward.1']
    #allocation6 [shape = 'u8[655360]{0}', space=vmem, size = 0xa0000, scoped, tag = 'input window, operand 3, single buffered']
    #allocation7 [shape = 's32[1]{0}', space=sflag, size = 0x4, scoped, tag = 'scoped memory for decnn_forward.1']
    #allocation8 [shape = 'u8[655360]{0}', space=vmem, size = 0xa0000, scoped, tag = 'input window, operand 5, single buffered']
    #allocation9 [shape = 'u8[655360]{0}', space=vmem, size = 0xa0000, scoped, tag = 'input window, operand 7, single buffered']
    #allocation10 [shape = 's32[1]{0}', space=sflag, size = 0x4, scoped, tag = 'scoped memory for decnn_forward.1']
    %19 = vsyncpa [#allocation5], 0
    %20 = vsyncpa [#allocation7], 0
    %21 = vsyncpa [#allocation10], 0
    loop: start=0, step=1, limit=4
    $region2: #{decnn_forward.1} parent=1 // loop_pre_header
      _
    $region3: #{decnn_forward.1} parent=1 // loop_header
      %s23 = sphi 0, %s27
      %p24 = scmp.ge.s32.totalorder %s23, 4
      %s33 = sphi 0, %s35
      %s36 = sphi 0, %s33
      %s37 = sphi 0, %s36
      %s53 = sphi 0, %s37
      %s57 = sphi 0, %s57
      %s59 = sphi 0, %s57
      %s60 = sphi 0, %s59
      %s74 = sphi 0, %s60
      %s78 = sphi 0, %s78
      %s80 = sphi 0, %s78
      %s81 = sphi 0, %s80
      %s95 = sphi 0, %s81
      %s99 = sphi 0, %s99
      %s101 = sphi 0, %s99
      %s102 = sphi 0, %s101
      %s116 = sphi 0, %s102
      %s120 = sphi 0, %s120
      %s122 = sphi 0, %s120
      %s123 = sphi 0, %s122
      %s137 = sphi 0, %s123
      %s141 = sphi 0, %s141
      %s143 = sphi 0, %s141
      %s144 = sphi 0, %s143
      %s158 = sphi 0, %s144
      %s162 = sphi 0, %s162
      %s164 = sphi 0, %s162
      %s165 = sphi 0, %s164
      %s179 = sphi 0, %s165
      %s183 = sphi 0, %s183
      %s185 = sphi 0, %s183
      %s186 = sphi 0, %s185
      %s200 = sphi 0, %s186
      %s204 = sphi 0, %s204
      %s206 = sphi 0, %s204
      %s207 = sphi 0, %s206
      %s221 = sphi 0, %s207
      %s225 = sphi 0, %s225
      %s227 = sphi 0, %s225
      %s228 = sphi 0, %s227
      %s242 = sphi 0, %s228
      %s246 = sphi 0, %s246
      %s248 = sphi 0, %s246
      %s249 = sphi 0, %s248
      %s263 = sphi 0, %s249
      %s267 = sphi 0, %s267
      %s269 = sphi 0, %s267
      %s270 = sphi 0, %s269
      %s284 = sphi 0, %s270
      %s288 = sphi 0, %s288
      %s290 = sphi 0, %s288
      %s291 = sphi 0, %s290
      %s305 = sphi 0, %s291
      %s309 = sphi 0, %s309
      %s311 = sphi 0, %s309
      %s312 = sphi 0, %s311
      %s326 = sphi 0, %s312
      %s332 = sphi 0, %s334
      %s335 = sphi 0, %s332
      %s336 = sphi 0, %s335
      %s352 = sphi 0, %s336
    $region4: #{decnn_forward.1} parent=1 // loop_header_branch
      %26 = sbr.rel (%p24) target = $region8
    $region5: #{decnn_forward.1} parent=1 // loop_body
      %s28 = ssub.s32 %s23, 1
      %s29 = ssub.s32 %s23, 2
      %s30 = sadd.s32 %s23, 1
      %s31 = ssub.s32 %s23, %s30
      %p32 = scmp.eq.s32.totalorder %s31, 0
      %s34 = sadd.s32 %s33, 1
      %s35 = scalar_select %p32, %s33, %s34
      %p38 = pneg %p32
      %p39 = scmp.eq.s32.totalorder %s23, 1
      %p40 = por %p38, %p39
      %p41 = scmp.ne.s32.totalorder %s33, %s36
      %p42 = scmp.eq.s32.totalorder %s23, 0
      %p43 = por %p41, %p42
      %p44 = scmp.ne.s32.totalorder %s33, %s36
      %p45 = scmp.eq.s32.totalorder %s28, 1
      %p46 = por %p44, %p45
      %p47 = scmp.ne.s32.totalorder %s36, %s37
      %p48 = scmp.eq.s32.totalorder %s28, 0
      %p49 = por %p47, %p48
      %p50 = scmp.ne.s32.totalorder %s36, %s37
      %p51 = scmp.eq.s32.totalorder %s29, 1
      %p52 = por %p50, %p51
      %p54 = scmp.ne.s32.totalorder %s37, %s53
      %p55 = scmp.eq.s32.totalorder %s29, 0
      %p56 = por %p54, %p55
      %s58 = sadd.s32 %s57, 1
      %p61 = scmp.eq.s32.totalorder %s23, 1
      %p62 = scmp.ne.s32.totalorder %s57, %s59
      %p63 = scmp.eq.s32.totalorder %s23, 0
      %p64 = por %p62, %p63
      %p65 = scmp.ne.s32.totalorder %s57, %s59
      %p66 = scmp.eq.s32.totalorder %s28, 1
      %p67 = por %p65, %p66
      %p68 = scmp.ne.s32.totalorder %s59, %s60
      %p69 = scmp.eq.s32.totalorder %s28, 0
      %p70 = por %p68, %p69
      %p71 = scmp.ne.s32.totalorder %s59, %s60
      %p72 = scmp.eq.s32.totalorder %s29, 1
      %p73 = por %p71, %p72
      %p75 = scmp.ne.s32.totalorder %s60, %s74
      %p76 = scmp.eq.s32.totalorder %s29, 0
      %p77 = por %p75, %p76
      %s79 = sadd.s32 %s78, 1
      %p82 = scmp.eq.s32.totalorder %s23, 1
      %p83 = scmp.ne.s32.totalorder %s78, %s80
      %p84 = scmp.eq.s32.totalorder %s23, 0
      %p85 = por %p83, %p84
      %p86 = scmp.ne.s32.totalorder %s78, %s80
      %p87 = scmp.eq.s32.totalorder %s28, 1
      %p88 = por %p86, %p87
      %p89 = scmp.ne.s32.totalorder %s80, %s81
      %p90 = scmp.eq.s32.totalorder %s28, 0
      %p91 = por %p89, %p90
      %p92 = scmp.ne.s32.totalorder %s80, %s81
      %p93 = scmp.eq.s32.totalorder %s29, 1
      %p94 = por %p92, %p93
      %p96 = scmp.ne.s32.totalorder %s81, %s95
      %p97 = scmp.eq.s32.totalorder %s29, 0
      %p98 = por %p96, %p97
      %s100 = sadd.s32 %s99, 1
      %p103 = scmp.eq.s32.totalorder %s23, 1
      %p104 = scmp.ne.s32.totalorder %s99, %s101
      %p105 = scmp.eq.s32.totalorder %s23, 0
      %p106 = por %p104, %p105
      %p107 = scmp.ne.s32.totalorder %s99, %s101
      %p108 = scmp.eq.s32.totalorder %s28, 1
      %p109 = por %p107, %p108
      %p110 = scmp.ne.s32.totalorder %s101, %s102
      %p111 = scmp.eq.s32.totalorder %s28, 0
      %p112 = por %p110, %p111
      %p113 = scmp.ne.s32.totalorder %s101, %s102
      %p114 = scmp.eq.s32.totalorder %s29, 1
      %p115 = por %p113, %p114
      %p117 = scmp.ne.s32.totalorder %s102, %s116
      %p118 = scmp.eq.s32.totalorder %s29, 0
      %p119 = por %p117, %p118
      %s121 = sadd.s32 %s120, 1
      %p124 = scmp.eq.s32.totalorder %s23, 1
      %p125 = scmp.ne.s32.totalorder %s120, %s122
      %p126 = scmp.eq.s32.totalorder %s23, 0
      %p127 = por %p125, %p126
      %p128 = scmp.ne.s32.totalorder %s120, %s122
      %p129 = scmp.eq.s32.totalorder %s28, 1
      %p130 = por %p128, %p129
      %p131 = scmp.ne.s32.totalorder %s122, %s123
      %p132 = scmp.eq.s32.totalorder %s28, 0
      %p133 = por %p131, %p132
      %p134 = scmp.ne.s32.totalorder %s122, %s123
      %p135 = scmp.eq.s32.totalorder %s29, 1
      %p136 = por %p134, %p135
      %p138 = scmp.ne.s32.totalorder %s123, %s137
      %p139 = scmp.eq.s32.totalorder %s29, 0
      %p140 = por %p138, %p139
      %s142 = sadd.s32 %s141, 1
      %p145 = scmp.eq.s32.totalorder %s23, 1
      %p146 = scmp.ne.s32.totalorder %s141, %s143
      %p147 = scmp.eq.s32.totalorder %s23, 0
      %p148 = por %p146, %p147
      %p149 = scmp.ne.s32.totalorder %s141, %s143
      %p150 = scmp.eq.s32.totalorder %s28, 1
      %p151 = por %p149, %p150
      %p152 = scmp.ne.s32.totalorder %s143, %s144
      %p153 = scmp.eq.s32.totalorder %s28, 0
      %p154 = por %p152, %p153
      %p155 = scmp.ne.s32.totalorder %s143, %s144
      %p156 = scmp.eq.s32.totalorder %s29, 1
      %p157 = por %p155, %p156
      %p159 = scmp.ne.s32.totalorder %s144, %s158
      %p160 = scmp.eq.s32.totalorder %s29, 0
      %p161 = por %p159, %p160
      %s163 = sadd.s32 %s162, 1
      %p166 = scmp.eq.s32.totalorder %s23, 1
      %p167 = scmp.ne.s32.totalorder %s162, %s164
      %p168 = scmp.eq.s32.totalorder %s23, 0
      %p169 = por %p167, %p168
      %p170 = scmp.ne.s32.totalorder %s162, %s164
      %p171 = scmp.eq.s32.totalorder %s28, 1
      %p172 = por %p170, %p171
      %p173 = scmp.ne.s32.totalorder %s164, %s165
      %p174 = scmp.eq.s32.totalorder %s28, 0
      %p175 = por %p173, %p174
      %p176 = scmp.ne.s32.totalorder %s164, %s165
      %p177 = scmp.eq.s32.totalorder %s29, 1
      %p178 = por %p176, %p177
      %p180 = scmp.ne.s32.totalorder %s165, %s179
      %p181 = scmp.eq.s32.totalorder %s29, 0
      %p182 = por %p180, %p181
      %s184 = sadd.s32 %s183, 1
      %p187 = scmp.eq.s32.totalorder %s23, 1
      %p188 = scmp.ne.s32.totalorder %s183, %s185
      %p189 = scmp.eq.s32.totalorder %s23, 0
      %p190 = por %p188, %p189
      %p191 = scmp.ne.s32.totalorder %s183, %s185
      %p192 = scmp.eq.s32.totalorder %s28, 1
      %p193 = por %p191, %p192
      %p194 = scmp.ne.s32.totalorder %s185, %s186
      %p195 = scmp.eq.s32.totalorder %s28, 0
      %p196 = por %p194, %p195
      %p197 = scmp.ne.s32.totalorder %s185, %s186
      %p198 = scmp.eq.s32.totalorder %s29, 1
      %p199 = por %p197, %p198
      %p201 = scmp.ne.s32.totalorder %s186, %s200
      %p202 = scmp.eq.s32.totalorder %s29, 0
      %p203 = por %p201, %p202
      %s205 = sadd.s32 %s204, 1
      %p208 = scmp.eq.s32.totalorder %s23, 1
      %p209 = scmp.ne.s32.totalorder %s204, %s206
      %p210 = scmp.eq.s32.totalorder %s23, 0
      %p211 = por %p209, %p210
      %p212 = scmp.ne.s32.totalorder %s204, %s206
      %p213 = scmp.eq.s32.totalorder %s28, 1
      %p214 = por %p212, %p213
      %p215 = scmp.ne.s32.totalorder %s206, %s207
      %p216 = scmp.eq.s32.totalorder %s28, 0
      %p217 = por %p215, %p216
      %p218 = scmp.ne.s32.totalorder %s206, %s207
      %p219 = scmp.eq.s32.totalorder %s29, 1
      %p220 = por %p218, %p219
      %p222 = scmp.ne.s32.totalorder %s207, %s221
      %p223 = scmp.eq.s32.totalorder %s29, 0
      %p224 = por %p222, %p223
      %s226 = sadd.s32 %s225, 1
      %p229 = scmp.eq.s32.totalorder %s23, 1
      %p230 = scmp.ne.s32.totalorder %s225, %s227
      %p231 = scmp.eq.s32.totalorder %s23, 0
      %p232 = por %p230, %p231
      %p233 = scmp.ne.s32.totalorder %s225, %s227
      %p234 = scmp.eq.s32.totalorder %s28, 1
      %p235 = por %p233, %p234
      %p236 = scmp.ne.s32.totalorder %s227, %s228
      %p237 = scmp.eq.s32.totalorder %s28, 0
      %p238 = por %p236, %p237
      %p239 = scmp.ne.s32.totalorder %s227, %s228
      %p240 = scmp.eq.s32.totalorder %s29, 1
      %p241 = por %p239, %p240
      %p243 = scmp.ne.s32.totalorder %s228, %s242
      %p244 = scmp.eq.s32.totalorder %s29, 0
      %p245 = por %p243, %p244
      %s247 = sadd.s32 %s246, 1
      %p250 = scmp.eq.s32.totalorder %s23, 1
      %p251 = scmp.ne.s32.totalorder %s246, %s248
      %p252 = scmp.eq.s32.totalorder %s23, 0
      %p253 = por %p251, %p252
      %p254 = scmp.ne.s32.totalorder %s246, %s248
      %p255 = scmp.eq.s32.totalorder %s28, 1
      %p256 = por %p254, %p255
      %p257 = scmp.ne.s32.totalorder %s248, %s249
      %p258 = scmp.eq.s32.totalorder %s28, 0
      %p259 = por %p257, %p258
      %p260 = scmp.ne.s32.totalorder %s248, %s249
      %p261 = scmp.eq.s32.totalorder %s29, 1
      %p262 = por %p260, %p261
      %p264 = scmp.ne.s32.totalorder %s249, %s263
      %p265 = scmp.eq.s32.totalorder %s29, 0
      %p266 = por %p264, %p265
      %s268 = sadd.s32 %s267, 1
      %p271 = scmp.eq.s32.totalorder %s23, 1
      %p272 = scmp.ne.s32.totalorder %s267, %s269
      %p273 = scmp.eq.s32.totalorder %s23, 0
      %p274 = por %p272, %p273
      %p275 = scmp.ne.s32.totalorder %s267, %s269
      %p276 = scmp.eq.s32.totalorder %s28, 1
      %p277 = por %p275, %p276
      %p278 = scmp.ne.s32.totalorder %s269, %s270
      %p279 = scmp.eq.s32.totalorder %s28, 0
      %p280 = por %p278, %p279
      %p281 = scmp.ne.s32.totalorder %s269, %s270
      %p282 = scmp.eq.s32.totalorder %s29, 1
      %p283 = por %p281, %p282
      %p285 = scmp.ne.s32.totalorder %s270, %s284
      %p286 = scmp.eq.s32.totalorder %s29, 0
      %p287 = por %p285, %p286
      %s289 = sadd.s32 %s288, 1
      %p292 = scmp.eq.s32.totalorder %s23, 1
      %p293 = scmp.ne.s32.totalorder %s288, %s290
      %p294 = scmp.eq.s32.totalorder %s23, 0
      %p295 = por %p293, %p294
      %p296 = scmp.ne.s32.totalorder %s288, %s290
      %p297 = scmp.eq.s32.totalorder %s28, 1
      %p298 = por %p296, %p297
      %p299 = scmp.ne.s32.totalorder %s290, %s291
      %p300 = scmp.eq.s32.totalorder %s28, 0
      %p301 = por %p299, %p300
      %p302 = scmp.ne.s32.totalorder %s290, %s291
      %p303 = scmp.eq.s32.totalorder %s29, 1
      %p304 = por %p302, %p303
      %p306 = scmp.ne.s32.totalorder %s291, %s305
      %p307 = scmp.eq.s32.totalorder %s29, 0
      %p308 = por %p306, %p307
      %s310 = sadd.s32 %s309, 1
      %p313 = scmp.eq.s32.totalorder %s23, 1
      %p314 = scmp.ne.s32.totalorder %s309, %s311
      %p315 = scmp.eq.s32.totalorder %s23, 0
      %p316 = por %p314, %p315
      %p317 = scmp.ne.s32.totalorder %s309, %s311
      %p318 = scmp.eq.s32.totalorder %s28, 1
      %p319 = por %p317, %p318
      %p320 = scmp.ne.s32.totalorder %s311, %s312
      %p321 = scmp.eq.s32.totalorder %s28, 0
      %p322 = por %p320, %p321
      %p323 = scmp.ne.s32.totalorder %s311, %s312
      %p324 = scmp.eq.s32.totalorder %s29, 1
      %p325 = por %p323, %p324
      %p327 = scmp.ne.s32.totalorder %s312, %s326
      %p328 = scmp.eq.s32.totalorder %s29, 0
      %p329 = por %p327, %p328
      %s330 = ssub.s32 %s23, %s30
      %p331 = scmp.eq.s32.totalorder %s330, 0
      %s333 = sadd.s32 %s332, 1
      %s334 = scalar_select %p331, %s332, %s333
      %p337 = pneg %p331
      %p338 = scmp.eq.s32.totalorder %s23, 1
      %p339 = por %p337, %p338
      %p340 = scmp.ne.s32.totalorder %s332, %s335
      %p341 = scmp.eq.s32.totalorder %s23, 0
      %p342 = por %p340, %p341
      %p343 = scmp.ne.s32.totalorder %s332, %s335
      %p344 = scmp.eq.s32.totalorder %s28, 1
      %p345 = por %p343, %p344
      %p346 = scmp.ne.s32.totalorder %s335, %s336
      %p347 = scmp.eq.s32.totalorder %s28, 0
      %p348 = por %p346, %p347
      %p349 = scmp.ne.s32.totalorder %s335, %s336
      %p350 = scmp.eq.s32.totalorder %s29, 1
      %p351 = por %p349, %p350
      %p353 = scmp.ne.s32.totalorder %s336, %s352
      %p354 = scmp.eq.s32.totalorder %s29, 0
      %p355 = por %p353, %p354
      %p356 = scmp.le.s32.totalorder 1, %s23
      %p357 = scmp.lt.s32.totalorder %s23, 3
      %p358 = pnand %p356, %p357
      %p359 = pneg %p358
      // Predicated region
      $region9: #{decnn_forward.1} parent=5 // pred_check
        _
      $region10: #{decnn_forward.1} parent=5 // pred_check_branch
        %361 = sbr.rel (%p358) target = $region12
      $region11: #{decnn_forward.1} parent=5 // pred_region
        %s362 = ssub.s32 %s23, 1
        // Predicated region
        $region13: #{decnn_forward.1} parent=11 // pred_check
          %p363 = pneg %p70
        $region14: #{decnn_forward.1} parent=11 // pred_check_branch
          %365 = sbr.rel (%p363) target = $region16
        $region15: #{decnn_forward.1} parent=11 // pred_region
          %367 = vsyncadd [#allocation5], 0
          %s368 = sshll.u32 %s1, 4
          %s369 = int_to_ptr.hbm [resolvable:$true] %s368
          %s370 = sshll.u32 [#allocation4], 4
          %s371 = int_to_ptr.vmem [resolvable:$true] %s370
          %376 = dma.hbm_to_vmem [thread:$0]  %s369, 10240, %s371, [#allocation5], 128, 128, 8
        $region16: #{decnn_forward.1} parent=11 // pred_fallthru
          _
        // Predicated region
        $region17: #{decnn_forward.1} parent=11 // pred_check
          %p377 = pneg %p91
        $region18: #{decnn_forward.1} parent=11 // pred_check_branch
          %379 = sbr.rel (%p377) target = $region20
        $region19: #{decnn_forward.1} parent=11 // pred_region
          _
        $region20: #{decnn_forward.1} parent=11 // pred_fallthru
          _
        // Predicated region
        $region21: #{decnn_forward.1} parent=11 // pred_check
          %p380 = pneg %p112
        $region22: #{decnn_forward.1} parent=11 // pred_check_branch
          %382 = sbr.rel (%p380) target = $region24
        $region23: #{decnn_forward.1} parent=11 // pred_region
          %384 = vsyncadd [#allocation7], 0
          %s385 = sshll.u32 %s3, 4
          %s386 = int_to_ptr.hbm [resolvable:$true] %s385
          %s387 = sshll.u32 [#allocation6], 4
          %s388 = int_to_ptr.vmem [resolvable:$true] %s387
          %393 = dma.hbm_to_vmem [thread:$0]  %s386, 20480, %s388, [#allocation7], 128, 128, 8
        $region24: #{decnn_forward.1} parent=11 // pred_fallthru
          _
        // Predicated region
        $region25: #{decnn_forward.1} parent=11 // pred_check
          %p394 = pneg %p133
        $region26: #{decnn_forward.1} parent=11 // pred_check_branch
          %396 = sbr.rel (%p394) target = $region28
        $region27: #{decnn_forward.1} parent=11 // pred_region
          _
        $region28: #{decnn_forward.1} parent=11 // pred_fallthru
          _
        // Predicated region
        $region29: #{decnn_forward.1} parent=11 // pred_check
          %p397 = pneg %p154
        $region30: #{decnn_forward.1} parent=11 // pred_check_branch
          %399 = sbr.rel (%p397) target = $region32
        $region31: #{decnn_forward.1} parent=11 // pred_region
          %401 = vsyncadd [#allocation7], 0
          %s402 = sshll.u32 %s5, 4
          %s403 = int_to_ptr.hbm [resolvable:$true] %s402
          %s404 = sshll.u32 [#allocation8], 4
          %s405 = int_to_ptr.vmem [resolvable:$true] %s404
          %410 = dma.hbm_to_vmem [thread:$0]  %s403, 20480, %s405, [#allocation7], 128, 128, 8
        $region32: #{decnn_forward.1} parent=11 // pred_fallthru
          _
        // Predicated region
        $region33: #{decnn_forward.1} parent=11 // pred_check
          %p411 = pneg %p175
        $region34: #{decnn_forward.1} parent=11 // pred_check_branch
          %413 = sbr.rel (%p411) target = $region36
        $region35: #{decnn_forward.1} parent=11 // pred_region
          _
        $region36: #{decnn_forward.1} parent=11 // pred_fallthru
          _
        // Predicated region
        $region37: #{decnn_forward.1} parent=11 // pred_check
          %p414 = pneg %p196
        $region38: #{decnn_forward.1} parent=11 // pred_check_branch
          %416 = sbr.rel (%p414) target = $region40
        $region39: #{decnn_forward.1} parent=11 // pred_region
          %418 = vsyncadd [#allocation10], 0
          %s419 = sshll.u32 %s7, 4
          %s420 = int_to_ptr.hbm [resolvable:$true] %s419
          %s421 = sshll.u32 [#allocation9], 4
          %s422 = int_to_ptr.vmem [resolvable:$true] %s421
          %427 = dma.hbm_to_vmem [thread:$0]  %s420, 20480, %s422, [#allocation10], 128, 128, 8
        $region40: #{decnn_forward.1} parent=11 // pred_fallthru
          _
        // Predicated region
        $region41: #{decnn_forward.1} parent=11 // pred_check
          %p428 = pneg %p217
        $region42: #{decnn_forward.1} parent=11 // pred_check_branch
          %430 = sbr.rel (%p428) target = $region44
        $region43: #{decnn_forward.1} parent=11 // pred_region
          _
        $region44: #{decnn_forward.1} parent=11 // pred_fallthru
          _
        // Predicated region
        $region45: #{decnn_forward.1} parent=11 // pred_check
          %p431 = pneg %p238
        $region46: #{decnn_forward.1} parent=11 // pred_check_branch
          %433 = sbr.rel (%p431) target = $region48
        $region47: #{decnn_forward.1} parent=11 // pred_region
          _
        $region48: #{decnn_forward.1} parent=11 // pred_fallthru
          _
        // Predicated region
        $region49: #{decnn_forward.1} parent=11 // pred_check
          %p434 = pneg %p259
        $region50: #{decnn_forward.1} parent=11 // pred_check_branch
          %436 = sbr.rel (%p434) target = $region52
        $region51: #{decnn_forward.1} parent=11 // pred_region
          _
        $region52: #{decnn_forward.1} parent=11 // pred_fallthru
          _
        // Predicated region
        $region53: #{decnn_forward.1} parent=11 // pred_check
          %p437 = pneg %p280
        $region54: #{decnn_forward.1} parent=11 // pred_check_branch
          %439 = sbr.rel (%p437) target = $region56
        $region55: #{decnn_forward.1} parent=11 // pred_region
          _
        $region56: #{decnn_forward.1} parent=11 // pred_fallthru
          _
        // Predicated region
        $region57: #{decnn_forward.1} parent=11 // pred_check
          %p440 = pneg %p301
        $region58: #{decnn_forward.1} parent=11 // pred_check_branch
          %442 = sbr.rel (%p440) target = $region60
        $region59: #{decnn_forward.1} parent=11 // pred_region
          _
        $region60: #{decnn_forward.1} parent=11 // pred_fallthru
          _
        // Predicated region
        $region61: #{decnn_forward.1} parent=11 // pred_check
          %p443 = pneg %p322
        $region62: #{decnn_forward.1} parent=11 // pred_check_branch
          %445 = sbr.rel (%p443) target = $region64
        $region63: #{decnn_forward.1} parent=11 // pred_region
          _
        $region64: #{decnn_forward.1} parent=11 // pred_fallthru
          _
      $region12: #{decnn_forward.1} parent=5 // pred_fallthru
        _
      %p446 = scmp.lt.s32.totalorder %s23, 2
      // Predicated region
      $region65: #{decnn_forward.1} parent=5 // pred_check
        %p447 = pneg %p446
      $region66: #{decnn_forward.1} parent=5 // pred_check_branch
        %449 = sbr.rel (%p447) target = $region68
      $region67: #{decnn_forward.1} parent=5 // pred_region
        // Predicated region
        $region69: #{decnn_forward.1} parent=67 // pred_check
          %p450 = pneg %p43
        $region70: #{decnn_forward.1} parent=67 // pred_check_branch
          %452 = sbr.rel (%p450) target = $region72
        $region71: #{decnn_forward.1} parent=67 // pred_region
          %p453 = scmp.lt.s32.totalorder %s23, 1
          %s454 = scalar_select %p453, %s23, 1
          %s455 = smul.addr %s454, 2
          %s456 = smul.addr %s455, 4
          %s457 = scalar_lea.vmem %s0, %s456
        $region72: #{decnn_forward.1} parent=67 // pred_fallthru
          _
      $region68: #{decnn_forward.1} parent=5 // pred_fallthru
        _
      %p458 = scmp.le.s32.totalorder 1, %s23
      %p459 = scmp.lt.s32.totalorder %s23, 3
      %p460 = pnand %p458, %p459
      %p461 = pneg %p460
      // Predicated region
      $region73: #{decnn_forward.1} parent=5 // pred_check
        _
      $region74: #{decnn_forward.1} parent=5 // pred_check_branch
        %463 = sbr.rel (%p460) target = $region76
      $region75: #{decnn_forward.1} parent=5 // pred_region
        %s464 = ssub.s32 %s23, 1
        // Predicated region
        $region77: #{decnn_forward.1} parent=75 // pred_check
          %p465 = pneg %p70
        $region78: #{decnn_forward.1} parent=75 // pred_check_branch
          %467 = sbr.rel (%p465) target = $region80
        $region79: #{decnn_forward.1} parent=75 // pred_region
          %469 = dma.done [#allocation5], 10240
        $region80: #{decnn_forward.1} parent=75 // pred_fallthru
          _
        // Predicated region
        $region81: #{decnn_forward.1} parent=75 // pred_check
          %p470 = pneg %p112
        $region82: #{decnn_forward.1} parent=75 // pred_check_branch
          %472 = sbr.rel (%p470) target = $region84
        $region83: #{decnn_forward.1} parent=75 // pred_region
          %474 = dma.done [#allocation7], 20480
        $region84: #{decnn_forward.1} parent=75 // pred_fallthru
          _
        // Predicated region
        $region85: #{decnn_forward.1} parent=75 // pred_check
          %p475 = pneg %p154
        $region86: #{decnn_forward.1} parent=75 // pred_check_branch
          %477 = sbr.rel (%p475) target = $region88
        $region87: #{decnn_forward.1} parent=75 // pred_region
          %479 = dma.done [#allocation7], 20480
        $region88: #{decnn_forward.1} parent=75 // pred_fallthru
          _
        // Predicated region
        $region89: #{decnn_forward.1} parent=75 // pred_check
          %p480 = pneg %p196
        $region90: #{decnn_forward.1} parent=75 // pred_check_branch
          %482 = sbr.rel (%p480) target = $region92
        $region91: #{decnn_forward.1} parent=75 // pred_region
          %484 = dma.done [#allocation10], 20480
        $region92: #{decnn_forward.1} parent=75 // pred_fallthru
          _
        %p485 = scmp.lt.s32.totalorder %s28, 1
        %s486 = scalar_select %p485, %s28, 1
        %s487 = smul.addr %s486, 2
        %s488 = smul.addr %s487, 4
        %s489 = scalar_lea.vmem %s0, %s488
        %p490 = pneg %p49
        %p491 = pneg %p46
        %p492 = pneg %p70
        %p493 = pneg %p67
        %p494 = pneg %p91
        %p495 = pneg %p88
        %p496 = pneg %p112
        %p497 = pneg %p109
        %p498 = pneg %p133
        %p499 = pneg %p130
        %p500 = pneg %p154
        %p501 = pneg %p151
        %p502 = pneg %p175
        %p503 = pneg %p172
        %p504 = pneg %p196
        %p505 = pneg %p193
        %p506 = pneg %p217
        %p507 = pneg %p214
        %p508 = pneg %p238
        %p509 = pneg %p235
        %p510 = pneg %p259
        %p511 = pneg %p256
        %p512 = pneg %p280
        %p513 = pneg %p277
        %p514 = pneg %p301
        %p515 = pneg %p298
        %p516 = pneg %p322
        %p517 = pneg %p319
        %p518 = pneg %p348
        %p519 = pneg %p345
        %p520 = scmp.lt.s32.totalorder %s28, 1
        %s521 = scalar_select %p520, %s28, 1
        %s522 = smul.addr %s521, 2
        %s523 = smul.addr %s522, 8
        %s524 = scalar_lea.vmem %s14, %s523
        %p525 = scmp.lt.s32.totalorder %s28, 1
        %s526 = scalar_select %p525, %s28, 1
        %s527 = smul.addr %s526, 2
        %s528 = smul.addr %s527, 4
        %s529 = scalar_lea.vmem %s0, %s528
        %p530 = scmp.lt.s32.totalorder %s28, 1
        %s531 = scalar_select %p530, %s28, 1
        %s532 = smul.addr %s531, 2
        %s533 = smul.addr %s532, 8
        %s534 = scalar_lea.vmem %s14, %s533
        %v536 = vld [vmem:[%s529] sm:$0xf]
        %v537 = vld [vmem:[%s529 + $0x4] sm:$0xf]
        %538 = vst [vmem:[#allocation2] sm:$0x1] 0
        %vm539 = vcmask 1040384
        %vm540 = vsmask.f32 256
        %vm541 = vmand %vm539, %vm540
        %v542 = vld [vmem:[#allocation2 + $0x4] sm:$0x1]
        %v543 = vsel %vm541, 0, %v542
        %544 = vst [vmem:[#allocation2 + $0x4] sm:$0x1] %v543
        %vm545 = vcmask 1043459
        %vm546 = vsmask.f32 7950
        %vm547 = vmand %vm545, %vm546
        %v548 = vld [vmem:[#allocation2 + $0x20] sm:$0x8]
        %v549 = vsel %vm547, 0, %v548
        %550 = vst [vmem:[#allocation2 + $0x20] sm:$0x8] %v549
        %551 = vst [vmem:[#allocation2 + $0x24] sm:$0x8] 0
        %vm554 = vcmask 1044484
        %vm555 = vmor %vm539, %vm554
        %v556 = vrot.slane %v536, 7
        %v557 = vrot.slane %v556, 4
        %v558 = vrot.slane %v537, 7
        %v559 = vsel %vm555, %v557, %v558
        %562 = vst [vmem:[#allocation2] sm:$0xe] %v556
        %563 = vst [vmem:[#allocation2 + $0x14] sm:$0xf] %v559
        %vm564 = vsmask.f32 4368
        %vm565 = vmor %vm540, %vm564
        %v567 = vshrl.u32 %v536, 16
        %v569 = vrot.slane %v567, 7
        %v570 = vshll.u32 %v536, 16
        %v572 = vor.u32 %v569, %v570
        %v573 = vrot.slane %v569, 4
        %v575 = vshrl.u32 %v537, 16
        %v577 = vrot.slane %v575, 7
        %v578 = vshll.u32 %v537, 16
        %v580 = vor.u32 %v577, %v578
        %v581 = vsel %vm565, %v573, %v580
        %vm584 = vcmask 1043456
        %vm585 = vsmask.f32 7938
        %vm586 = vmand %vm584, %vm585
        %v587 = vld [vmem:[#allocation2 + $0x4] sm:$0xf]
        %v588 = vsel %vm586, %v572, %v587
        %589 = vst [vmem:[#allocation2 + $0x4] sm:$0xf] %v588
        %590 = vst [vmem:[#allocation2 + $0x18] sm:$0xf] %v581
        %591 = vst [vmem:[#allocation2 + $0x8] sm:$0xf] %v536
        %592 = vst [vmem:[#allocation2 + $0x1c] sm:$0xf] %v537
        %vm593 = vsmask.f32 3328
        %vm594 = vsmask.f32 7440
        %vm595 = vmor %vm593, %vm594
        %v596 = vrot.slane %v567, 4
        %v597 = vrot.slane %v570, 5
        %v598 = vor.u32 %v596, %v597
        %v599 = vrot.slane %v598, 4
        %v600 = vrot.slane %v578, 5
        %v601 = vsel %vm595, %v599, %v600
        %v602 = vrot.slane %v575, 4
        %v603 = vor.u32 %v602, %v600
        %v604 = vrot.slane %v603, 4
        %607 = vst [vmem:[#allocation2 + $0xc] sm:$0xf] %v601
        %vm608 = vmand %vm584, %vm593
        %v609 = vld [vmem:[#allocation2 + $0x20] sm:$0xf]
        %v610 = vsel %vm608, %v604, %v609
        %611 = vst [vmem:[#allocation2 + $0x20] sm:$0xf] %v610
        %vm612 = vcmask 1042432
        %vm613 = vcmask 1046532
        %vm614 = vmor %vm612, %vm613
        %v615 = vrot.slane %v536, 5
        %v616 = vrot.slane %v615, 4
        %v617 = vrot.slane %v537, 5
        %v618 = vsel %vm614, %v616, %v617
        %v619 = vrot.slane %v617, 4
        %622 = vst [vmem:[#allocation2 + $0x10] sm:$0xf] %v618
        %623 = vst [vmem:[#allocation2 + $0x24] sm:$0x7] %v619
        %v624 = vld [vmem:[#allocation2] sm:$0xff]
        %v625 = vld [vmem:[#allocation2 + $0x8] sm:$0xff]
        %v626 = vld [vmem:[#allocation2 + $0x10] sm:$0xf]
        %v627 = vld [vmem:[#allocation2 + $0x14] sm:$0xff]
        %v628 = vld [vmem:[#allocation2 + $0x1c] sm:$0xff]
        %v629 = vld [vmem:[#allocation2 + $0x24] sm:$0xf]
        %v630 = vld [vmem:[#allocation4] sm:$0xff]
        %v631 = vld [vmem:[#allocation4 + $0x8] sm:$0xff]
        %v632 = vld [vmem:[#allocation4 + $0x10] sm:$0xff]
        %v633 = vld [vmem:[#allocation4 + $0x18] sm:$0xff]
        %v634 = vld [vmem:[#allocation4 + $0x20] sm:$0xff]
        %v635 = vld [vmem:[#allocation4 + $0x28] sm:$0xff]
        %v636 = vld [vmem:[#allocation4 + $0x30] sm:$0xff]
        %v637 = vld [vmem:[#allocation4 + $0x38] sm:$0xff]
        %v638 = vld [vmem:[#allocation4 + $0x40] sm:$0xff]
        %v639 = vld [vmem:[#allocation4 + $0x48] sm:$0xff]
        %v640 = vld [vmem:[#allocation4 + $0x50] sm:$0xff]
        %v641 = vld [vmem:[#allocation4 + $0x58] sm:$0xff]
        %v642 = vld [vmem:[#allocation4 + $0x60] sm:$0xff]
        %v643 = vld [vmem:[#allocation4 + $0x68] sm:$0xff]
        %v644 = vld [vmem:[#allocation4 + $0x70] sm:$0xff]
        %v645 = vld [vmem:[#allocation4 + $0x78] sm:$0xff]
        %v646 = vld [vmem:[#allocation4 + $0x80] sm:$0xff]
        %v647 = vld [vmem:[#allocation4 + $0x88] sm:$0xff]
        %v648 = vld [vmem:[#allocation4 + $0x90] sm:$0xff]
        %v649 = vld [vmem:[#allocation4 + $0x98] sm:$0xff]
        %v650 = vld [vmem:[#allocation4 + $0xa0] sm:$0xff]
        %v651 = vld [vmem:[#allocation4 + $0xa8] sm:$0xff]
        %v652 = vld [vmem:[#allocation4 + $0xb0] sm:$0xff]
        %v653 = vld [vmem:[#allocation4 + $0xb8] sm:$0xff]
        %v654 = vld [vmem:[#allocation4 + $0xc0] sm:$0xff]
        %v655 = vld [vmem:[#allocation4 + $0xc8] sm:$0xff]
        %v656 = vld [vmem:[#allocation4 + $0xd0] sm:$0xff]
        %v657 = vld [vmem:[#allocation4 + $0xd8] sm:$0xff]
        %v658 = vld [vmem:[#allocation4 + $0xe0] sm:$0xff]
        %v659 = vld [vmem:[#allocation4 + $0xe8] sm:$0xff]
        %v660 = vld [vmem:[#allocation4 + $0xf0] sm:$0xff]
        %v661 = vld [vmem:[#allocation4 + $0xf8] sm:$0xff]
        %v662 = vld [vmem:[#allocation4 + $0x100] sm:$0xff]
        %v663 = vld [vmem:[#allocation4 + $0x108] sm:$0xff]
        %v664 = vld [vmem:[#allocation4 + $0x110] sm:$0xff]
        %v665 = vld [vmem:[#allocation4 + $0x118] sm:$0xff]
        %v666 = vld [vmem:[#allocation4 + $0x120] sm:$0xff]
        %v667 = vld [vmem:[#allocation4 + $0x128] sm:$0xff]
        %v668 = vld [vmem:[#allocation4 + $0x130] sm:$0xff]
        %v669 = vld [vmem:[#allocation4 + $0x138] sm:$0xff]
        %v670 = vld [vmem:[#allocation4 + $0x140] sm:$0xff]
        %v671 = vld [vmem:[#allocation4 + $0x148] sm:$0xff]
        %v672 = vld [vmem:[#allocation4 + $0x150] sm:$0xff]
        %v673 = vld [vmem:[#allocation4 + $0x158] sm:$0xff]
        %v674 = vld [vmem:[#allocation4 + $0x160] sm:$0xff]
        %v675 = vld [vmem:[#allocation4 + $0x168] sm:$0xff]
        %v676 = vld [vmem:[#allocation4 + $0x170] sm:$0xff]
        %v677 = vld [vmem:[#allocation4 + $0x178] sm:$0xff]
        %v678 = vld [vmem:[#allocation4 + $0x180] sm:$0xff]
        %v679 = vld [vmem:[#allocation4 + $0x188] sm:$0xff]
        %v680 = vld [vmem:[#allocation4 + $0x190] sm:$0xff]
        %v681 = vld [vmem:[#allocation4 + $0x198] sm:$0xff]
        %v682 = vld [vmem:[#allocation4 + $0x1a0] sm:$0xff]
        %v683 = vld [vmem:[#allocation4 + $0x1a8] sm:$0xff]
        %v684 = vld [vmem:[#allocation4 + $0x1b0] sm:$0xff]
        %v685 = vld [vmem:[#allocation4 + $0x1b8] sm:$0xff]
        %v686 = vld [vmem:[#allocation4 + $0x1c0] sm:$0xff]
        %v687 = vld [vmem:[#allocation4 + $0x1c8] sm:$0xff]
        %v688 = vld [vmem:[#allocation4 + $0x1d0] sm:$0xff]
        %v689 = vld [vmem:[#allocation4 + $0x1d8] sm:$0xff]
        %v690 = vld [vmem:[#allocation4 + $0x1e0] sm:$0xff]
        %v691 = vld [vmem:[#allocation4 + $0x1e8] sm:$0xff]
        %v692 = vld [vmem:[#allocation4 + $0x1f0] sm:$0xff]
        %v693 = vld [vmem:[#allocation4 + $0x1f8] sm:$0xff]
        %v694 = vld [vmem:[#allocation4 + $0x200] sm:$0xff]
        %v695 = vld [vmem:[#allocation4 + $0x208] sm:$0xff]
        %v696 = vld [vmem:[#allocation4 + $0x210] sm:$0xff]
        %v697 = vld [vmem:[#allocation4 + $0x218] sm:$0xff]
        %v698 = vld [vmem:[#allocation4 + $0x220] sm:$0xff]
        %v699 = vld [vmem:[#allocation4 + $0x228] sm:$0xff]
        %v700 = vld [vmem:[#allocation4 + $0x230] sm:$0xff]
        %v701 = vld [vmem:[#allocation4 + $0x238] sm:$0xff]
        %v702 = vld [vmem:[#allocation4 + $0x240] sm:$0xff]
        %v703 = vld [vmem:[#allocation4 + $0x248] sm:$0xff]
        %v704 = vld [vmem:[#allocation4 + $0x250] sm:$0xff]
        %v705 = vld [vmem:[#allocation4 + $0x258] sm:$0xff]
        %v706 = vld [vmem:[#allocation4 + $0x260] sm:$0xff]
        %v707 = vld [vmem:[#allocation4 + $0x268] sm:$0xff]
        %v708 = vld [vmem:[#allocation4 + $0x270] sm:$0xff]
        %v709 = vld [vmem:[#allocation4 + $0x278] sm:$0xff]
        %v710 = vld [vmem:[%s2] sm:$0x3]
        %v712 = vperm.slane %v710, 0
        %v713 = vperm.slane %v710, 1
        %v722 = vunpack.c.l.b16 %v624
        %v723 = vunpack.c.h.b16 %v624
        %v724 = vunpack.c.l.b16 %v625
        %v725 = vunpack.c.h.b16 %v625
        %v726 = vunpack.c.l.b16 %v626
        %v727 = vunpack.c.l.b16 %v627
        %v728 = vunpack.c.h.b16 %v627
        %v729 = vunpack.c.l.b16 %v628
        %v730 = vunpack.c.h.b16 %v628
        %v731 = vunpack.c.l.b16 %v629
        %v732 = vpack.c.b16 %v727, %v722
        %v733 = vpack.c.b16 %v728, %v723
        %v734 = vpack.c.b16 %v729, %v724
        %v735 = vpack.c.b16 %v730, %v725
        %v736 = vpack.c.b16 %v731, %v726
        %v822 = vunpack.c.l.b16 %v630
        %v823 = vunpack.c.h.b16 %v630
        %v824 = vunpack.c.l.b16 %v631
        %v825 = vunpack.c.h.b16 %v631
        %v826 = vunpack.c.l.b16 %v632
        %v827 = vunpack.c.h.b16 %v632
        %v828 = vunpack.c.l.b16 %v633
        %v829 = vunpack.c.h.b16 %v633
        %v830 = vunpack.c.l.b16 %v634
        %v831 = vunpack.c.h.b16 %v634
        %v832 = vunpack.c.l.b16 %v635
        %v833 = vunpack.c.h.b16 %v635
        %v834 = vunpack.c.l.b16 %v636
        %v835 = vunpack.c.h.b16 %v636
        %v836 = vunpack.c.l.b16 %v637
        %v837 = vunpack.c.h.b16 %v637
        %v838 = vunpack.c.l.b16 %v638
        %v839 = vunpack.c.h.b16 %v638
        %v840 = vunpack.c.l.b16 %v639
        %v841 = vunpack.c.h.b16 %v639
        %v842 = vunpack.c.l.b16 %v640
        %v843 = vunpack.c.h.b16 %v640
        %v844 = vunpack.c.l.b16 %v641
        %v845 = vunpack.c.h.b16 %v641
        %v846 = vunpack.c.l.b16 %v642
        %v847 = vunpack.c.h.b16 %v642
        %v848 = vunpack.c.l.b16 %v643
        %v849 = vunpack.c.h.b16 %v643
        %v850 = vunpack.c.l.b16 %v644
        %v851 = vunpack.c.h.b16 %v644
        %v852 = vunpack.c.l.b16 %v645
        %v853 = vunpack.c.h.b16 %v645
        %v854 = vunpack.c.l.b16 %v646
        %v855 = vunpack.c.h.b16 %v646
        %v856 = vunpack.c.l.b16 %v647
        %v857 = vunpack.c.h.b16 %v647
        %v858 = vunpack.c.l.b16 %v648
        %v859 = vunpack.c.h.b16 %v648
        %v860 = vunpack.c.l.b16 %v649
        %v861 = vunpack.c.h.b16 %v649
        %v862 = vunpack.c.l.b16 %v650
        %v863 = vunpack.c.h.b16 %v650
        %v864 = vunpack.c.l.b16 %v651
        %v865 = vunpack.c.h.b16 %v651
        %v866 = vunpack.c.l.b16 %v652
        %v867 = vunpack.c.h.b16 %v652
        %v868 = vunpack.c.l.b16 %v653
        %v869 = vunpack.c.h.b16 %v653
        %v870 = vunpack.c.l.b16 %v654
        %v871 = vunpack.c.h.b16 %v654
        %v872 = vunpack.c.l.b16 %v655
        %v873 = vunpack.c.h.b16 %v655
        %v874 = vunpack.c.l.b16 %v656
        %v875 = vunpack.c.h.b16 %v656
        %v876 = vunpack.c.l.b16 %v657
        %v877 = vunpack.c.h.b16 %v657
        %v878 = vunpack.c.l.b16 %v658
        %v879 = vunpack.c.h.b16 %v658
        %v880 = vunpack.c.l.b16 %v659
        %v881 = vunpack.c.h.b16 %v659
        %v882 = vunpack.c.l.b16 %v660
        %v883 = vunpack.c.h.b16 %v660
        %v884 = vunpack.c.l.b16 %v661
        %v885 = vunpack.c.h.b16 %v661
        %v886 = vunpack.c.l.b16 %v662
        %v887 = vunpack.c.h.b16 %v662
        %v888 = vunpack.c.l.b16 %v663
        %v889 = vunpack.c.h.b16 %v663
        %v890 = vunpack.c.l.b16 %v664
        %v891 = vunpack.c.h.b16 %v664
        %v892 = vunpack.c.l.b16 %v665
        %v893 = vunpack.c.h.b16 %v665
        %v894 = vunpack.c.l.b16 %v666
        %v895 = vunpack.c.h.b16 %v666
        %v896 = vunpack.c.l.b16 %v667
        %v897 = vunpack.c.h.b16 %v667
        %v898 = vunpack.c.l.b16 %v668
        %v899 = vunpack.c.h.b16 %v668
        %v900 = vunpack.c.l.b16 %v669
        %v901 = vunpack.c.h.b16 %v669
        %v902 = vunpack.c.l.b16 %v670
        %v903 = vunpack.c.h.b16 %v670
        %v904 = vunpack.c.l.b16 %v671
        %v905 = vunpack.c.h.b16 %v671
        %v906 = vunpack.c.l.b16 %v672
        %v907 = vunpack.c.h.b16 %v672
        %v908 = vunpack.c.l.b16 %v673
        %v909 = vunpack.c.h.b16 %v673
        %v910 = vunpack.c.l.b16 %v674
        %v911 = vunpack.c.h.b16 %v674
        %v912 = vunpack.c.l.b16 %v675
        %v913 = vunpack.c.h.b16 %v675
        %v914 = vunpack.c.l.b16 %v676
        %v915 = vunpack.c.h.b16 %v676
        %v916 = vunpack.c.l.b16 %v677
        %v917 = vunpack.c.h.b16 %v677
        %v918 = vunpack.c.l.b16 %v678
        %v919 = vunpack.c.h.b16 %v678
        %v920 = vunpack.c.l.b16 %v679
        %v921 = vunpack.c.h.b16 %v679
        %v922 = vunpack.c.l.b16 %v680
        %v923 = vunpack.c.h.b16 %v680
        %v924 = vunpack.c.l.b16 %v681
        %v925 = vunpack.c.h.b16 %v681
        %v926 = vunpack.c.l.b16 %v682
        %v927 = vunpack.c.h.b16 %v682
        %v928 = vunpack.c.l.b16 %v683
        %v929 = vunpack.c.h.b16 %v683
        %v930 = vunpack.c.l.b16 %v684
        %v931 = vunpack.c.h.b16 %v684
        %v932 = vunpack.c.l.b16 %v685
        %v933 = vunpack.c.h.b16 %v685
        %v934 = vunpack.c.l.b16 %v686
        %v935 = vunpack.c.h.b16 %v686
        %v936 = vunpack.c.l.b16 %v687
        %v937 = vunpack.c.h.b16 %v687
        %v938 = vunpack.c.l.b16 %v688
        %v939 = vunpack.c.h.b16 %v688
        %v940 = vunpack.c.l.b16 %v689
        %v941 = vunpack.c.h.b16 %v689
        %v942 = vunpack.c.l.b16 %v690
        %v943 = vunpack.c.h.b16 %v690
        %v944 = vunpack.c.l.b16 %v691
        %v945 = vunpack.c.h.b16 %v691
        %v946 = vunpack.c.l.b16 %v692
        %v947 = vunpack.c.h.b16 %v692
        %v948 = vunpack.c.l.b16 %v693
        %v949 = vunpack.c.h.b16 %v693
        %v950 = vunpack.c.l.b16 %v694
        %v951 = vunpack.c.h.b16 %v694
        %v952 = vunpack.c.l.b16 %v695
        %v953 = vunpack.c.h.b16 %v695
        %v954 = vunpack.c.l.b16 %v696
        %v955 = vunpack.c.h.b16 %v696
        %v956 = vunpack.c.l.b16 %v697
        %v957 = vunpack.c.h.b16 %v697
        %v958 = vunpack.c.l.b16 %v698
        %v959 = vunpack.c.h.b16 %v698
        %v960 = vunpack.c.l.b16 %v699
        %v961 = vunpack.c.h.b16 %v699
        %v962 = vunpack.c.l.b16 %v700
        %v963 = vunpack.c.h.b16 %v700
        %v964 = vunpack.c.l.b16 %v701
        %v965 = vunpack.c.h.b16 %v701
        %v966 = vunpack.c.l.b16 %v702
        %v967 = vunpack.c.h.b16 %v702
        %v968 = vunpack.c.l.b16 %v703
        %v969 = vunpack.c.h.b16 %v703
        %v970 = vunpack.c.l.b16 %v704
        %v971 = vunpack.c.h.b16 %v704
        %v972 = vunpack.c.l.b16 %v705
        %v973 = vunpack.c.h.b16 %v705
        %v974 = vunpack.c.l.b16 %v706
        %v975 = vunpack.c.h.b16 %v706
        %v976 = vunpack.c.l.b16 %v707
        %v977 = vunpack.c.h.b16 %v707
        %v978 = vunpack.c.l.b16 %v708
        %v979 = vunpack.c.h.b16 %v708
        %v980 = vunpack.c.l.b16 %v709
        %v981 = vunpack.c.h.b16 %v709
        %v982 = vpack.c.b16 %v824, %v822
        %v983 = vpack.c.b16 %v825, %v823
        %v984 = vpack.c.b16 %v828, %v826
        %v985 = vpack.c.b16 %v829, %v827
        %v986 = vpack.c.b16 %v832, %v830
        %v987 = vpack.c.b16 %v833, %v831
        %v988 = vpack.c.b16 %v836, %v834
        %v989 = vpack.c.b16 %v837, %v835
        %v990 = vpack.c.b16 %v840, %v838
        %v991 = vpack.c.b16 %v841, %v839
        %v992 = vpack.c.b16 %v844, %v842
        %v993 = vpack.c.b16 %v845, %v843
        %v994 = vpack.c.b16 %v848, %v846
        %v995 = vpack.c.b16 %v849, %v847
        %v996 = vpack.c.b16 %v852, %v850
        %v997 = vpack.c.b16 %v853, %v851
        %v998 = vpack.c.b16 %v856, %v854
        %v999 = vpack.c.b16 %v857, %v855
        %v1000 = vpack.c.b16 %v860, %v858
        %v1001 = vpack.c.b16 %v861, %v859
        %v1002 = vpack.c.b16 %v864, %v862
        %v1003 = vpack.c.b16 %v865, %v863
        %v1004 = vpack.c.b16 %v868, %v866
        %v1005 = vpack.c.b16 %v869, %v867
        %v1006 = vpack.c.b16 %v872, %v870
        %v1007 = vpack.c.b16 %v873, %v871
        %v1008 = vpack.c.b16 %v876, %v874
        %v1009 = vpack.c.b16 %v877, %v875
        %v1010 = vpack.c.b16 %v880, %v878
        %v1011 = vpack.c.b16 %v881, %v879
        %v1012 = vpack.c.b16 %v884, %v882
        %v1013 = vpack.c.b16 %v885, %v883
        %v1014 = vpack.c.b16 %v888, %v886
        %v1015 = vpack.c.b16 %v889, %v887
        %v1016 = vpack.c.b16 %v892, %v890
        %v1017 = vpack.c.b16 %v893, %v891
        %v1018 = vpack.c.b16 %v896, %v894
        %v1019 = vpack.c.b16 %v897, %v895
        %v1020 = vpack.c.b16 %v900, %v898
        %v1021 = vpack.c.b16 %v901, %v899
        %v1022 = vpack.c.b16 %v904, %v902
        %v1023 = vpack.c.b16 %v905, %v903
        %v1024 = vpack.c.b16 %v908, %v906
        %v1025 = vpack.c.b16 %v909, %v907
        %v1026 = vpack.c.b16 %v912, %v910
        %v1027 = vpack.c.b16 %v913, %v911
        %v1028 = vpack.c.b16 %v916, %v914
        %v1029 = vpack.c.b16 %v917, %v915
        %v1030 = vpack.c.b16 %v920, %v918
        %v1031 = vpack.c.b16 %v921, %v919
        %v1032 = vpack.c.b16 %v924, %v922
        %v1033 = vpack.c.b16 %v925, %v923
        %v1034 = vpack.c.b16 %v928, %v926
        %v1035 = vpack.c.b16 %v929, %v927
        %v1036 = vpack.c.b16 %v932, %v930
        %v1037 = vpack.c.b16 %v933, %v931
        %v1038 = vpack.c.b16 %v936, %v934
        %v1039 = vpack.c.b16 %v937, %v935
        %v1040 = vpack.c.b16 %v940, %v938
        %v1041 = vpack.c.b16 %v941, %v939
        %v1042 = vpack.c.b16 %v944, %v942
        %v1043 = vpack.c.b16 %v945, %v943
        %v1044 = vpack.c.b16 %v948, %v946
        %v1045 = vpack.c.b16 %v949, %v947
        %v1046 = vpack.c.b16 %v952, %v950
        %v1047 = vpack.c.b16 %v953, %v951
        %v1048 = vpack.c.b16 %v956, %v954
        %v1049 = vpack.c.b16 %v957, %v955
        %v1050 = vpack.c.b16 %v960, %v958
        %v1051 = vpack.c.b16 %v961, %v959
        %v1052 = vpack.c.b16 %v964, %v962
        %v1053 = vpack.c.b16 %v965, %v963
        %v1054 = vpack.c.b16 %v968, %v966
        %v1055 = vpack.c.b16 %v969, %v967
        %v1056 = vpack.c.b16 %v972, %v970
        %v1057 = vpack.c.b16 %v973, %v971
        %v1058 = vpack.c.b16 %v976, %v974
        %v1059 = vpack.c.b16 %v977, %v975
        %v1060 = vpack.c.b16 %v980, %v978
        %v1061 = vpack.c.b16 %v981, %v979
        %1142 = vmatpush.bf16.msra.mxu0 %v996
        %1143 = vmatpush.bf16.msra.mxu0 %v994
        %1144 = vmatpush.bf16.msra.mxu0 %v992
        %1145 = vmatpush.bf16.msra.mxu0 %v990
        %1146 = vmatpush.bf16.msra.mxu0 %v988
        %1147 = vmatpush.bf16.msra.mxu0 %v986
        %1148 = vmatpush.bf16.msra.mxu0 %v984
        %1149 = vmatpush.bf16.msra.mxu0 %v982
        %1150 = vmatmul.bf16.gmra.mxu0 %v732
        %v1151 = vpop.f32.mrf.mxu0
        %v1152 = vadd.f32 %v712, %v1151
        %v1153 = vpop.f32.mrf.mxu0
        %v1154 = vadd.f32 %v712, %v1153
        %1155 = vdwg.mxu0
        %1156 = vmatpush.bf16.msra.mxu0 %v1012
        %1157 = vmatpush.bf16.msra.mxu0 %v1010
        %1158 = vmatpush.bf16.msra.mxu0 %v1008
        %1159 = vmatpush.bf16.msra.mxu0 %v1006
        %1160 = vmatpush.bf16.msra.mxu0 %v1004
        %1161 = vmatpush.bf16.msra.mxu0 %v1002
        %1162 = vmatpush.bf16.msra.mxu0 %v1000
        %1163 = vmatpush.bf16.msra.mxu0 %v998
        %1164 = vmatmul.bf16.gmra.mxu0 %v733
        %v1165 = vpop.f32.mrf.mxu0
        %v1166 = vadd.f32 %v1152, %v1165
        %v1167 = vpop.f32.mrf.mxu0
        %v1168 = vadd.f32 %v1154, %v1167
        %1169 = vdwg.mxu0
        %1170 = vmatpush.bf16.msra.mxu0 %v1028
        %1171 = vmatpush.bf16.msra.mxu0 %v1026
        %1172 = vmatpush.bf16.msra.mxu0 %v1024
        %1173 = vmatpush.bf16.msra.mxu0 %v1022
        %1174 = vmatpush.bf16.msra.mxu0 %v1020
        %1175 = vmatpush.bf16.msra.mxu0 %v1018
        %1176 = vmatpush.bf16.msra.mxu0 %v1016
        %1177 = vmatpush.bf16.msra.mxu0 %v1014
        %1178 = vmatmul.bf16.gmra.mxu0 %v734
        %v1179 = vpop.f32.mrf.mxu0
        %v1180 = vadd.f32 %v1166, %v1179
        %v1181 = vpop.f32.mrf.mxu0
        %v1182 = vadd.f32 %v1168, %v1181
        %1183 = vdwg.mxu0
        %1184 = vmatpush.bf16.msra.mxu0 %v1044
        %1185 = vmatpush.bf16.msra.mxu0 %v1042
        %1186 = vmatpush.bf16.msra.mxu0 %v1040
        %1187 = vmatpush.bf16.msra.mxu0 %v1038
        %1188 = vmatpush.bf16.msra.mxu0 %v1036
        %1189 = vmatpush.bf16.msra.mxu0 %v1034
        %1190 = vmatpush.bf16.msra.mxu0 %v1032
        %1191 = vmatpush.bf16.msra.mxu0 %v1030
        %1192 = vmatmul.bf16.gmra.mxu0 %v735
        %v1193 = vpop.f32.mrf.mxu0
        %v1194 = vadd.f32 %v1180, %v1193
        %v1195 = vpop.f32.mrf.mxu0
        %v1196 = vadd.f32 %v1182, %v1195
        %1197 = vdwg.mxu0
        %1198 = vmatpush.bf16.msra.mxu0 %v1060
        %1199 = vmatpush.bf16.msra.mxu0 %v1058
        %1200 = vmatpush.bf16.msra.mxu0 %v1056
        %1201 = vmatpush.bf16.msra.mxu0 %v1054
        %1202 = vmatpush.bf16.msra.mxu0 %v1052
        %1203 = vmatpush.bf16.msra.mxu0 %v1050
        %1204 = vmatpush.bf16.msra.mxu0 %v1048
        %1205 = vmatpush.bf16.msra.mxu0 %v1046
        %1206 = vmatmul.bf16.gmra.mxu0 %v736
        %v1207 = vpop.f32.mrf.mxu0
        %v1208 = vadd.f32 %v1194, %v1207
        %v1209 = vpop.f32.mrf.mxu0
        %v1210 = vadd.f32 %v1196, %v1209
        %1211 = vdwg.mxu0
        %1212 = vmatpush.bf16.msra.mxu0 %v997
        %1213 = vmatpush.bf16.msra.mxu0 %v995
        %1214 = vmatpush.bf16.msra.mxu0 %v993
        %1215 = vmatpush.bf16.msra.mxu0 %v991
        %1216 = vmatpush.bf16.msra.mxu0 %v989
        %1217 = vmatpush.bf16.msra.mxu0 %v987
        %1218 = vmatpush.bf16.msra.mxu0 %v985
        %1219 = vmatpush.bf16.msra.mxu0 %v983
        %1220 = vmatmul.bf16.gmra.mxu0 %v732
        %v1221 = vpop.f32.mrf.mxu0
        %v1222 = vadd.f32 %v713, %v1221
        %v1223 = vpop.f32.mrf.mxu0
        %v1224 = vadd.f32 %v713, %v1223
        %1225 = vdwg.mxu0
        %1226 = vmatpush.bf16.msra.mxu0 %v1013
        %1227 = vmatpush.bf16.msra.mxu0 %v1011
        %1228 = vmatpush.bf16.msra.mxu0 %v1009
        %1229 = vmatpush.bf16.msra.mxu0 %v1007
        %1230 = vmatpush.bf16.msra.mxu0 %v1005
        %1231 = vmatpush.bf16.msra.mxu0 %v1003
        %1232 = vmatpush.bf16.msra.mxu0 %v1001
        %1233 = vmatpush.bf16.msra.mxu0 %v999
        %1234 = vmatmul.bf16.gmra.mxu0 %v733
        %v1235 = vpop.f32.mrf.mxu0
        %v1236 = vadd.f32 %v1222, %v1235
        %v1237 = vpop.f32.mrf.mxu0
        %v1238 = vadd.f32 %v1224, %v1237
        %1239 = vdwg.mxu0
        %1240 = vmatpush.bf16.msra.mxu0 %v1029
        %1241 = vmatpush.bf16.msra.mxu0 %v1027
        %1242 = vmatpush.bf16.msra.mxu0 %v1025
        %1243 = vmatpush.bf16.msra.mxu0 %v1023
        %1244 = vmatpush.bf16.msra.mxu0 %v1021
        %1245 = vmatpush.bf16.msra.mxu0 %v1019
        %1246 = vmatpush.bf16.msra.mxu0 %v1017
        %1247 = vmatpush.bf16.msra.mxu0 %v1015
        %1248 = vmatmul.bf16.gmra.mxu0 %v734
        %v1249 = vpop.f32.mrf.mxu0
        %v1250 = vadd.f32 %v1236, %v1249
        %v1251 = vpop.f32.mrf.mxu0
        %v1252 = vadd.f32 %v1238, %v1251
        %1253 = vdwg.mxu0
        %1254 = vmatpush.bf16.msra.mxu0 %v1045
        %1255 = vmatpush.bf16.msra.mxu0 %v1043
        %1256 = vmatpush.bf16.msra.mxu0 %v1041
        %1257 = vmatpush.bf16.msra.mxu0 %v1039
        %1258 = vmatpush.bf16.msra.mxu0 %v1037
        %1259 = vmatpush.bf16.msra.mxu0 %v1035
        %1260 = vmatpush.bf16.msra.mxu0 %v1033
        %1261 = vmatpush.bf16.msra.mxu0 %v1031
        %1262 = vmatmul.bf16.gmra.mxu0 %v735
        %v1263 = vpop.f32.mrf.mxu0
        %v1264 = vadd.f32 %v1250, %v1263
        %v1265 = vpop.f32.mrf.mxu0
        %v1266 = vadd.f32 %v1252, %v1265
        %1267 = vdwg.mxu0
        %1268 = vmatpush.bf16.msra.mxu0 %v1061
        %1269 = vmatpush.bf16.msra.mxu0 %v1059
        %1270 = vmatpush.bf16.msra.mxu0 %v1057
        %1271 = vmatpush.bf16.msra.mxu0 %v1055
        %1272 = vmatpush.bf16.msra.mxu0 %v1053
        %1273 = vmatpush.bf16.msra.mxu0 %v1051
        %1274 = vmatpush.bf16.msra.mxu0 %v1049
        %1275 = vmatpush.bf16.msra.mxu0 %v1047
        %1276 = vmatmul.bf16.gmra.mxu0 %v736
        %v1277 = vpop.f32.mrf.mxu0
        %v1278 = vadd.f32 %v1264, %v1277
        %v1279 = vpop.f32.mrf.mxu0
        %v1280 = vadd.f32 %v1266, %v1279
        %1281 = vdwg.mxu0
        %v1282 = vmax.f32 %v1208, 0.0
        %v1283 = vmax.f32 %v1278, 0.0
        %v1284 = vmax.f32 %v1210, 0.0
        %v1285 = vmax.f32 %v1280, 0.0
        %v1286 = vpack.c.bf16 %v1283, %v1282
        %v1287 = vpack.c.bf16 %v1285, %v1284
        %1288 = vst [vmem:[#allocation3] sm:$0x11] 0
        %vm1289 = vsmask.f32 4352
        %vm1290 = vmand %vm554, %vm1289
        %vm1291 = vmor %vm1290, %vm541
        %v1292 = vld [vmem:[#allocation3 + $0x8] sm:$0x11]
        %v1293 = vsel %vm1291, 0, %v1292
        %1294 = vst [vmem:[#allocation3 + $0x8] sm:$0x11] %v1293
        %vm1295 = vcmask 1047559
        %vm1296 = vsmask.f32 7966
        %vm1297 = vmand %vm1295, %vm1296
        %vm1298 = vmor %vm1297, %vm547
        %v1299 = vld [vmem:[#allocation3 + $0x40] sm:$0x88]
        %v1300 = vsel %vm1298, 0, %v1299
        %1301 = vst [vmem:[#allocation3 + $0x40] sm:$0x88] %v1300
        %1302 = vst [vmem:[#allocation3 + $0x48] sm:$0x88] 0
        %v1305 = vrot.slane %v1286, 7
        %v1306 = vrot.slane %v1305, 4
        %v1307 = vrot.slane %v1287, 7
        %v1308 = vsel %vm555, %v1306, %v1307
        %1311 = vst [vmem:[#allocation3] sm:$0xee] %v1305
        %1312 = vst [vmem:[#allocation3 + $0x28] sm:$0xff] %v1308
        %v1314 = vshrl.u32 %v1286, 16
        %v1316 = vrot.slane %v1314, 7
        %v1317 = vshll.u32 %v1286, 16
        %v1319 = vor.u32 %v1316, %v1317
        %v1320 = vrot.slane %v1316, 4
        %v1322 = vshrl.u32 %v1287, 16
        %v1324 = vrot.slane %v1322, 7
        %v1325 = vshll.u32 %v1287, 16
        %v1327 = vor.u32 %v1324, %v1325
        %v1328 = vsel %vm565, %v1320, %v1327
        %vm1331 = vcmask 1047556
        %vm1332 = vsmask.f32 7954
        %vm1333 = vmand %vm1331, %vm1332
        %vm1334 = vmor %vm1333, %vm586
        %v1335 = vld [vmem:[#allocation3 + $0x8] sm:$0xff]
        %v1336 = vsel %vm1334, %v1319, %v1335
        %1337 = vst [vmem:[#allocation3 + $0x8] sm:$0xff] %v1336
        %1338 = vst [vmem:[#allocation3 + $0x30] sm:$0xff] %v1328
        %1339 = vst [vmem:[#allocation3 + $0x10] sm:$0xff] %v1286
        %1340 = vst [vmem:[#allocation3 + $0x38] sm:$0xff] %v1287
        %v1341 = vrot.slane %v1314, 4
        %v1342 = vrot.slane %v1317, 5
        %v1343 = vor.u32 %v1341, %v1342
        %v1344 = vrot.slane %v1343, 4
        %v1345 = vrot.slane %v1325, 5
        %v1346 = vsel %vm595, %v1344, %v1345
        %v1347 = vrot.slane %v1322, 4
        %v1348 = vor.u32 %v1347, %v1345
        %v1349 = vrot.slane %v1348, 4
        %1352 = vst [vmem:[#allocation3 + $0x18] sm:$0xff] %v1346
        %vm1353 = vsmask.f32 7424
        %vm1354 = vmand %vm1331, %vm1353
        %vm1355 = vmor %vm1354, %vm608
        %v1356 = vld [vmem:[#allocation3 + $0x40] sm:$0xff]
        %v1357 = vsel %vm1355, %v1349, %v1356
        %1358 = vst [vmem:[#allocation3 + $0x40] sm:$0xff] %v1357
        %v1359 = vrot.slane %v1286, 5
        %v1360 = vrot.slane %v1359, 4
        %v1361 = vrot.slane %v1287, 5
        %v1362 = vsel %vm614, %v1360, %v1361
        %v1363 = vrot.slane %v1361, 4
        %1366 = vst [vmem:[#allocation3 + $0x20] sm:$0xff] %v1362
        %1367 = vst [vmem:[#allocation3 + $0x48] sm:$0x77] %v1363
        %v1368 = vld [vmem:[#allocation3] sm:$0xff]
        %v1369 = vld [vmem:[#allocation3 + $0x8] sm:$0xff]
        %v1370 = vld [vmem:[#allocation3 + $0x10] sm:$0xff]
        %v1371 = vld [vmem:[#allocation3 + $0x18] sm:$0xff]
        %v1372 = vld [vmem:[#allocation3 + $0x20] sm:$0xff]
        %v1373 = vld [vmem:[#allocation3 + $0x28] sm:$0xff]
        %v1374 = vld [vmem:[#allocation3 + $0x30] sm:$0xff]
        %v1375 = vld [vmem:[#allocation3 + $0x38] sm:$0xff]
        %v1376 = vld [vmem:[#allocation3 + $0x40] sm:$0xff]
        %v1377 = vld [vmem:[#allocation3 + $0x48] sm:$0xff]
        %v1378 = vld [vmem:[#allocation6] sm:$0xff]
        %v1379 = vld [vmem:[#allocation6 + $0x8] sm:$0xff]
        %v1380 = vld [vmem:[#allocation6 + $0x10] sm:$0xff]
        %v1381 = vld [vmem:[#allocation6 + $0x18] sm:$0xff]
        %v1382 = vld [vmem:[#allocation6 + $0x20] sm:$0xff]
        %v1383 = vld [vmem:[#allocation6 + $0x28] sm:$0xff]
        %v1384 = vld [vmem:[#allocation6 + $0x30] sm:$0xff]
        %v1385 = vld [vmem:[#allocation6 + $0x38] sm:$0xff]
        %v1386 = vld [vmem:[#allocation6 + $0x40] sm:$0xff]
        %v1387 = vld [vmem:[#allocation6 + $0x48] sm:$0xff]
        %v1388 = vld [vmem:[#allocation6 + $0x50] sm:$0xff]
        %v1389 = vld [vmem:[#allocation6 + $0x58] sm:$0xff]
        %v1390 = vld [vmem:[#allocation6 + $0x60] sm:$0xff]
        %v1391 = vld [vmem:[#allocation6 + $0x68] sm:$0xff]
        %v1392 = vld [vmem:[#allocation6 + $0x70] sm:$0xff]
        %v1393 = vld [vmem:[#allocation6 + $0x78] sm:$0xff]
        %v1394 = vld [vmem:[#allocation6 + $0x80] sm:$0xff]
        %v1395 = vld [vmem:[#allocation6 + $0x88] sm:$0xff]
        %v1396 = vld [vmem:[#allocation6 + $0x90] sm:$0xff]
        %v1397 = vld [vmem:[#allocation6 + $0x98] sm:$0xff]
        %v1398 = vld [vmem:[#allocation6 + $0xa0] sm:$0xff]
        %v1399 = vld [vmem:[#allocation6 + $0xa8] sm:$0xff]
        %v1400 = vld [vmem:[#allocation6 + $0xb0] sm:$0xff]
        %v1401 = vld [vmem:[#allocation6 + $0xb8] sm:$0xff]
        %v1402 = vld [vmem:[#allocation6 + $0xc0] sm:$0xff]
        %v1403 = vld [vmem:[#allocation6 + $0xc8] sm:$0xff]
        %v1404 = vld [vmem:[#allocation6 + $0xd0] sm:$0xff]
        %v1405 = vld [vmem:[#allocation6 + $0xd8] sm:$0xff]
        %v1406 = vld [vmem:[#allocation6 + $0xe0] sm:$0xff]
        %v1407 = vld [vmem:[#allocation6 + $0xe8] sm:$0xff]
        %v1408 = vld [vmem:[#allocation6 + $0xf0] sm:$0xff]
        %v1409 = vld [vmem:[#allocation6 + $0xf8] sm:$0xff]
        %v1410 = vld [vmem:[#allocation6 + $0x100] sm:$0xff]
        %v1411 = vld [vmem:[#allocation6 + $0x108] sm:$0xff]
        %v1412 = vld [vmem:[#allocation6 + $0x110] sm:$0xff]
        %v1413 = vld [vmem:[#allocation6 + $0x118] sm:$0xff]
        %v1414 = vld [vmem:[#allocation6 + $0x120] sm:$0xff]
        %v1415 = vld [vmem:[#allocation6 + $0x128] sm:$0xff]
        %v1416 = vld [vmem:[#allocation6 + $0x130] sm:$0xff]
        %v1417 = vld [vmem:[#allocation6 + $0x138] sm:$0xff]
        %v1418 = vld [vmem:[#allocation6 + $0x140] sm:$0xff]
        %v1419 = vld [vmem:[#allocation6 + $0x148] sm:$0xff]
        %v1420 = vld [vmem:[#allocation6 + $0x150] sm:$0xff]
        %v1421 = vld [vmem:[#allocation6 + $0x158] sm:$0xff]
        %v1422 = vld [vmem:[#allocation6 + $0x160] sm:$0xff]
        %v1423 = vld [vmem:[#allocation6 + $0x168] sm:$0xff]
        %v1424 = vld [vmem:[#allocation6 + $0x170] sm:$0xff]
        %v1425 = vld [vmem:[#allocation6 + $0x178] sm:$0xff]
        %v1426 = vld [vmem:[#allocation6 + $0x180] sm:$0xff]
        %v1427 = vld [vmem:[#allocation6 + $0x188] sm:$0xff]
        %v1428 = vld [vmem:[#allocation6 + $0x190] sm:$0xff]
        %v1429 = vld [vmem:[#allocation6 + $0x198] sm:$0xff]
        %v1430 = vld [vmem:[#allocation6 + $0x1a0] sm:$0xff]
        %v1431 = vld [vmem:[#allocation6 + $0x1a8] sm:$0xff]
        %v1432 = vld [vmem:[#allocation6 + $0x1b0] sm:$0xff]
        %v1433 = vld [vmem:[#allocation6 + $0x1b8] sm:$0xff]
        %v1434 = vld [vmem:[#allocation6 + $0x1c0] sm:$0xff]
        %v1435 = vld [vmem:[#allocation6 + $0x1c8] sm:$0xff]
        %v1436 = vld [vmem:[#allocation6 + $0x1d0] sm:$0xff]
        %v1437 = vld [vmem:[#allocation6 + $0x1d8] sm:$0xff]
        %v1438 = vld [vmem:[#allocation6 + $0x1e0] sm:$0xff]
        %v1439 = vld [vmem:[#allocation6 + $0x1e8] sm:$0xff]
        %v1440 = vld [vmem:[#allocation6 + $0x1f0] sm:$0xff]
        %v1441 = vld [vmem:[#allocation6 + $0x1f8] sm:$0xff]
        %v1442 = vld [vmem:[#allocation6 + $0x200] sm:$0xff]
        %v1443 = vld [vmem:[#allocation6 + $0x208] sm:$0xff]
        %v1444 = vld [vmem:[#allocation6 + $0x210] sm:$0xff]
        %v1445 = vld [vmem:[#allocation6 + $0x218] sm:$0xff]
        %v1446 = vld [vmem:[#allocation6 + $0x220] sm:$0xff]
        %v1447 = vld [vmem:[#allocation6 + $0x228] sm:$0xff]
        %v1448 = vld [vmem:[#allocation6 + $0x230] sm:$0xff]
        %v1449 = vld [vmem:[#allocation6 + $0x238] sm:$0xff]
        %v1450 = vld [vmem:[#allocation6 + $0x240] sm:$0xff]
        %v1451 = vld [vmem:[#allocation6 + $0x248] sm:$0xff]
        %v1452 = vld [vmem:[#allocation6 + $0x250] sm:$0xff]
        %v1453 = vld [vmem:[#allocation6 + $0x258] sm:$0xff]
        %v1454 = vld [vmem:[#allocation6 + $0x260] sm:$0xff]
        %v1455 = vld [vmem:[#allocation6 + $0x268] sm:$0xff]
        %v1456 = vld [vmem:[#allocation6 + $0x270] sm:$0xff]
        %v1457 = vld [vmem:[#allocation6 + $0x278] sm:$0xff]
        %v1458 = vld [vmem:[#allocation6 + $0x280] sm:$0xff]
        %v1459 = vld [vmem:[#allocation6 + $0x288] sm:$0xff]
        %v1460 = vld [vmem:[#allocation6 + $0x290] sm:$0xff]
        %v1461 = vld [vmem:[#allocation6 + $0x298] sm:$0xff]
        %v1462 = vld [vmem:[#allocation6 + $0x2a0] sm:$0xff]
        %v1463 = vld [vmem:[#allocation6 + $0x2a8] sm:$0xff]
        %v1464 = vld [vmem:[#allocation6 + $0x2b0] sm:$0xff]
        %v1465 = vld [vmem:[#allocation6 + $0x2b8] sm:$0xff]
        %v1466 = vld [vmem:[#allocation6 + $0x2c0] sm:$0xff]
        %v1467 = vld [vmem:[#allocation6 + $0x2c8] sm:$0xff]
        %v1468 = vld [vmem:[#allocation6 + $0x2d0] sm:$0xff]
        %v1469 = vld [vmem:[#allocation6 + $0x2d8] sm:$0xff]
        %v1470 = vld [vmem:[#allocation6 + $0x2e0] sm:$0xff]
        %v1471 = vld [vmem:[#allocation6 + $0x2e8] sm:$0xff]
        %v1472 = vld [vmem:[#allocation6 + $0x2f0] sm:$0xff]
        %v1473 = vld [vmem:[#allocation6 + $0x2f8] sm:$0xff]
        %v1474 = vld [vmem:[#allocation6 + $0x300] sm:$0xff]
        %v1475 = vld [vmem:[#allocation6 + $0x308] sm:$0xff]
        %v1476 = vld [vmem:[#allocation6 + $0x310] sm:$0xff]
        %v1477 = vld [vmem:[#allocation6 + $0x318] sm:$0xff]
        %v1478 = vld [vmem:[#allocation6 + $0x320] sm:$0xff]
        %v1479 = vld [vmem:[#allocation6 + $0x328] sm:$0xff]
        %v1480 = vld [vmem:[#allocation6 + $0x330] sm:$0xff]
        %v1481 = vld [vmem:[#allocation6 + $0x338] sm:$0xff]
        %v1482 = vld [vmem:[#allocation6 + $0x340] sm:$0xff]
        %v1483 = vld [vmem:[#allocation6 + $0x348] sm:$0xff]
        %v1484 = vld [vmem:[#allocation6 + $0x350] sm:$0xff]
        %v1485 = vld [vmem:[#allocation6 + $0x358] sm:$0xff]
        %v1486 = vld [vmem:[#allocation6 + $0x360] sm:$0xff]
        %v1487 = vld [vmem:[#allocation6 + $0x368] sm:$0xff]
        %v1488 = vld [vmem:[#allocation6 + $0x370] sm:$0xff]
        %v1489 = vld [vmem:[#allocation6 + $0x378] sm:$0xff]
        %v1490 = vld [vmem:[#allocation6 + $0x380] sm:$0xff]
        %v1491 = vld [vmem:[#allocation6 + $0x388] sm:$0xff]
        %v1492 = vld [vmem:[#allocation6 + $0x390] sm:$0xff]
        %v1493 = vld [vmem:[#allocation6 + $0x398] sm:$0xff]
        %v1494 = vld [vmem:[#allocation6 + $0x3a0] sm:$0xff]
        %v1495 = vld [vmem:[#allocation6 + $0x3a8] sm:$0xff]
        %v1496 = vld [vmem:[#allocation6 + $0x3b0] sm:$0xff]
        %v1497 = vld [vmem:[#allocation6 + $0x3b8] sm:$0xff]
        %v1498 = vld [vmem:[#allocation6 + $0x3c0] sm:$0xff]
        %v1499 = vld [vmem:[#allocation6 + $0x3c8] sm:$0xff]
        %v1500 = vld [vmem:[#allocation6 + $0x3d0] sm:$0xff]
        %v1501 = vld [vmem:[#allocation6 + $0x3d8] sm:$0xff]
        %v1502 = vld [vmem:[#allocation6 + $0x3e0] sm:$0xff]
        %v1503 = vld [vmem:[#allocation6 + $0x3e8] sm:$0xff]
        %v1504 = vld [vmem:[#allocation6 + $0x3f0] sm:$0xff]
        %v1505 = vld [vmem:[#allocation6 + $0x3f8] sm:$0xff]
        %v1506 = vld [vmem:[#allocation6 + $0x400] sm:$0xff]
        %v1507 = vld [vmem:[#allocation6 + $0x408] sm:$0xff]
        %v1508 = vld [vmem:[#allocation6 + $0x410] sm:$0xff]
        %v1509 = vld [vmem:[#allocation6 + $0x418] sm:$0xff]
        %v1510 = vld [vmem:[#allocation6 + $0x420] sm:$0xff]
        %v1511 = vld [vmem:[#allocation6 + $0x428] sm:$0xff]
        %v1512 = vld [vmem:[#allocation6 + $0x430] sm:$0xff]
        %v1513 = vld [vmem:[#allocation6 + $0x438] sm:$0xff]
        %v1514 = vld [vmem:[#allocation6 + $0x440] sm:$0xff]
        %v1515 = vld [vmem:[#allocation6 + $0x448] sm:$0xff]
        %v1516 = vld [vmem:[#allocation6 + $0x450] sm:$0xff]
        %v1517 = vld [vmem:[#allocation6 + $0x458] sm:$0xff]
        %v1518 = vld [vmem:[#allocation6 + $0x460] sm:$0xff]
        %v1519 = vld [vmem:[#allocation6 + $0x468] sm:$0xff]
        %v1520 = vld [vmem:[#allocation6 + $0x470] sm:$0xff]
        %v1521 = vld [vmem:[#allocation6 + $0x478] sm:$0xff]
        %v1522 = vld [vmem:[#allocation6 + $0x480] sm:$0xff]
        %v1523 = vld [vmem:[#allocation6 + $0x488] sm:$0xff]
        %v1524 = vld [vmem:[#allocation6 + $0x490] sm:$0xff]
        %v1525 = vld [vmem:[#allocation6 + $0x498] sm:$0xff]
        %v1526 = vld [vmem:[#allocation6 + $0x4a0] sm:$0xff]
        %v1527 = vld [vmem:[#allocation6 + $0x4a8] sm:$0xff]
        %v1528 = vld [vmem:[#allocation6 + $0x4b0] sm:$0xff]
        %v1529 = vld [vmem:[#allocation6 + $0x4b8] sm:$0xff]
        %v1530 = vld [vmem:[#allocation6 + $0x4c0] sm:$0xff]
        %v1531 = vld [vmem:[#allocation6 + $0x4c8] sm:$0xff]
        %v1532 = vld [vmem:[#allocation6 + $0x4d0] sm:$0xff]
        %v1533 = vld [vmem:[#allocation6 + $0x4d8] sm:$0xff]
        %v1534 = vld [vmem:[#allocation6 + $0x4e0] sm:$0xff]
        %v1535 = vld [vmem:[#allocation6 + $0x4e8] sm:$0xff]
        %v1536 = vld [vmem:[#allocation6 + $0x4f0] sm:$0xff]
        %v1537 = vld [vmem:[#allocation6 + $0x4f8] sm:$0xff]
        %v1538 = vld [vmem:[%s4] sm:$0x3]
        %v1540 = vperm.slane %v1538, 0
        %v1541 = vperm.slane %v1538, 1
        %v1554 = vunpack.c.l.b16 %v1368
        %v1555 = vunpack.c.h.b16 %v1368
        %v1556 = vunpack.c.l.b16 %v1369
        %v1557 = vunpack.c.h.b16 %v1369
        %v1558 = vunpack.c.l.b16 %v1370
        %v1559 = vunpack.c.h.b16 %v1370
        %v1560 = vunpack.c.l.b16 %v1371
        %v1561 = vunpack.c.h.b16 %v1371
        %v1562 = vunpack.c.l.b16 %v1372
        %v1563 = vunpack.c.h.b16 %v1372
        %v1564 = vunpack.c.l.b16 %v1373
        %v1565 = vunpack.c.h.b16 %v1373
        %v1566 = vunpack.c.l.b16 %v1374
        %v1567 = vunpack.c.h.b16 %v1374
        %v1568 = vunpack.c.l.b16 %v1375
        %v1569 = vunpack.c.h.b16 %v1375
        %v1570 = vunpack.c.l.b16 %v1376
        %v1571 = vunpack.c.h.b16 %v1376
        %v1572 = vunpack.c.l.b16 %v1377
        %v1573 = vunpack.c.h.b16 %v1377
        %v1574 = vpack.c.b16 %v1564, %v1554
        %v1575 = vpack.c.b16 %v1565, %v1555
        %v1576 = vpack.c.b16 %v1566, %v1556
        %v1577 = vpack.c.b16 %v1567, %v1557
        %v1578 = vpack.c.b16 %v1568, %v1558
        %v1579 = vpack.c.b16 %v1569, %v1559
        %v1580 = vpack.c.b16 %v1570, %v1560
        %v1581 = vpack.c.b16 %v1571, %v1561
        %v1582 = vpack.c.b16 %v1572, %v1562
        %v1583 = vpack.c.b16 %v1573, %v1563
        %v1754 = vunpack.c.l.b16 %v1378
        %v1755 = vunpack.c.h.b16 %v1378
        %v1756 = vunpack.c.l.b16 %v1379
        %v1757 = vunpack.c.h.b16 %v1379
        %v1758 = vunpack.c.l.b16 %v1380
        %v1759 = vunpack.c.h.b16 %v1380
        %v1760 = vunpack.c.l.b16 %v1381
        %v1761 = vunpack.c.h.b16 %v1381
        %v1762 = vunpack.c.l.b16 %v1382
        %v1763 = vunpack.c.h.b16 %v1382
        %v1764 = vunpack.c.l.b16 %v1383
        %v1765 = vunpack.c.h.b16 %v1383
        %v1766 = vunpack.c.l.b16 %v1384
        %v1767 = vunpack.c.h.b16 %v1384
        %v1768 = vunpack.c.l.b16 %v1385
        %v1769 = vunpack.c.h.b16 %v1385
        %v1770 = vunpack.c.l.b16 %v1386
        %v1771 = vunpack.c.h.b16 %v1386
        %v1772 = vunpack.c.l.b16 %v1387
        %v1773 = vunpack.c.h.b16 %v1387
        %v1774 = vunpack.c.l.b16 %v1388
        %v1775 = vunpack.c.h.b16 %v1388
        %v1776 = vunpack.c.l.b16 %v1389
        %v1777 = vunpack.c.h.b16 %v1389
        %v1778 = vunpack.c.l.b16 %v1390
        %v1779 = vunpack.c.h.b16 %v1390
        %v1780 = vunpack.c.l.b16 %v1391
        %v1781 = vunpack.c.h.b16 %v1391
        %v1782 = vunpack.c.l.b16 %v1392
        %v1783 = vunpack.c.h.b16 %v1392
        %v1784 = vunpack.c.l.b16 %v1393
        %v1785 = vunpack.c.h.b16 %v1393
        %v1786 = vunpack.c.l.b16 %v1394
        %v1787 = vunpack.c.h.b16 %v1394
        %v1788 = vunpack.c.l.b16 %v1395
        %v1789 = vunpack.c.h.b16 %v1395
        %v1790 = vunpack.c.l.b16 %v1396
        %v1791 = vunpack.c.h.b16 %v1396
        %v1792 = vunpack.c.l.b16 %v1397
        %v1793 = vunpack.c.h.b16 %v1397
        %v1794 = vunpack.c.l.b16 %v1398
        %v1795 = vunpack.c.h.b16 %v1398
        %v1796 = vunpack.c.l.b16 %v1399
        %v1797 = vunpack.c.h.b16 %v1399
        %v1798 = vunpack.c.l.b16 %v1400
        %v1799 = vunpack.c.h.b16 %v1400
        %v1800 = vunpack.c.l.b16 %v1401
        %v1801 = vunpack.c.h.b16 %v1401
        %v1802 = vunpack.c.l.b16 %v1402
        %v1803 = vunpack.c.h.b16 %v1402
        %v1804 = vunpack.c.l.b16 %v1403
        %v1805 = vunpack.c.h.b16 %v1403
        %v1806 = vunpack.c.l.b16 %v1404
        %v1807 = vunpack.c.h.b16 %v1404
        %v1808 = vunpack.c.l.b16 %v1405
        %v1809 = vunpack.c.h.b16 %v1405
        %v1810 = vunpack.c.l.b16 %v1406
        %v1811 = vunpack.c.h.b16 %v1406
        %v1812 = vunpack.c.l.b16 %v1407
        %v1813 = vunpack.c.h.b16 %v1407
        %v1814 = vunpack.c.l.b16 %v1408
        %v1815 = vunpack.c.h.b16 %v1408
        %v1816 = vunpack.c.l.b16 %v1409
        %v1817 = vunpack.c.h.b16 %v1409
        %v1818 = vunpack.c.l.b16 %v1410
        %v1819 = vunpack.c.h.b16 %v1410
        %v1820 = vunpack.c.l.b16 %v1411
        %v1821 = vunpack.c.h.b16 %v1411
        %v1822 = vunpack.c.l.b16 %v1412
        %v1823 = vunpack.c.h.b16 %v1412
        %v1824 = vunpack.c.l.b16 %v1413
        %v1825 = vunpack.c.h.b16 %v1413
        %v1826 = vunpack.c.l.b16 %v1414
        %v1827 = vunpack.c.h.b16 %v1414
        %v1828 = vunpack.c.l.b16 %v1415
        %v1829 = vunpack.c.h.b16 %v1415
        %v1830 = vunpack.c.l.b16 %v1416
        %v1831 = vunpack.c.h.b16 %v1416
        %v1832 = vunpack.c.l.b16 %v1417
        %v1833 = vunpack.c.h.b16 %v1417
        %v1834 = vunpack.c.l.b16 %v1418
        %v1835 = vunpack.c.h.b16 %v1418
        %v1836 = vunpack.c.l.b16 %v1419
        %v1837 = vunpack.c.h.b16 %v1419
        %v1838 = vunpack.c.l.b16 %v1420
        %v1839 = vunpack.c.h.b16 %v1420
        %v1840 = vunpack.c.l.b16 %v1421
        %v1841 = vunpack.c.h.b16 %v1421
        %v1842 = vunpack.c.l.b16 %v1422
        %v1843 = vunpack.c.h.b16 %v1422
        %v1844 = vunpack.c.l.b16 %v1423
        %v1845 = vunpack.c.h.b16 %v1423
        %v1846 = vunpack.c.l.b16 %v1424
        %v1847 = vunpack.c.h.b16 %v1424
        %v1848 = vunpack.c.l.b16 %v1425
        %v1849 = vunpack.c.h.b16 %v1425
        %v1850 = vunpack.c.l.b16 %v1426
        %v1851 = vunpack.c.h.b16 %v1426
        %v1852 = vunpack.c.l.b16 %v1427
        %v1853 = vunpack.c.h.b16 %v1427
        %v1854 = vunpack.c.l.b16 %v1428
        %v1855 = vunpack.c.h.b16 %v1428
        %v1856 = vunpack.c.l.b16 %v1429
        %v1857 = vunpack.c.h.b16 %v1429
        %v1858 = vunpack.c.l.b16 %v1430
        %v1859 = vunpack.c.h.b16 %v1430
        %v1860 = vunpack.c.l.b16 %v1431
        %v1861 = vunpack.c.h.b16 %v1431
        %v1862 = vunpack.c.l.b16 %v1432
        %v1863 = vunpack.c.h.b16 %v1432
        %v1864 = vunpack.c.l.b16 %v1433
        %v1865 = vunpack.c.h.b16 %v1433
        %v1866 = vunpack.c.l.b16 %v1434
        %v1867 = vunpack.c.h.b16 %v1434
        %v1868 = vunpack.c.l.b16 %v1435
        %v1869 = vunpack.c.h.b16 %v1435
        %v1870 = vunpack.c.l.b16 %v1436
        %v1871 = vunpack.c.h.b16 %v1436
        %v1872 = vunpack.c.l.b16 %v1437
        %v1873 = vunpack.c.h.b16 %v1437
        %v1874 = vunpack.c.l.b16 %v1438
        %v1875 = vunpack.c.h.b16 %v1438
        %v1876 = vunpack.c.l.b16 %v1439
        %v1877 = vunpack.c.h.b16 %v1439
        %v1878 = vunpack.c.l.b16 %v1440
        %v1879 = vunpack.c.h.b16 %v1440
        %v1880 = vunpack.c.l.b16 %v1441
        %v1881 = vunpack.c.h.b16 %v1441
        %v1882 = vunpack.c.l.b16 %v1442
        %v1883 = vunpack.c.h.b16 %v1442
        %v1884 = vunpack.c.l.b16 %v1443
        %v1885 = vunpack.c.h.b16 %v1443
        %v1886 = vunpack.c.l.b16 %v1444
        %v1887 = vunpack.c.h.b16 %v1444
        %v1888 = vunpack.c.l.b16 %v1445
        %v1889 = vunpack.c.h.b16 %v1445
        %v1890 = vunpack.c.l.b16 %v1446
        %v1891 = vunpack.c.h.b16 %v1446
        %v1892 = vunpack.c.l.b16 %v1447
        %v1893 = vunpack.c.h.b16 %v1447
        %v1894 = vunpack.c.l.b16 %v1448
        %v1895 = vunpack.c.h.b16 %v1448
        %v1896 = vunpack.c.l.b16 %v1449
        %v1897 = vunpack.c.h.b16 %v1449
        %v1898 = vunpack.c.l.b16 %v1450
        %v1899 = vunpack.c.h.b16 %v1450
        %v1900 = vunpack.c.l.b16 %v1451
        %v1901 = vunpack.c.h.b16 %v1451
        %v1902 = vunpack.c.l.b16 %v1452
        %v1903 = vunpack.c.h.b16 %v1452
        %v1904 = vunpack.c.l.b16 %v1453
        %v1905 = vunpack.c.h.b16 %v1453
        %v1906 = vunpack.c.l.b16 %v1454
        %v1907 = vunpack.c.h.b16 %v1454
        %v1908 = vunpack.c.l.b16 %v1455
        %v1909 = vunpack.c.h.b16 %v1455
        %v1910 = vunpack.c.l.b16 %v1456
        %v1911 = vunpack.c.h.b16 %v1456
        %v1912 = vunpack.c.l.b16 %v1457
        %v1913 = vunpack.c.h.b16 %v1457
        %v1914 = vunpack.c.l.b16 %v1458
        %v1915 = vunpack.c.h.b16 %v1458
        %v1916 = vunpack.c.l.b16 %v1459
        %v1917 = vunpack.c.h.b16 %v1459
        %v1918 = vunpack.c.l.b16 %v1460
        %v1919 = vunpack.c.h.b16 %v1460
        %v1920 = vunpack.c.l.b16 %v1461
        %v1921 = vunpack.c.h.b16 %v1461
        %v1922 = vunpack.c.l.b16 %v1462
        %v1923 = vunpack.c.h.b16 %v1462
        %v1924 = vunpack.c.l.b16 %v1463
        %v1925 = vunpack.c.h.b16 %v1463
        %v1926 = vunpack.c.l.b16 %v1464
        %v1927 = vunpack.c.h.b16 %v1464
        %v1928 = vunpack.c.l.b16 %v1465
        %v1929 = vunpack.c.h.b16 %v1465
        %v1930 = vunpack.c.l.b16 %v1466
        %v1931 = vunpack.c.h.b16 %v1466
        %v1932 = vunpack.c.l.b16 %v1467
        %v1933 = vunpack.c.h.b16 %v1467
        %v1934 = vunpack.c.l.b16 %v1468
        %v1935 = vunpack.c.h.b16 %v1468
        %v1936 = vunpack.c.l.b16 %v1469
        %v1937 = vunpack.c.h.b16 %v1469
        %v1938 = vunpack.c.l.b16 %v1470
        %v1939 = vunpack.c.h.b16 %v1470
        %v1940 = vunpack.c.l.b16 %v1471
        %v1941 = vunpack.c.h.b16 %v1471
        %v1942 = vunpack.c.l.b16 %v1472
        %v1943 = vunpack.c.h.b16 %v1472
        %v1944 = vunpack.c.l.b16 %v1473
        %v1945 = vunpack.c.h.b16 %v1473
        %v1946 = vunpack.c.l.b16 %v1474
        %v1947 = vunpack.c.h.b16 %v1474
        %v1948 = vunpack.c.l.b16 %v1475
        %v1949 = vunpack.c.h.b16 %v1475
        %v1950 = vunpack.c.l.b16 %v1476
        %v1951 = vunpack.c.h.b16 %v1476
        %v1952 = vunpack.c.l.b16 %v1477
        %v1953 = vunpack.c.h.b16 %v1477
        %v1954 = vunpack.c.l.b16 %v1478
        %v1955 = vunpack.c.h.b16 %v1478
        %v1956 = vunpack.c.l.b16 %v1479
        %v1957 = vunpack.c.h.b16 %v1479
        %v1958 = vunpack.c.l.b16 %v1480
        %v1959 = vunpack.c.h.b16 %v1480
        %v1960 = vunpack.c.l.b16 %v1481
        %v1961 = vunpack.c.h.b16 %v1481
        %v1962 = vunpack.c.l.b16 %v1482
        %v1963 = vunpack.c.h.b16 %v1482
        %v1964 = vunpack.c.l.b16 %v1483
        %v1965 = vunpack.c.h.b16 %v1483
        %v1966 = vunpack.c.l.b16 %v1484
        %v1967 = vunpack.c.h.b16 %v1484
        %v1968 = vunpack.c.l.b16 %v1485
        %v1969 = vunpack.c.h.b16 %v1485
        %v1970 = vunpack.c.l.b16 %v1486
        %v1971 = vunpack.c.h.b16 %v1486
        %v1972 = vunpack.c.l.b16 %v1487
        %v1973 = vunpack.c.h.b16 %v1487
        %v1974 = vunpack.c.l.b16 %v1488
        %v1975 = vunpack.c.h.b16 %v1488
        %v1976 = vunpack.c.l.b16 %v1489
        %v1977 = vunpack.c.h.b16 %v1489
        %v1978 = vunpack.c.l.b16 %v1490
        %v1979 = vunpack.c.h.b16 %v1490
        %v1980 = vunpack.c.l.b16 %v1491
        %v1981 = vunpack.c.h.b16 %v1491
        %v1982 = vunpack.c.l.b16 %v1492
        %v1983 = vunpack.c.h.b16 %v1492
        %v1984 = vunpack.c.l.b16 %v1493
        %v1985 = vunpack.c.h.b16 %v1493
        %v1986 = vunpack.c.l.b16 %v1494
        %v1987 = vunpack.c.h.b16 %v1494
        %v1988 = vunpack.c.l.b16 %v1495
        %v1989 = vunpack.c.h.b16 %v1495
        %v1990 = vunpack.c.l.b16 %v1496
        %v1991 = vunpack.c.h.b16 %v1496
        %v1992 = vunpack.c.l.b16 %v1497
        %v1993 = vunpack.c.h.b16 %v1497
        %v1994 = vunpack.c.l.b16 %v1498
        %v1995 = vunpack.c.h.b16 %v1498
        %v1996 = vunpack.c.l.b16 %v1499
        %v1997 = vunpack.c.h.b16 %v1499
        %v1998 = vunpack.c.l.b16 %v1500
        %v1999 = vunpack.c.h.b16 %v1500
        %v2000 = vunpack.c.l.b16 %v1501
        %v2001 = vunpack.c.h.b16 %v1501
        %v2002 = vunpack.c.l.b16 %v1502
        %v2003 = vunpack.c.h.b16 %v1502
        %v2004 = vunpack.c.l.b16 %v1503
        %v2005 = vunpack.c.h.b16 %v1503
        %v2006 = vunpack.c.l.b16 %v1504
        %v2007 = vunpack.c.h.b16 %v1504
        %v2008 = vunpack.c.l.b16 %v1505
        %v2009 = vunpack.c.h.b16 %v1505
        %v2010 = vunpack.c.l.b16 %v1506
        %v2011 = vunpack.c.h.b16 %v1506
        %v2012 = vunpack.c.l.b16 %v1507
        %v2013 = vunpack.c.h.b16 %v1507
        %v2014 = vunpack.c.l.b16 %v1508
        %v2015 = vunpack.c.h.b16 %v1508
        %v2016 = vunpack.c.l.b16 %v1509
        %v2017 = vunpack.c.h.b16 %v1509
        %v2018 = vunpack.c.l.b16 %v1510
        %v2019 = vunpack.c.h.b16 %v1510
        %v2020 = vunpack.c.l.b16 %v1511
        %v2021 = vunpack.c.h.b16 %v1511
        %v2022 = vunpack.c.l.b16 %v1512
        %v2023 = vunpack.c.h.b16 %v1512
        %v2024 = vunpack.c.l.b16 %v1513
        %v2025 = vunpack.c.h.b16 %v1513
        %v2026 = vunpack.c.l.b16 %v1514
        %v2027 = vunpack.c.h.b16 %v1514
        %v2028 = vunpack.c.l.b16 %v1515
        %v2029 = vunpack.c.h.b16 %v1515
        %v2030 = vunpack.c.l.b16 %v1516
        %v2031 = vunpack.c.h.b16 %v1516
        %v2032 = vunpack.c.l.b16 %v1517
        %v2033 = vunpack.c.h.b16 %v1517
        %v2034 = vunpack.c.l.b16 %v1518
        %v2035 = vunpack.c.h.b16 %v1518
        %v2036 = vunpack.c.l.b16 %v1519
        %v2037 = vunpack.c.h.b16 %v1519
        %v2038 = vunpack.c.l.b16 %v1520
        %v2039 = vunpack.c.h.b16 %v1520
        %v2040 = vunpack.c.l.b16 %v1521
        %v2041 = vunpack.c.h.b16 %v1521
        %v2042 = vunpack.c.l.b16 %v1522
        %v2043 = vunpack.c.h.b16 %v1522
        %v2044 = vunpack.c.l.b16 %v1523
        %v2045 = vunpack.c.h.b16 %v1523
        %v2046 = vunpack.c.l.b16 %v1524
        %v2047 = vunpack.c.h.b16 %v1524
        %v2048 = vunpack.c.l.b16 %v1525
        %v2049 = vunpack.c.h.b16 %v1525
        %v2050 = vunpack.c.l.b16 %v1526
        %v2051 = vunpack.c.h.b16 %v1526
        %v2052 = vunpack.c.l.b16 %v1527
        %v2053 = vunpack.c.h.b16 %v1527
        %v2054 = vunpack.c.l.b16 %v1528
        %v2055 = vunpack.c.h.b16 %v1528
        %v2056 = vunpack.c.l.b16 %v1529
        %v2057 = vunpack.c.h.b16 %v1529
        %v2058 = vunpack.c.l.b16 %v1530
        %v2059 = vunpack.c.h.b16 %v1530
        %v2060 = vunpack.c.l.b16 %v1531
        %v2061 = vunpack.c.h.b16 %v1531
        %v2062 = vunpack.c.l.b16 %v1532
        %v2063 = vunpack.c.h.b16 %v1532
        %v2064 = vunpack.c.l.b16 %v1533
        %v2065 = vunpack.c.h.b16 %v1533
        %v2066 = vunpack.c.l.b16 %v1534
        %v2067 = vunpack.c.h.b16 %v1534
        %v2068 = vunpack.c.l.b16 %v1535
        %v2069 = vunpack.c.h.b16 %v1535
        %v2070 = vunpack.c.l.b16 %v1536
        %v2071 = vunpack.c.h.b16 %v1536
        %v2072 = vunpack.c.l.b16 %v1537
        %v2073 = vunpack.c.h.b16 %v1537
        %v2074 = vpack.c.b16 %v1756, %v1754
        %v2075 = vpack.c.b16 %v1757, %v1755
        %v2076 = vpack.c.b16 %v1760, %v1758
        %v2077 = vpack.c.b16 %v1761, %v1759
        %v2078 = vpack.c.b16 %v1764, %v1762
        %v2079 = vpack.c.b16 %v1765, %v1763
        %v2080 = vpack.c.b16 %v1768, %v1766
        %v2081 = vpack.c.b16 %v1769, %v1767
        %v2082 = vpack.c.b16 %v1772, %v1770
        %v2083 = vpack.c.b16 %v1773, %v1771
        %v2084 = vpack.c.b16 %v1776, %v1774
        %v2085 = vpack.c.b16 %v1777, %v1775
        %v2086 = vpack.c.b16 %v1780, %v1778
        %v2087 = vpack.c.b16 %v1781, %v1779
        %v2088 = vpack.c.b16 %v1784, %v1782
        %v2089 = vpack.c.b16 %v1785, %v1783
        %v2090 = vpack.c.b16 %v1788, %v1786
        %v2091 = vpack.c.b16 %v1789, %v1787
        %v2092 = vpack.c.b16 %v1792, %v1790
        %v2093 = vpack.c.b16 %v1793, %v1791
        %v2094 = vpack.c.b16 %v1796, %v1794
        %v2095 = vpack.c.b16 %v1797, %v1795
        %v2096 = vpack.c.b16 %v1800, %v1798
        %v2097 = vpack.c.b16 %v1801, %v1799
        %v2098 = vpack.c.b16 %v1804, %v1802
        %v2099 = vpack.c.b16 %v1805, %v1803
        %v2100 = vpack.c.b16 %v1808, %v1806
        %v2101 = vpack.c.b16 %v1809, %v1807
        %v2102 = vpack.c.b16 %v1812, %v1810
        %v2103 = vpack.c.b16 %v1813, %v1811
        %v2104 = vpack.c.b16 %v1816, %v1814
        %v2105 = vpack.c.b16 %v1817, %v1815
        %v2106 = vpack.c.b16 %v1820, %v1818
        %v2107 = vpack.c.b16 %v1821, %v1819
        %v2108 = vpack.c.b16 %v1824, %v1822
        %v2109 = vpack.c.b16 %v1825, %v1823
        %v2110 = vpack.c.b16 %v1828, %v1826
        %v2111 = vpack.c.b16 %v1829, %v1827
        %v2112 = vpack.c.b16 %v1832, %v1830
        %v2113 = vpack.c.b16 %v1833, %v1831
        %v2114 = vpack.c.b16 %v1836, %v1834
        %v2115 = vpack.c.b16 %v1837, %v1835
        %v2116 = vpack.c.b16 %v1840, %v1838
        %v2117 = vpack.c.b16 %v1841, %v1839
        %v2118 = vpack.c.b16 %v1844, %v1842
        %v2119 = vpack.c.b16 %v1845, %v1843
        %v2120 = vpack.c.b16 %v1848, %v1846
        %v2121 = vpack.c.b16 %v1849, %v1847
        %v2122 = vpack.c.b16 %v1852, %v1850
        %v2123 = vpack.c.b16 %v1853, %v1851
        %v2124 = vpack.c.b16 %v1856, %v1854
        %v2125 = vpack.c.b16 %v1857, %v1855
        %v2126 = vpack.c.b16 %v1860, %v1858
        %v2127 = vpack.c.b16 %v1861, %v1859
        %v2128 = vpack.c.b16 %v1864, %v1862
        %v2129 = vpack.c.b16 %v1865, %v1863
        %v2130 = vpack.c.b16 %v1868, %v1866
        %v2131 = vpack.c.b16 %v1869, %v1867
        %v2132 = vpack.c.b16 %v1872, %v1870
        %v2133 = vpack.c.b16 %v1873, %v1871
        %v2134 = vpack.c.b16 %v1876, %v1874
        %v2135 = vpack.c.b16 %v1877, %v1875
        %v2136 = vpack.c.b16 %v1880, %v1878
        %v2137 = vpack.c.b16 %v1881, %v1879
        %v2138 = vpack.c.b16 %v1884, %v1882
        %v2139 = vpack.c.b16 %v1885, %v1883
        %v2140 = vpack.c.b16 %v1888, %v1886
        %v2141 = vpack.c.b16 %v1889, %v1887
        %v2142 = vpack.c.b16 %v1892, %v1890
        %v2143 = vpack.c.b16 %v1893, %v1891
        %v2144 = vpack.c.b16 %v1896, %v1894
        %v2145 = vpack.c.b16 %v1897, %v1895
        %v2146 = vpack.c.b16 %v1900, %v1898
        %v2147 = vpack.c.b16 %v1901, %v1899
        %v2148 = vpack.c.b16 %v1904, %v1902
        %v2149 = vpack.c.b16 %v1905, %v1903
        %v2150 = vpack.c.b16 %v1908, %v1906
        %v2151 = vpack.c.b16 %v1909, %v1907
        %v2152 = vpack.c.b16 %v1912, %v1910
        %v2153 = vpack.c.b16 %v1913, %v1911
        %v2154 = vpack.c.b16 %v1916, %v1914
        %v2155 = vpack.c.b16 %v1917, %v1915
        %v2156 = vpack.c.b16 %v1920, %v1918
        %v2157 = vpack.c.b16 %v1921, %v1919
        %v2158 = vpack.c.b16 %v1924, %v1922
        %v2159 = vpack.c.b16 %v1925, %v1923
        %v2160 = vpack.c.b16 %v1928, %v1926
        %v2161 = vpack.c.b16 %v1929, %v1927
        %v2162 = vpack.c.b16 %v1932, %v1930
        %v2163 = vpack.c.b16 %v1933, %v1931
        %v2164 = vpack.c.b16 %v1936, %v1934
        %v2165 = vpack.c.b16 %v1937, %v1935
        %v2166 = vpack.c.b16 %v1940, %v1938
        %v2167 = vpack.c.b16 %v1941, %v1939
        %v2168 = vpack.c.b16 %v1944, %v1942
        %v2169 = vpack.c.b16 %v1945, %v1943
        %v2170 = vpack.c.b16 %v1948, %v1946
        %v2171 = vpack.c.b16 %v1949, %v1947
        %v2172 = vpack.c.b16 %v1952, %v1950
        %v2173 = vpack.c.b16 %v1953, %v1951
        %v2174 = vpack.c.b16 %v1956, %v1954
        %v2175 = vpack.c.b16 %v1957, %v1955
        %v2176 = vpack.c.b16 %v1960, %v1958
        %v2177 = vpack.c.b16 %v1961, %v1959
        %v2178 = vpack.c.b16 %v1964, %v1962
        %v2179 = vpack.c.b16 %v1965, %v1963
        %v2180 = vpack.c.b16 %v1968, %v1966
        %v2181 = vpack.c.b16 %v1969, %v1967
        %v2182 = vpack.c.b16 %v1972, %v1970
        %v2183 = vpack.c.b16 %v1973, %v1971
        %v2184 = vpack.c.b16 %v1976, %v1974
        %v2185 = vpack.c.b16 %v1977, %v1975
        %v2186 = vpack.c.b16 %v1980, %v1978
        %v2187 = vpack.c.b16 %v1981, %v1979
        %v2188 = vpack.c.b16 %v1984, %v1982
        %v2189 = vpack.c.b16 %v1985, %v1983
        %v2190 = vpack.c.b16 %v1988, %v1986
        %v2191 = vpack.c.b16 %v1989, %v1987
        %v2192 = vpack.c.b16 %v1992, %v1990
        %v2193 = vpack.c.b16 %v1993, %v1991
        %v2194 = vpack.c.b16 %v1996, %v1994
        %v2195 = vpack.c.b16 %v1997, %v1995
        %v2196 = vpack.c.b16 %v2000, %v1998
        %v2197 = vpack.c.b16 %v2001, %v1999
        %v2198 = vpack.c.b16 %v2004, %v2002
        %v2199 = vpack.c.b16 %v2005, %v2003
        %v2200 = vpack.c.b16 %v2008, %v2006
        %v2201 = vpack.c.b16 %v2009, %v2007
        %v2202 = vpack.c.b16 %v2012, %v2010
        %v2203 = vpack.c.b16 %v2013, %v2011
        %v2204 = vpack.c.b16 %v2016, %v2014
        %v2205 = vpack.c.b16 %v2017, %v2015
        %v2206 = vpack.c.b16 %v2020, %v2018
        %v2207 = vpack.c.b16 %v2021, %v2019
        %v2208 = vpack.c.b16 %v2024, %v2022
        %v2209 = vpack.c.b16 %v2025, %v2023
        %v2210 = vpack.c.b16 %v2028, %v2026
        %v2211 = vpack.c.b16 %v2029, %v2027
        %v2212 = vpack.c.b16 %v2032, %v2030
        %v2213 = vpack.c.b16 %v2033, %v2031
        %v2214 = vpack.c.b16 %v2036, %v2034
        %v2215 = vpack.c.b16 %v2037, %v2035
        %v2216 = vpack.c.b16 %v2040, %v2038
        %v2217 = vpack.c.b16 %v2041, %v2039
        %v2218 = vpack.c.b16 %v2044, %v2042
        %v2219 = vpack.c.b16 %v2045, %v2043
        %v2220 = vpack.c.b16 %v2048, %v2046
        %v2221 = vpack.c.b16 %v2049, %v2047
        %v2222 = vpack.c.b16 %v2052, %v2050
        %v2223 = vpack.c.b16 %v2053, %v2051
        %v2224 = vpack.c.b16 %v2056, %v2054
        %v2225 = vpack.c.b16 %v2057, %v2055
        %v2226 = vpack.c.b16 %v2060, %v2058
        %v2227 = vpack.c.b16 %v2061, %v2059
        %v2228 = vpack.c.b16 %v2064, %v2062
        %v2229 = vpack.c.b16 %v2065, %v2063
        %v2230 = vpack.c.b16 %v2068, %v2066
        %v2231 = vpack.c.b16 %v2069, %v2067
        %v2232 = vpack.c.b16 %v2072, %v2070
        %v2233 = vpack.c.b16 %v2073, %v2071
        %2394 = vmatpush.bf16.msra.mxu0 %v2088
        %2395 = vmatpush.bf16.msra.mxu0 %v2086
        %2396 = vmatpush.bf16.msra.mxu0 %v2084
        %2397 = vmatpush.bf16.msra.mxu0 %v2082
        %2398 = vmatpush.bf16.msra.mxu0 %v2080
        %2399 = vmatpush.bf16.msra.mxu0 %v2078
        %2400 = vmatpush.bf16.msra.mxu0 %v2076
        %2401 = vmatpush.bf16.msra.mxu0 %v2074
        %2402 = vmatmul.bf16.gmra.mxu0 %v1574
        %v2403 = vpop.f32.mrf.mxu0
        %v2404 = vadd.f32 %v1540, %v2403
        %v2405 = vpop.f32.mrf.mxu0
        %v2406 = vadd.f32 %v1540, %v2405
        %2407 = vdwg.mxu0
        %2408 = vmatpush.bf16.msra.mxu0 %v2104
        %2409 = vmatpush.bf16.msra.mxu0 %v2102
        %2410 = vmatpush.bf16.msra.mxu0 %v2100
        %2411 = vmatpush.bf16.msra.mxu0 %v2098
        %2412 = vmatpush.bf16.msra.mxu0 %v2096
        %2413 = vmatpush.bf16.msra.mxu0 %v2094
        %2414 = vmatpush.bf16.msra.mxu0 %v2092
        %2415 = vmatpush.bf16.msra.mxu0 %v2090
        %2416 = vmatmul.bf16.gmra.mxu0 %v1575
        %v2417 = vpop.f32.mrf.mxu0
        %v2418 = vadd.f32 %v2404, %v2417
        %v2419 = vpop.f32.mrf.mxu0
        %v2420 = vadd.f32 %v2406, %v2419
        %2421 = vdwg.mxu0
        %2422 = vmatpush.bf16.msra.mxu0 %v2120
        %2423 = vmatpush.bf16.msra.mxu0 %v2118
        %2424 = vmatpush.bf16.msra.mxu0 %v2116
        %2425 = vmatpush.bf16.msra.mxu0 %v2114
        %2426 = vmatpush.bf16.msra.mxu0 %v2112
        %2427 = vmatpush.bf16.msra.mxu0 %v2110
        %2428 = vmatpush.bf16.msra.mxu0 %v2108
        %2429 = vmatpush.bf16.msra.mxu0 %v2106
        %2430 = vmatmul.bf16.gmra.mxu0 %v1576
        %v2431 = vpop.f32.mrf.mxu0
        %v2432 = vadd.f32 %v2418, %v2431
        %v2433 = vpop.f32.mrf.mxu0
        %v2434 = vadd.f32 %v2420, %v2433
        %2435 = vdwg.mxu0
        %2436 = vmatpush.bf16.msra.mxu0 %v2136
        %2437 = vmatpush.bf16.msra.mxu0 %v2134
        %2438 = vmatpush.bf16.msra.mxu0 %v2132
        %2439 = vmatpush.bf16.msra.mxu0 %v2130
        %2440 = vmatpush.bf16.msra.mxu0 %v2128
        %2441 = vmatpush.bf16.msra.mxu0 %v2126
        %2442 = vmatpush.bf16.msra.mxu0 %v2124
        %2443 = vmatpush.bf16.msra.mxu0 %v2122
        %2444 = vmatmul.bf16.gmra.mxu0 %v1577
        %v2445 = vpop.f32.mrf.mxu0
        %v2446 = vadd.f32 %v2432, %v2445
        %v2447 = vpop.f32.mrf.mxu0
        %v2448 = vadd.f32 %v2434, %v2447
        %2449 = vdwg.mxu0
        %2450 = vmatpush.bf16.msra.mxu0 %v2152
        %2451 = vmatpush.bf16.msra.mxu0 %v2150
        %2452 = vmatpush.bf16.msra.mxu0 %v2148
        %2453 = vmatpush.bf16.msra.mxu0 %v2146
        %2454 = vmatpush.bf16.msra.mxu0 %v2144
        %2455 = vmatpush.bf16.msra.mxu0 %v2142
        %2456 = vmatpush.bf16.msra.mxu0 %v2140
        %2457 = vmatpush.bf16.msra.mxu0 %v2138
        %2458 = vmatmul.bf16.gmra.mxu0 %v1578
        %v2459 = vpop.f32.mrf.mxu0
        %v2460 = vadd.f32 %v2446, %v2459
        %v2461 = vpop.f32.mrf.mxu0
        %v2462 = vadd.f32 %v2448, %v2461
        %2463 = vdwg.mxu0
        %2464 = vmatpush.bf16.msra.mxu0 %v2168
        %2465 = vmatpush.bf16.msra.mxu0 %v2166
        %2466 = vmatpush.bf16.msra.mxu0 %v2164
        %2467 = vmatpush.bf16.msra.mxu0 %v2162
        %2468 = vmatpush.bf16.msra.mxu0 %v2160
        %2469 = vmatpush.bf16.msra.mxu0 %v2158
        %2470 = vmatpush.bf16.msra.mxu0 %v2156
        %2471 = vmatpush.bf16.msra.mxu0 %v2154
        %2472 = vmatmul.bf16.gmra.mxu0 %v1579
        %v2473 = vpop.f32.mrf.mxu0
        %v2474 = vadd.f32 %v2460, %v2473
        %v2475 = vpop.f32.mrf.mxu0
        %v2476 = vadd.f32 %v2462, %v2475
        %2477 = vdwg.mxu0
        %2478 = vmatpush.bf16.msra.mxu0 %v2184
        %2479 = vmatpush.bf16.msra.mxu0 %v2182
        %2480 = vmatpush.bf16.msra.mxu0 %v2180
        %2481 = vmatpush.bf16.msra.mxu0 %v2178
        %2482 = vmatpush.bf16.msra.mxu0 %v2176
        %2483 = vmatpush.bf16.msra.mxu0 %v2174
        %2484 = vmatpush.bf16.msra.mxu0 %v2172
        %2485 = vmatpush.bf16.msra.mxu0 %v2170
        %2486 = vmatmul.bf16.gmra.mxu0 %v1580
        %v2487 = vpop.f32.mrf.mxu0
        %v2488 = vadd.f32 %v2474, %v2487
        %v2489 = vpop.f32.mrf.mxu0
        %v2490 = vadd.f32 %v2476, %v2489
        %2491 = vdwg.mxu0
        %2492 = vmatpush.bf16.msra.mxu0 %v2200
        %2493 = vmatpush.bf16.msra.mxu0 %v2198
        %2494 = vmatpush.bf16.msra.mxu0 %v2196
        %2495 = vmatpush.bf16.msra.mxu0 %v2194
        %2496 = vmatpush.bf16.msra.mxu0 %v2192
        %2497 = vmatpush.bf16.msra.mxu0 %v2190
        %2498 = vmatpush.bf16.msra.mxu0 %v2188
        %2499 = vmatpush.bf16.msra.mxu0 %v2186
        %2500 = vmatmul.bf16.gmra.mxu0 %v1581
        %v2501 = vpop.f32.mrf.mxu0
        %v2502 = vadd.f32 %v2488, %v2501
        %v2503 = vpop.f32.mrf.mxu0
        %v2504 = vadd.f32 %v2490, %v2503
        %2505 = vdwg.mxu0
        %2506 = vmatpush.bf16.msra.mxu0 %v2216
        %2507 = vmatpush.bf16.msra.mxu0 %v2214
        %2508 = vmatpush.bf16.msra.mxu0 %v2212
        %2509 = vmatpush.bf16.msra.mxu0 %v2210
        %2510 = vmatpush.bf16.msra.mxu0 %v2208
        %2511 = vmatpush.bf16.msra.mxu0 %v2206
        %2512 = vmatpush.bf16.msra.mxu0 %v2204
        %2513 = vmatpush.bf16.msra.mxu0 %v2202
        %2514 = vmatmul.bf16.gmra.mxu0 %v1582
        %v2515 = vpop.f32.mrf.mxu0
        %v2516 = vadd.f32 %v2502, %v2515
        %v2517 = vpop.f32.mrf.mxu0
        %v2518 = vadd.f32 %v2504, %v2517
        %2519 = vdwg.mxu0
        %2520 = vmatpush.bf16.msra.mxu0 %v2232
        %2521 = vmatpush.bf16.msra.mxu0 %v2230
        %2522 = vmatpush.bf16.msra.mxu0 %v2228
        %2523 = vmatpush.bf16.msra.mxu0 %v2226
        %2524 = vmatpush.bf16.msra.mxu0 %v2224
        %2525 = vmatpush.bf16.msra.mxu0 %v2222
        %2526 = vmatpush.bf16.msra.mxu0 %v2220
        %2527 = vmatpush.bf16.msra.mxu0 %v2218
        %2528 = vmatmul.bf16.gmra.mxu0 %v1583
        %v2529 = vpop.f32.mrf.mxu0
        %v2530 = vadd.f32 %v2516, %v2529
        %v2531 = vpop.f32.mrf.mxu0
        %v2532 = vadd.f32 %v2518, %v2531
        %2533 = vdwg.mxu0
        %2534 = vmatpush.bf16.msra.mxu0 %v2089
        %2535 = vmatpush.bf16.msra.mxu0 %v2087
        %2536 = vmatpush.bf16.msra.mxu0 %v2085
        %2537 = vmatpush.bf16.msra.mxu0 %v2083
        %2538 = vmatpush.bf16.msra.mxu0 %v2081
        %2539 = vmatpush.bf16.msra.mxu0 %v2079
        %2540 = vmatpush.bf16.msra.mxu0 %v2077
        %2541 = vmatpush.bf16.msra.mxu0 %v2075
        %2542 = vmatmul.bf16.gmra.mxu0 %v1574
        %v2543 = vpop.f32.mrf.mxu0
        %v2544 = vadd.f32 %v1541, %v2543
        %v2545 = vpop.f32.mrf.mxu0
        %v2546 = vadd.f32 %v1541, %v2545
        %2547 = vdwg.mxu0
        %2548 = vmatpush.bf16.msra.mxu0 %v2105
        %2549 = vmatpush.bf16.msra.mxu0 %v2103
        %2550 = vmatpush.bf16.msra.mxu0 %v2101
        %2551 = vmatpush.bf16.msra.mxu0 %v2099
        %2552 = vmatpush.bf16.msra.mxu0 %v2097
        %2553 = vmatpush.bf16.msra.mxu0 %v2095
        %2554 = vmatpush.bf16.msra.mxu0 %v2093
        %2555 = vmatpush.bf16.msra.mxu0 %v2091
        %2556 = vmatmul.bf16.gmra.mxu0 %v1575
        %v2557 = vpop.f32.mrf.mxu0
        %v2558 = vadd.f32 %v2544, %v2557
        %v2559 = vpop.f32.mrf.mxu0
        %v2560 = vadd.f32 %v2546, %v2559
        %2561 = vdwg.mxu0
        %2562 = vmatpush.bf16.msra.mxu0 %v2121
        %2563 = vmatpush.bf16.msra.mxu0 %v2119
        %2564 = vmatpush.bf16.msra.mxu0 %v2117
        %2565 = vmatpush.bf16.msra.mxu0 %v2115
        %2566 = vmatpush.bf16.msra.mxu0 %v2113
        %2567 = vmatpush.bf16.msra.mxu0 %v2111
        %2568 = vmatpush.bf16.msra.mxu0 %v2109
        %2569 = vmatpush.bf16.msra.mxu0 %v2107
        %2570 = vmatmul.bf16.gmra.mxu0 %v1576
        %v2571 = vpop.f32.mrf.mxu0
        %v2572 = vadd.f32 %v2558, %v2571
        %v2573 = vpop.f32.mrf.mxu0
        %v2574 = vadd.f32 %v2560, %v2573
        %2575 = vdwg.mxu0
        %2576 = vmatpush.bf16.msra.mxu0 %v2137
        %2577 = vmatpush.bf16.msra.mxu0 %v2135
        %2578 = vmatpush.bf16.msra.mxu0 %v2133
        %2579 = vmatpush.bf16.msra.mxu0 %v2131
        %2580 = vmatpush.bf16.msra.mxu0 %v2129
        %2581 = vmatpush.bf16.msra.mxu0 %v2127
        %2582 = vmatpush.bf16.msra.mxu0 %v2125
        %2583 = vmatpush.bf16.msra.mxu0 %v2123
        %2584 = vmatmul.bf16.gmra.mxu0 %v1577
        %v2585 = vpop.f32.mrf.mxu0
        %v2586 = vadd.f32 %v2572, %v2585
        %v2587 = vpop.f32.mrf.mxu0
        %v2588 = vadd.f32 %v2574, %v2587
        %2589 = vdwg.mxu0
        %2590 = vmatpush.bf16.msra.mxu0 %v2153
        %2591 = vmatpush.bf16.msra.mxu0 %v2151
        %2592 = vmatpush.bf16.msra.mxu0 %v2149
        %2593 = vmatpush.bf16.msra.mxu0 %v2147
        %2594 = vmatpush.bf16.msra.mxu0 %v2145
        %2595 = vmatpush.bf16.msra.mxu0 %v2143
        %2596 = vmatpush.bf16.msra.mxu0 %v2141
        %2597 = vmatpush.bf16.msra.mxu0 %v2139
        %2598 = vmatmul.bf16.gmra.mxu0 %v1578
        %v2599 = vpop.f32.mrf.mxu0
        %v2600 = vadd.f32 %v2586, %v2599
        %v2601 = vpop.f32.mrf.mxu0
        %v2602 = vadd.f32 %v2588, %v2601
        %2603 = vdwg.mxu0
        %2604 = vmatpush.bf16.msra.mxu0 %v2169
        %2605 = vmatpush.bf16.msra.mxu0 %v2167
        %2606 = vmatpush.bf16.msra.mxu0 %v2165
        %2607 = vmatpush.bf16.msra.mxu0 %v2163
        %2608 = vmatpush.bf16.msra.mxu0 %v2161
        %2609 = vmatpush.bf16.msra.mxu0 %v2159
        %2610 = vmatpush.bf16.msra.mxu0 %v2157
        %2611 = vmatpush.bf16.msra.mxu0 %v2155
        %2612 = vmatmul.bf16.gmra.mxu0 %v1579
        %v2613 = vpop.f32.mrf.mxu0
        %v2614 = vadd.f32 %v2600, %v2613
        %v2615 = vpop.f32.mrf.mxu0
        %v2616 = vadd.f32 %v2602, %v2615
        %2617 = vdwg.mxu0
        %2618 = vmatpush.bf16.msra.mxu0 %v2185
        %2619 = vmatpush.bf16.msra.mxu0 %v2183
        %2620 = vmatpush.bf16.msra.mxu0 %v2181
        %2621 = vmatpush.bf16.msra.mxu0 %v2179
        %2622 = vmatpush.bf16.msra.mxu0 %v2177
        %2623 = vmatpush.bf16.msra.mxu0 %v2175
        %2624 = vmatpush.bf16.msra.mxu0 %v2173
        %2625 = vmatpush.bf16.msra.mxu0 %v2171
        %2626 = vmatmul.bf16.gmra.mxu0 %v1580
        %v2627 = vpop.f32.mrf.mxu0
        %v2628 = vadd.f32 %v2614, %v2627
        %v2629 = vpop.f32.mrf.mxu0
        %v2630 = vadd.f32 %v2616, %v2629
        %2631 = vdwg.mxu0
        %2632 = vmatpush.bf16.msra.mxu0 %v2201
        %2633 = vmatpush.bf16.msra.mxu0 %v2199
        %2634 = vmatpush.bf16.msra.mxu0 %v2197
        %2635 = vmatpush.bf16.msra.mxu0 %v2195
        %2636 = vmatpush.bf16.msra.mxu0 %v2193
        %2637 = vmatpush.bf16.msra.mxu0 %v2191
        %2638 = vmatpush.bf16.msra.mxu0 %v2189
        %2639 = vmatpush.bf16.msra.mxu0 %v2187
        %2640 = vmatmul.bf16.gmra.mxu0 %v1581
        %v2641 = vpop.f32.mrf.mxu0
        %v2642 = vadd.f32 %v2628, %v2641
        %v2643 = vpop.f32.mrf.mxu0
        %v2644 = vadd.f32 %v2630, %v2643
        %2645 = vdwg.mxu0
        %2646 = vmatpush.bf16.msra.mxu0 %v2217
        %2647 = vmatpush.bf16.msra.mxu0 %v2215
        %2648 = vmatpush.bf16.msra.mxu0 %v2213
        %2649 = vmatpush.bf16.msra.mxu0 %v2211
        %2650 = vmatpush.bf16.msra.mxu0 %v2209
        %2651 = vmatpush.bf16.msra.mxu0 %v2207
        %2652 = vmatpush.bf16.msra.mxu0 %v2205
        %2653 = vmatpush.bf16.msra.mxu0 %v2203
        %2654 = vmatmul.bf16.gmra.mxu0 %v1582
        %v2655 = vpop.f32.mrf.mxu0
        %v2656 = vadd.f32 %v2642, %v2655
        %v2657 = vpop.f32.mrf.mxu0
        %v2658 = vadd.f32 %v2644, %v2657
        %2659 = vdwg.mxu0
        %2660 = vmatpush.bf16.msra.mxu0 %v2233
        %2661 = vmatpush.bf16.msra.mxu0 %v2231
        %2662 = vmatpush.bf16.msra.mxu0 %v2229
        %2663 = vmatpush.bf16.msra.mxu0 %v2227
        %2664 = vmatpush.bf16.msra.mxu0 %v2225
        %2665 = vmatpush.bf16.msra.mxu0 %v2223
        %2666 = vmatpush.bf16.msra.mxu0 %v2221
        %2667 = vmatpush.bf16.msra.mxu0 %v2219
        %2668 = vmatmul.bf16.gmra.mxu0 %v1583
        %v2669 = vpop.f32.mrf.mxu0
        %v2670 = vadd.f32 %v2656, %v2669
        %v2671 = vpop.f32.mrf.mxu0
        %v2672 = vadd.f32 %v2658, %v2671
        %2673 = vdwg.mxu0
        %v2674 = vmax.f32 %v2530, 0.0
        %v2675 = vmax.f32 %v2670, 0.0
        %v2676 = vmax.f32 %v2532, 0.0
        %v2677 = vmax.f32 %v2672, 0.0
        %v2678 = vpack.c.bf16 %v2675, %v2674
        %v2679 = vpack.c.bf16 %v2677, %v2676
        %v2682 = vrot.slane %v2678, 7
        %v2683 = vrot.slane %v2682, 4
        %v2684 = vrot.slane %v2679, 7
        %v2685 = vsel %vm555, %v2683, %v2684
        %2688 = vst [vmem:[#allocation3] sm:$0xee] %v2682
        %2689 = vst [vmem:[#allocation3 + $0x28] sm:$0xff] %v2685
        %v2691 = vshrl.u32 %v2678, 16
        %v2693 = vrot.slane %v2691, 7
        %v2694 = vshll.u32 %v2678, 16
        %v2696 = vor.u32 %v2693, %v2694
        %v2697 = vrot.slane %v2693, 4
        %v2699 = vshrl.u32 %v2679, 16
        %v2701 = vrot.slane %v2699, 7
        %v2702 = vshll.u32 %v2679, 16
        %v2704 = vor.u32 %v2701, %v2702
        %v2705 = vsel %vm565, %v2697, %v2704
        %v2708 = vld [vmem:[#allocation3 + $0x8] sm:$0xff]
        %v2709 = vsel %vm1334, %v2696, %v2708
        %2710 = vst [vmem:[#allocation3 + $0x8] sm:$0xff] %v2709
        %2711 = vst [vmem:[#allocation3 + $0x30] sm:$0xff] %v2705
        %2712 = vst [vmem:[#allocation3 + $0x10] sm:$0xff] %v2678
        %2713 = vst [vmem:[#allocation3 + $0x38] sm:$0xff] %v2679
        %v2714 = vrot.slane %v2691, 4
        %v2715 = vrot.slane %v2694, 5
        %v2716 = vor.u32 %v2714, %v2715
        %v2717 = vrot.slane %v2716, 4
        %v2718 = vrot.slane %v2702, 5
        %v2719 = vsel %vm595, %v2717, %v2718
        %v2720 = vrot.slane %v2699, 4
        %v2721 = vor.u32 %v2720, %v2718
        %v2722 = vrot.slane %v2721, 4
        %2725 = vst [vmem:[#allocation3 + $0x18] sm:$0xff] %v2719
        %v2726 = vld [vmem:[#allocation3 + $0x40] sm:$0xff]
        %v2727 = vsel %vm1355, %v2722, %v2726
        %2728 = vst [vmem:[#allocation3 + $0x40] sm:$0xff] %v2727
        %v2729 = vrot.slane %v2678, 5
        %v2730 = vrot.slane %v2729, 4
        %v2731 = vrot.slane %v2679, 5
        %v2732 = vsel %vm614, %v2730, %v2731
        %v2733 = vrot.slane %v2731, 4
        %2736 = vst [vmem:[#allocation3 + $0x20] sm:$0xff] %v2732
        %2737 = vst [vmem:[#allocation3 + $0x48] sm:$0x77] %v2733
        %v2738 = vld [vmem:[#allocation3] sm:$0xff]
        %v2739 = vld [vmem:[#allocation3 + $0x8] sm:$0xff]
        %v2740 = vld [vmem:[#allocation3 + $0x10] sm:$0xff]
        %v2741 = vld [vmem:[#allocation3 + $0x18] sm:$0xff]
        %v2742 = vld [vmem:[#allocation3 + $0x20] sm:$0xff]
        %v2743 = vld [vmem:[#allocation3 + $0x28] sm:$0xff]
        %v2744 = vld [vmem:[#allocation3 + $0x30] sm:$0xff]
        %v2745 = vld [vmem:[#allocation3 + $0x38] sm:$0xff]
        %v2746 = vld [vmem:[#allocation3 + $0x40] sm:$0xff]
        %v2747 = vld [vmem:[#allocation3 + $0x48] sm:$0xff]
        %v2748 = vld [vmem:[#allocation8] sm:$0xff]
        %v2749 = vld [vmem:[#allocation8 + $0x8] sm:$0xff]
        %v2750 = vld [vmem:[#allocation8 + $0x10] sm:$0xff]
        %v2751 = vld [vmem:[#allocation8 + $0x18] sm:$0xff]
        %v2752 = vld [vmem:[#allocation8 + $0x20] sm:$0xff]
        %v2753 = vld [vmem:[#allocation8 + $0x28] sm:$0xff]
        %v2754 = vld [vmem:[#allocation8 + $0x30] sm:$0xff]
        %v2755 = vld [vmem:[#allocation8 + $0x38] sm:$0xff]
        %v2756 = vld [vmem:[#allocation8 + $0x40] sm:$0xff]
        %v2757 = vld [vmem:[#allocation8 + $0x48] sm:$0xff]
        %v2758 = vld [vmem:[#allocation8 + $0x50] sm:$0xff]
        %v2759 = vld [vmem:[#allocation8 + $0x58] sm:$0xff]
        %v2760 = vld [vmem:[#allocation8 + $0x60] sm:$0xff]
        %v2761 = vld [vmem:[#allocation8 + $0x68] sm:$0xff]
        %v2762 = vld [vmem:[#allocation8 + $0x70] sm:$0xff]
        %v2763 = vld [vmem:[#allocation8 + $0x78] sm:$0xff]
        %v2764 = vld [vmem:[#allocation8 + $0x80] sm:$0xff]
        %v2765 = vld [vmem:[#allocation8 + $0x88] sm:$0xff]
        %v2766 = vld [vmem:[#allocation8 + $0x90] sm:$0xff]
        %v2767 = vld [vmem:[#allocation8 + $0x98] sm:$0xff]
        %v2768 = vld [vmem:[#allocation8 + $0xa0] sm:$0xff]
        %v2769 = vld [vmem:[#allocation8 + $0xa8] sm:$0xff]
        %v2770 = vld [vmem:[#allocation8 + $0xb0] sm:$0xff]
        %v2771 = vld [vmem:[#allocation8 + $0xb8] sm:$0xff]
        %v2772 = vld [vmem:[#allocation8 + $0xc0] sm:$0xff]
        %v2773 = vld [vmem:[#allocation8 + $0xc8] sm:$0xff]
        %v2774 = vld [vmem:[#allocation8 + $0xd0] sm:$0xff]
        %v2775 = vld [vmem:[#allocation8 + $0xd8] sm:$0xff]
        %v2776 = vld [vmem:[#allocation8 + $0xe0] sm:$0xff]
        %v2777 = vld [vmem:[#allocation8 + $0xe8] sm:$0xff]
        %v2778 = vld [vmem:[#allocation8 + $0xf0] sm:$0xff]
        %v2779 = vld [vmem:[#allocation8 + $0xf8] sm:$0xff]
        %v2780 = vld [vmem:[#allocation8 + $0x100] sm:$0xff]
        %v2781 = vld [vmem:[#allocation8 + $0x108] sm:$0xff]
        %v2782 = vld [vmem:[#allocation8 + $0x110] sm:$0xff]
        %v2783 = vld [vmem:[#allocation8 + $0x118] sm:$0xff]
        %v2784 = vld [vmem:[#allocation8 + $0x120] sm:$0xff]
        %v2785 = vld [vmem:[#allocation8 + $0x128] sm:$0xff]
        %v2786 = vld [vmem:[#allocation8 + $0x130] sm:$0xff]
        %v2787 = vld [vmem:[#allocation8 + $0x138] sm:$0xff]
        %v2788 = vld [vmem:[#allocation8 + $0x140] sm:$0xff]
        %v2789 = vld [vmem:[#allocation8 + $0x148] sm:$0xff]
        %v2790 = vld [vmem:[#allocation8 + $0x150] sm:$0xff]
        %v2791 = vld [vmem:[#allocation8 + $0x158] sm:$0xff]
        %v2792 = vld [vmem:[#allocation8 + $0x160] sm:$0xff]
        %v2793 = vld [vmem:[#allocation8 + $0x168] sm:$0xff]
        %v2794 = vld [vmem:[#allocation8 + $0x170] sm:$0xff]
        %v2795 = vld [vmem:[#allocation8 + $0x178] sm:$0xff]
        %v2796 = vld [vmem:[#allocation8 + $0x180] sm:$0xff]
        %v2797 = vld [vmem:[#allocation8 + $0x188] sm:$0xff]
        %v2798 = vld [vmem:[#allocation8 + $0x190] sm:$0xff]
        %v2799 = vld [vmem:[#allocation8 + $0x198] sm:$0xff]
        %v2800 = vld [vmem:[#allocation8 + $0x1a0] sm:$0xff]
        %v2801 = vld [vmem:[#allocation8 + $0x1a8] sm:$0xff]
        %v2802 = vld [vmem:[#allocation8 + $0x1b0] sm:$0xff]
        %v2803 = vld [vmem:[#allocation8 + $0x1b8] sm:$0xff]
        %v2804 = vld [vmem:[#allocation8 + $0x1c0] sm:$0xff]
        %v2805 = vld [vmem:[#allocation8 + $0x1c8] sm:$0xff]
        %v2806 = vld [vmem:[#allocation8 + $0x1d0] sm:$0xff]
        %v2807 = vld [vmem:[#allocation8 + $0x1d8] sm:$0xff]
        %v2808 = vld [vmem:[#allocation8 + $0x1e0] sm:$0xff]
        %v2809 = vld [vmem:[#allocation8 + $0x1e8] sm:$0xff]
        %v2810 = vld [vmem:[#allocation8 + $0x1f0] sm:$0xff]
        %v2811 = vld [vmem:[#allocation8 + $0x1f8] sm:$0xff]
        %v2812 = vld [vmem:[#allocation8 + $0x200] sm:$0xff]
        %v2813 = vld [vmem:[#allocation8 + $0x208] sm:$0xff]
        %v2814 = vld [vmem:[#allocation8 + $0x210] sm:$0xff]
        %v2815 = vld [vmem:[#allocation8 + $0x218] sm:$0xff]
        %v2816 = vld [vmem:[#allocation8 + $0x220] sm:$0xff]
        %v2817 = vld [vmem:[#allocation8 + $0x228] sm:$0xff]
        %v2818 = vld [vmem:[#allocation8 + $0x230] sm:$0xff]
        %v2819 = vld [vmem:[#allocation8 + $0x238] sm:$0xff]
        %v2820 = vld [vmem:[#allocation8 + $0x240] sm:$0xff]
        %v2821 = vld [vmem:[#allocation8 + $0x248] sm:$0xff]
        %v2822 = vld [vmem:[#allocation8 + $0x250] sm:$0xff]
        %v2823 = vld [vmem:[#allocation8 + $0x258] sm:$0xff]
        %v2824 = vld [vmem:[#allocation8 + $0x260] sm:$0xff]
        %v2825 = vld [vmem:[#allocation8 + $0x268] sm:$0xff]
        %v2826 = vld [vmem:[#allocation8 + $0x270] sm:$0xff]
        %v2827 = vld [vmem:[#allocation8 + $0x278] sm:$0xff]
        %v2828 = vld [vmem:[#allocation8 + $0x280] sm:$0xff]
        %v2829 = vld [vmem:[#allocation8 + $0x288] sm:$0xff]
        %v2830 = vld [vmem:[#allocation8 + $0x290] sm:$0xff]
        %v2831 = vld [vmem:[#allocation8 + $0x298] sm:$0xff]
        %v2832 = vld [vmem:[#allocation8 + $0x2a0] sm:$0xff]
        %v2833 = vld [vmem:[#allocation8 + $0x2a8] sm:$0xff]
        %v2834 = vld [vmem:[#allocation8 + $0x2b0] sm:$0xff]
        %v2835 = vld [vmem:[#allocation8 + $0x2b8] sm:$0xff]
        %v2836 = vld [vmem:[#allocation8 + $0x2c0] sm:$0xff]
        %v2837 = vld [vmem:[#allocation8 + $0x2c8] sm:$0xff]
        %v2838 = vld [vmem:[#allocation8 + $0x2d0] sm:$0xff]
        %v2839 = vld [vmem:[#allocation8 + $0x2d8] sm:$0xff]
        %v2840 = vld [vmem:[#allocation8 + $0x2e0] sm:$0xff]
        %v2841 = vld [vmem:[#allocation8 + $0x2e8] sm:$0xff]
        %v2842 = vld [vmem:[#allocation8 + $0x2f0] sm:$0xff]
        %v2843 = vld [vmem:[#allocation8 + $0x2f8] sm:$0xff]
        %v2844 = vld [vmem:[#allocation8 + $0x300] sm:$0xff]
        %v2845 = vld [vmem:[#allocation8 + $0x308] sm:$0xff]
        %v2846 = vld [vmem:[#allocation8 + $0x310] sm:$0xff]
        %v2847 = vld [vmem:[#allocation8 + $0x318] sm:$0xff]
        %v2848 = vld [vmem:[#allocation8 + $0x320] sm:$0xff]
        %v2849 = vld [vmem:[#allocation8 + $0x328] sm:$0xff]
        %v2850 = vld [vmem:[#allocation8 + $0x330] sm:$0xff]
        %v2851 = vld [vmem:[#allocation8 + $0x338] sm:$0xff]
        %v2852 = vld [vmem:[#allocation8 + $0x340] sm:$0xff]
        %v2853 = vld [vmem:[#allocation8 + $0x348] sm:$0xff]
        %v2854 = vld [vmem:[#allocation8 + $0x350] sm:$0xff]
        %v2855 = vld [vmem:[#allocation8 + $0x358] sm:$0xff]
        %v2856 = vld [vmem:[#allocation8 + $0x360] sm:$0xff]
        %v2857 = vld [vmem:[#allocation8 + $0x368] sm:$0xff]
        %v2858 = vld [vmem:[#allocation8 + $0x370] sm:$0xff]
        %v2859 = vld [vmem:[#allocation8 + $0x378] sm:$0xff]
        %v2860 = vld [vmem:[#allocation8 + $0x380] sm:$0xff]
        %v2861 = vld [vmem:[#allocation8 + $0x388] sm:$0xff]
        %v2862 = vld [vmem:[#allocation8 + $0x390] sm:$0xff]
        %v2863 = vld [vmem:[#allocation8 + $0x398] sm:$0xff]
        %v2864 = vld [vmem:[#allocation8 + $0x3a0] sm:$0xff]
        %v2865 = vld [vmem:[#allocation8 + $0x3a8] sm:$0xff]
        %v2866 = vld [vmem:[#allocation8 + $0x3b0] sm:$0xff]
        %v2867 = vld [vmem:[#allocation8 + $0x3b8] sm:$0xff]
        %v2868 = vld [vmem:[#allocation8 + $0x3c0] sm:$0xff]
        %v2869 = vld [vmem:[#allocation8 + $0x3c8] sm:$0xff]
        %v2870 = vld [vmem:[#allocation8 + $0x3d0] sm:$0xff]
        %v2871 = vld [vmem:[#allocation8 + $0x3d8] sm:$0xff]
        %v2872 = vld [vmem:[#allocation8 + $0x3e0] sm:$0xff]
        %v2873 = vld [vmem:[#allocation8 + $0x3e8] sm:$0xff]
        %v2874 = vld [vmem:[#allocation8 + $0x3f0] sm:$0xff]
        %v2875 = vld [vmem:[#allocation8 + $0x3f8] sm:$0xff]
        %v2876 = vld [vmem:[#allocation8 + $0x400] sm:$0xff]
        %v2877 = vld [vmem:[#allocation8 + $0x408] sm:$0xff]
        %v2878 = vld [vmem:[#allocation8 + $0x410] sm:$0xff]
        %v2879 = vld [vmem:[#allocation8 + $0x418] sm:$0xff]
        %v2880 = vld [vmem:[#allocation8 + $0x420] sm:$0xff]
        %v2881 = vld [vmem:[#allocation8 + $0x428] sm:$0xff]
        %v2882 = vld [vmem:[#allocation8 + $0x430] sm:$0xff]
        %v2883 = vld [vmem:[#allocation8 + $0x438] sm:$0xff]
        %v2884 = vld [vmem:[#allocation8 + $0x440] sm:$0xff]
        %v2885 = vld [vmem:[#allocation8 + $0x448] sm:$0xff]
        %v2886 = vld [vmem:[#allocation8 + $0x450] sm:$0xff]
        %v2887 = vld [vmem:[#allocation8 + $0x458] sm:$0xff]
        %v2888 = vld [vmem:[#allocation8 + $0x460] sm:$0xff]
        %v2889 = vld [vmem:[#allocation8 + $0x468] sm:$0xff]
        %v2890 = vld [vmem:[#allocation8 + $0x470] sm:$0xff]
        %v2891 = vld [vmem:[#allocation8 + $0x478] sm:$0xff]
        %v2892 = vld [vmem:[#allocation8 + $0x480] sm:$0xff]
        %v2893 = vld [vmem:[#allocation8 + $0x488] sm:$0xff]
        %v2894 = vld [vmem:[#allocation8 + $0x490] sm:$0xff]
        %v2895 = vld [vmem:[#allocation8 + $0x498] sm:$0xff]
        %v2896 = vld [vmem:[#allocation8 + $0x4a0] sm:$0xff]
        %v2897 = vld [vmem:[#allocation8 + $0x4a8] sm:$0xff]
        %v2898 = vld [vmem:[#allocation8 + $0x4b0] sm:$0xff]
        %v2899 = vld [vmem:[#allocation8 + $0x4b8] sm:$0xff]
        %v2900 = vld [vmem:[#allocation8 + $0x4c0] sm:$0xff]
        %v2901 = vld [vmem:[#allocation8 + $0x4c8] sm:$0xff]
        %v2902 = vld [vmem:[#allocation8 + $0x4d0] sm:$0xff]
        %v2903 = vld [vmem:[#allocation8 + $0x4d8] sm:$0xff]
        %v2904 = vld [vmem:[#allocation8 + $0x4e0] sm:$0xff]
        %v2905 = vld [vmem:[#allocation8 + $0x4e8] sm:$0xff]
        %v2906 = vld [vmem:[#allocation8 + $0x4f0] sm:$0xff]
        %v2907 = vld [vmem:[#allocation8 + $0x4f8] sm:$0xff]
        %v2908 = vld [vmem:[%s6] sm:$0x3]
        %v2910 = vperm.slane %v2908, 0
        %v2911 = vperm.slane %v2908, 1
        %v2924 = vunpack.c.l.b16 %v2738
        %v2925 = vunpack.c.h.b16 %v2738
        %v2926 = vunpack.c.l.b16 %v2739
        %v2927 = vunpack.c.h.b16 %v2739
        %v2928 = vunpack.c.l.b16 %v2740
        %v2929 = vunpack.c.h.b16 %v2740
        %v2930 = vunpack.c.l.b16 %v2741
        %v2931 = vunpack.c.h.b16 %v2741
        %v2932 = vunpack.c.l.b16 %v2742
        %v2933 = vunpack.c.h.b16 %v2742
        %v2934 = vunpack.c.l.b16 %v2743
        %v2935 = vunpack.c.h.b16 %v2743
        %v2936 = vunpack.c.l.b16 %v2744
        %v2937 = vunpack.c.h.b16 %v2744
        %v2938 = vunpack.c.l.b16 %v2745
        %v2939 = vunpack.c.h.b16 %v2745
        %v2940 = vunpack.c.l.b16 %v2746
        %v2941 = vunpack.c.h.b16 %v2746
        %v2942 = vunpack.c.l.b16 %v2747
        %v2943 = vunpack.c.h.b16 %v2747
        %v2944 = vpack.c.b16 %v2934, %v2924
        %v2945 = vpack.c.b16 %v2935, %v2925
        %v2946 = vpack.c.b16 %v2936, %v2926
        %v2947 = vpack.c.b16 %v2937, %v2927
        %v2948 = vpack.c.b16 %v2938, %v2928
        %v2949 = vpack.c.b16 %v2939, %v2929
        %v2950 = vpack.c.b16 %v2940, %v2930
        %v2951 = vpack.c.b16 %v2941, %v2931
        %v2952 = vpack.c.b16 %v2942, %v2932
        %v2953 = vpack.c.b16 %v2943, %v2933
        %v3124 = vunpack.c.l.b16 %v2748
        %v3125 = vunpack.c.h.b16 %v2748
        %v3126 = vunpack.c.l.b16 %v2749
        %v3127 = vunpack.c.h.b16 %v2749
        %v3128 = vunpack.c.l.b16 %v2750
        %v3129 = vunpack.c.h.b16 %v2750
        %v3130 = vunpack.c.l.b16 %v2751
        %v3131 = vunpack.c.h.b16 %v2751
        %v3132 = vunpack.c.l.b16 %v2752
        %v3133 = vunpack.c.h.b16 %v2752
        %v3134 = vunpack.c.l.b16 %v2753
        %v3135 = vunpack.c.h.b16 %v2753
        %v3136 = vunpack.c.l.b16 %v2754
        %v3137 = vunpack.c.h.b16 %v2754
        %v3138 = vunpack.c.l.b16 %v2755
        %v3139 = vunpack.c.h.b16 %v2755
        %v3140 = vunpack.c.l.b16 %v2756
        %v3141 = vunpack.c.h.b16 %v2756
        %v3142 = vunpack.c.l.b16 %v2757
        %v3143 = vunpack.c.h.b16 %v2757
        %v3144 = vunpack.c.l.b16 %v2758
        %v3145 = vunpack.c.h.b16 %v2758
        %v3146 = vunpack.c.l.b16 %v2759
        %v3147 = vunpack.c.h.b16 %v2759
        %v3148 = vunpack.c.l.b16 %v2760
        %v3149 = vunpack.c.h.b16 %v2760
        %v3150 = vunpack.c.l.b16 %v2761
        %v3151 = vunpack.c.h.b16 %v2761
        %v3152 = vunpack.c.l.b16 %v2762
        %v3153 = vunpack.c.h.b16 %v2762
        %v3154 = vunpack.c.l.b16 %v2763
        %v3155 = vunpack.c.h.b16 %v2763
        %v3156 = vunpack.c.l.b16 %v2764
        %v3157 = vunpack.c.h.b16 %v2764
        %v3158 = vunpack.c.l.b16 %v2765
        %v3159 = vunpack.c.h.b16 %v2765
        %v3160 = vunpack.c.l.b16 %v2766
        %v3161 = vunpack.c.h.b16 %v2766
        %v3162 = vunpack.c.l.b16 %v2767
        %v3163 = vunpack.c.h.b16 %v2767
        %v3164 = vunpack.c.l.b16 %v2768
        %v3165 = vunpack.c.h.b16 %v2768
        %v3166 = vunpack.c.l.b16 %v2769
        %v3167 = vunpack.c.h.b16 %v2769
        %v3168 = vunpack.c.l.b16 %v2770
        %v3169 = vunpack.c.h.b16 %v2770
        %v3170 = vunpack.c.l.b16 %v2771
        %v3171 = vunpack.c.h.b16 %v2771
        %v3172 = vunpack.c.l.b16 %v2772
        %v3173 = vunpack.c.h.b16 %v2772
        %v3174 = vunpack.c.l.b16 %v2773
        %v3175 = vunpack.c.h.b16 %v2773
        %v3176 = vunpack.c.l.b16 %v2774
        %v3177 = vunpack.c.h.b16 %v2774
        %v3178 = vunpack.c.l.b16 %v2775
        %v3179 = vunpack.c.h.b16 %v2775
        %v3180 = vunpack.c.l.b16 %v2776
        %v3181 = vunpack.c.h.b16 %v2776
        %v3182 = vunpack.c.l.b16 %v2777
        %v3183 = vunpack.c.h.b16 %v2777
        %v3184 = vunpack.c.l.b16 %v2778
        %v3185 = vunpack.c.h.b16 %v2778
        %v3186 = vunpack.c.l.b16 %v2779
        %v3187 = vunpack.c.h.b16 %v2779
        %v3188 = vunpack.c.l.b16 %v2780
        %v3189 = vunpack.c.h.b16 %v2780
        %v3190 = vunpack.c.l.b16 %v2781
        %v3191 = vunpack.c.h.b16 %v2781
        %v3192 = vunpack.c.l.b16 %v2782
        %v3193 = vunpack.c.h.b16 %v2782
        %v3194 = vunpack.c.l.b16 %v2783
        %v3195 = vunpack.c.h.b16 %v2783
        %v3196 = vunpack.c.l.b16 %v2784
        %v3197 = vunpack.c.h.b16 %v2784
        %v3198 = vunpack.c.l.b16 %v2785
        %v3199 = vunpack.c.h.b16 %v2785
        %v3200 = vunpack.c.l.b16 %v2786
        %v3201 = vunpack.c.h.b16 %v2786
        %v3202 = vunpack.c.l.b16 %v2787
        %v3203 = vunpack.c.h.b16 %v2787
        %v3204 = vunpack.c.l.b16 %v2788
        %v3205 = vunpack.c.h.b16 %v2788
        %v3206 = vunpack.c.l.b16 %v2789
        %v3207 = vunpack.c.h.b16 %v2789
        %v3208 = vunpack.c.l.b16 %v2790
        %v3209 = vunpack.c.h.b16 %v2790
        %v3210 = vunpack.c.l.b16 %v2791
        %v3211 = vunpack.c.h.b16 %v2791
        %v3212 = vunpack.c.l.b16 %v2792
        %v3213 = vunpack.c.h.b16 %v2792
        %v3214 = vunpack.c.l.b16 %v2793
        %v3215 = vunpack.c.h.b16 %v2793
        %v3216 = vunpack.c.l.b16 %v2794
        %v3217 = vunpack.c.h.b16 %v2794
        %v3218 = vunpack.c.l.b16 %v2795
        %v3219 = vunpack.c.h.b16 %v2795
        %v3220 = vunpack.c.l.b16 %v2796
        %v3221 = vunpack.c.h.b16 %v2796
        %v3222 = vunpack.c.l.b16 %v2797
        %v3223 = vunpack.c.h.b16 %v2797
        %v3224 = vunpack.c.l.b16 %v2798
        %v3225 = vunpack.c.h.b16 %v2798
        %v3226 = vunpack.c.l.b16 %v2799
        %v3227 = vunpack.c.h.b16 %v2799
        %v3228 = vunpack.c.l.b16 %v2800
        %v3229 = vunpack.c.h.b16 %v2800
        %v3230 = vunpack.c.l.b16 %v2801
        %v3231 = vunpack.c.h.b16 %v2801
        %v3232 = vunpack.c.l.b16 %v2802
        %v3233 = vunpack.c.h.b16 %v2802
        %v3234 = vunpack.c.l.b16 %v2803
        %v3235 = vunpack.c.h.b16 %v2803
        %v3236 = vunpack.c.l.b16 %v2804
        %v3237 = vunpack.c.h.b16 %v2804
        %v3238 = vunpack.c.l.b16 %v2805
        %v3239 = vunpack.c.h.b16 %v2805
        %v3240 = vunpack.c.l.b16 %v2806
        %v3241 = vunpack.c.h.b16 %v2806
        %v3242 = vunpack.c.l.b16 %v2807
        %v3243 = vunpack.c.h.b16 %v2807
        %v3244 = vunpack.c.l.b16 %v2808
        %v3245 = vunpack.c.h.b16 %v2808
        %v3246 = vunpack.c.l.b16 %v2809
        %v3247 = vunpack.c.h.b16 %v2809
        %v3248 = vunpack.c.l.b16 %v2810
        %v3249 = vunpack.c.h.b16 %v2810
        %v3250 = vunpack.c.l.b16 %v2811
        %v3251 = vunpack.c.h.b16 %v2811
        %v3252 = vunpack.c.l.b16 %v2812
        %v3253 = vunpack.c.h.b16 %v2812
        %v3254 = vunpack.c.l.b16 %v2813
        %v3255 = vunpack.c.h.b16 %v2813
        %v3256 = vunpack.c.l.b16 %v2814
        %v3257 = vunpack.c.h.b16 %v2814
        %v3258 = vunpack.c.l.b16 %v2815
        %v3259 = vunpack.c.h.b16 %v2815
        %v3260 = vunpack.c.l.b16 %v2816
        %v3261 = vunpack.c.h.b16 %v2816
        %v3262 = vunpack.c.l.b16 %v2817
        %v3263 = vunpack.c.h.b16 %v2817
        %v3264 = vunpack.c.l.b16 %v2818
        %v3265 = vunpack.c.h.b16 %v2818
        %v3266 = vunpack.c.l.b16 %v2819
        %v3267 = vunpack.c.h.b16 %v2819
        %v3268 = vunpack.c.l.b16 %v2820
        %v3269 = vunpack.c.h.b16 %v2820
        %v3270 = vunpack.c.l.b16 %v2821
        %v3271 = vunpack.c.h.b16 %v2821
        %v3272 = vunpack.c.l.b16 %v2822
        %v3273 = vunpack.c.h.b16 %v2822
        %v3274 = vunpack.c.l.b16 %v2823
        %v3275 = vunpack.c.h.b16 %v2823
        %v3276 = vunpack.c.l.b16 %v2824
        %v3277 = vunpack.c.h.b16 %v2824
        %v3278 = vunpack.c.l.b16 %v2825
        %v3279 = vunpack.c.h.b16 %v2825
        %v3280 = vunpack.c.l.b16 %v2826
        %v3281 = vunpack.c.h.b16 %v2826
        %v3282 = vunpack.c.l.b16 %v2827
        %v3283 = vunpack.c.h.b16 %v2827
        %v3284 = vunpack.c.l.b16 %v2828
        %v3285 = vunpack.c.h.b16 %v2828
        %v3286 = vunpack.c.l.b16 %v2829
        %v3287 = vunpack.c.h.b16 %v2829
        %v3288 = vunpack.c.l.b16 %v2830
        %v3289 = vunpack.c.h.b16 %v2830
        %v3290 = vunpack.c.l.b16 %v2831
        %v3291 = vunpack.c.h.b16 %v2831
        %v3292 = vunpack.c.l.b16 %v2832
        %v3293 = vunpack.c.h.b16 %v2832
        %v3294 = vunpack.c.l.b16 %v2833
        %v3295 = vunpack.c.h.b16 %v2833
        %v3296 = vunpack.c.l.b16 %v2834
        %v3297 = vunpack.c.h.b16 %v2834
        %v3298 = vunpack.c.l.b16 %v2835
        %v3299 = vunpack.c.h.b16 %v2835
        %v3300 = vunpack.c.l.b16 %v2836
        %v3301 = vunpack.c.h.b16 %v2836
        %v3302 = vunpack.c.l.b16 %v2837
        %v3303 = vunpack.c.h.b16 %v2837
        %v3304 = vunpack.c.l.b16 %v2838
        %v3305 = vunpack.c.h.b16 %v2838
        %v3306 = vunpack.c.l.b16 %v2839
        %v3307 = vunpack.c.h.b16 %v2839
        %v3308 = vunpack.c.l.b16 %v2840
        %v3309 = vunpack.c.h.b16 %v2840
        %v3310 = vunpack.c.l.b16 %v2841
        %v3311 = vunpack.c.h.b16 %v2841
        %v3312 = vunpack.c.l.b16 %v2842
        %v3313 = vunpack.c.h.b16 %v2842
        %v3314 = vunpack.c.l.b16 %v2843
        %v3315 = vunpack.c.h.b16 %v2843
        %v3316 = vunpack.c.l.b16 %v2844
        %v3317 = vunpack.c.h.b16 %v2844
        %v3318 = vunpack.c.l.b16 %v2845
        %v3319 = vunpack.c.h.b16 %v2845
        %v3320 = vunpack.c.l.b16 %v2846
        %v3321 = vunpack.c.h.b16 %v2846
        %v3322 = vunpack.c.l.b16 %v2847
        %v3323 = vunpack.c.h.b16 %v2847
        %v3324 = vunpack.c.l.b16 %v2848
        %v3325 = vunpack.c.h.b16 %v2848
        %v3326 = vunpack.c.l.b16 %v2849
        %v3327 = vunpack.c.h.b16 %v2849
        %v3328 = vunpack.c.l.b16 %v2850
        %v3329 = vunpack.c.h.b16 %v2850
        %v3330 = vunpack.c.l.b16 %v2851
        %v3331 = vunpack.c.h.b16 %v2851
        %v3332 = vunpack.c.l.b16 %v2852
        %v3333 = vunpack.c.h.b16 %v2852
        %v3334 = vunpack.c.l.b16 %v2853
        %v3335 = vunpack.c.h.b16 %v2853
        %v3336 = vunpack.c.l.b16 %v2854
        %v3337 = vunpack.c.h.b16 %v2854
        %v3338 = vunpack.c.l.b16 %v2855
        %v3339 = vunpack.c.h.b16 %v2855
        %v3340 = vunpack.c.l.b16 %v2856
        %v3341 = vunpack.c.h.b16 %v2856
        %v3342 = vunpack.c.l.b16 %v2857
        %v3343 = vunpack.c.h.b16 %v2857
        %v3344 = vunpack.c.l.b16 %v2858
        %v3345 = vunpack.c.h.b16 %v2858
        %v3346 = vunpack.c.l.b16 %v2859
        %v3347 = vunpack.c.h.b16 %v2859
        %v3348 = vunpack.c.l.b16 %v2860
        %v3349 = vunpack.c.h.b16 %v2860
        %v3350 = vunpack.c.l.b16 %v2861
        %v3351 = vunpack.c.h.b16 %v2861
        %v3352 = vunpack.c.l.b16 %v2862
        %v3353 = vunpack.c.h.b16 %v2862
        %v3354 = vunpack.c.l.b16 %v2863
        %v3355 = vunpack.c.h.b16 %v2863
        %v3356 = vunpack.c.l.b16 %v2864
        %v3357 = vunpack.c.h.b16 %v2864
        %v3358 = vunpack.c.l.b16 %v2865
        %v3359 = vunpack.c.h.b16 %v2865
        %v3360 = vunpack.c.l.b16 %v2866
        %v3361 = vunpack.c.h.b16 %v2866
        %v3362 = vunpack.c.l.b16 %v2867
        %v3363 = vunpack.c.h.b16 %v2867
        %v3364 = vunpack.c.l.b16 %v2868
        %v3365 = vunpack.c.h.b16 %v2868
        %v3366 = vunpack.c.l.b16 %v2869
        %v3367 = vunpack.c.h.b16 %v2869
        %v3368 = vunpack.c.l.b16 %v2870
        %v3369 = vunpack.c.h.b16 %v2870
        %v3370 = vunpack.c.l.b16 %v2871
        %v3371 = vunpack.c.h.b16 %v2871
        %v3372 = vunpack.c.l.b16 %v2872
        %v3373 = vunpack.c.h.b16 %v2872
        %v3374 = vunpack.c.l.b16 %v2873
        %v3375 = vunpack.c.h.b16 %v2873
        %v3376 = vunpack.c.l.b16 %v2874
        %v3377 = vunpack.c.h.b16 %v2874
        %v3378 = vunpack.c.l.b16 %v2875
        %v3379 = vunpack.c.h.b16 %v2875
        %v3380 = vunpack.c.l.b16 %v2876
        %v3381 = vunpack.c.h.b16 %v2876
        %v3382 = vunpack.c.l.b16 %v2877
        %v3383 = vunpack.c.h.b16 %v2877
        %v3384 = vunpack.c.l.b16 %v2878
        %v3385 = vunpack.c.h.b16 %v2878
        %v3386 = vunpack.c.l.b16 %v2879
        %v3387 = vunpack.c.h.b16 %v2879
        %v3388 = vunpack.c.l.b16 %v2880
        %v3389 = vunpack.c.h.b16 %v2880
        %v3390 = vunpack.c.l.b16 %v2881
        %v3391 = vunpack.c.h.b16 %v2881
        %v3392 = vunpack.c.l.b16 %v2882
        %v3393 = vunpack.c.h.b16 %v2882
        %v3394 = vunpack.c.l.b16 %v2883
        %v3395 = vunpack.c.h.b16 %v2883
        %v3396 = vunpack.c.l.b16 %v2884
        %v3397 = vunpack.c.h.b16 %v2884
        %v3398 = vunpack.c.l.b16 %v2885
        %v3399 = vunpack.c.h.b16 %v2885
        %v3400 = vunpack.c.l.b16 %v2886
        %v3401 = vunpack.c.h.b16 %v2886
        %v3402 = vunpack.c.l.b16 %v2887
        %v3403 = vunpack.c.h.b16 %v2887
        %v3404 = vunpack.c.l.b16 %v2888
        %v3405 = vunpack.c.h.b16 %v2888
        %v3406 = vunpack.c.l.b16 %v2889
        %v3407 = vunpack.c.h.b16 %v2889
        %v3408 = vunpack.c.l.b16 %v2890
        %v3409 = vunpack.c.h.b16 %v2890
        %v3410 = vunpack.c.l.b16 %v2891
        %v3411 = vunpack.c.h.b16 %v2891
        %v3412 = vunpack.c.l.b16 %v2892
        %v3413 = vunpack.c.h.b16 %v2892
        %v3414 = vunpack.c.l.b16 %v2893
        %v3415 = vunpack.c.h.b16 %v2893
        %v3416 = vunpack.c.l.b16 %v2894
        %v3417 = vunpack.c.h.b16 %v2894
        %v3418 = vunpack.c.l.b16 %v2895
        %v3419 = vunpack.c.h.b16 %v2895
        %v3420 = vunpack.c.l.b16 %v2896
        %v3421 = vunpack.c.h.b16 %v2896
        %v3422 = vunpack.c.l.b16 %v2897
        %v3423 = vunpack.c.h.b16 %v2897
        %v3424 = vunpack.c.l.b16 %v2898
        %v3425 = vunpack.c.h.b16 %v2898
        %v3426 = vunpack.c.l.b16 %v2899
        %v3427 = vunpack.c.h.b16 %v2899
        %v3428 = vunpack.c.l.b16 %v2900
        %v3429 = vunpack.c.h.b16 %v2900
        %v3430 = vunpack.c.l.b16 %v2901
        %v3431 = vunpack.c.h.b16 %v2901
        %v3432 = vunpack.c.l.b16 %v2902
        %v3433 = vunpack.c.h.b16 %v2902
        %v3434 = vunpack.c.l.b16 %v2903
        %v3435 = vunpack.c.h.b16 %v2903
        %v3436 = vunpack.c.l.b16 %v2904
        %v3437 = vunpack.c.h.b16 %v2904
        %v3438 = vunpack.c.l.b16 %v2905
        %v3439 = vunpack.c.h.b16 %v2905
        %v3440 = vunpack.c.l.b16 %v2906
        %v3441 = vunpack.c.h.b16 %v2906
        %v3442 = vunpack.c.l.b16 %v2907
        %v3443 = vunpack.c.h.b16 %v2907
        %v3444 = vpack.c.b16 %v3126, %v3124
        %v3445 = vpack.c.b16 %v3127, %v3125
        %v3446 = vpack.c.b16 %v3130, %v3128
        %v3447 = vpack.c.b16 %v3131, %v3129
        %v3448 = vpack.c.b16 %v3134, %v3132
        %v3449 = vpack.c.b16 %v3135, %v3133
        %v3450 = vpack.c.b16 %v3138, %v3136
        %v3451 = vpack.c.b16 %v3139, %v3137
        %v3452 = vpack.c.b16 %v3142, %v3140
        %v3453 = vpack.c.b16 %v3143, %v3141
        %v3454 = vpack.c.b16 %v3146, %v3144
        %v3455 = vpack.c.b16 %v3147, %v3145
        %v3456 = vpack.c.b16 %v3150, %v3148
        %v3457 = vpack.c.b16 %v3151, %v3149
        %v3458 = vpack.c.b16 %v3154, %v3152
        %v3459 = vpack.c.b16 %v3155, %v3153
        %v3460 = vpack.c.b16 %v3158, %v3156
        %v3461 = vpack.c.b16 %v3159, %v3157
        %v3462 = vpack.c.b16 %v3162, %v3160
        %v3463 = vpack.c.b16 %v3163, %v3161
        %v3464 = vpack.c.b16 %v3166, %v3164
        %v3465 = vpack.c.b16 %v3167, %v3165
        %v3466 = vpack.c.b16 %v3170, %v3168
        %v3467 = vpack.c.b16 %v3171, %v3169
        %v3468 = vpack.c.b16 %v3174, %v3172
        %v3469 = vpack.c.b16 %v3175, %v3173
        %v3470 = vpack.c.b16 %v3178, %v3176
        %v3471 = vpack.c.b16 %v3179, %v3177
        %v3472 = vpack.c.b16 %v3182, %v3180
        %v3473 = vpack.c.b16 %v3183, %v3181
        %v3474 = vpack.c.b16 %v3186, %v3184
        %v3475 = vpack.c.b16 %v3187, %v3185
        %v3476 = vpack.c.b16 %v3190, %v3188
        %v3477 = vpack.c.b16 %v3191, %v3189
        %v3478 = vpack.c.b16 %v3194, %v3192
        %v3479 = vpack.c.b16 %v3195, %v3193
        %v3480 = vpack.c.b16 %v3198, %v3196
        %v3481 = vpack.c.b16 %v3199, %v3197
        %v3482 = vpack.c.b16 %v3202, %v3200
        %v3483 = vpack.c.b16 %v3203, %v3201
        %v3484 = vpack.c.b16 %v3206, %v3204
        %v3485 = vpack.c.b16 %v3207, %v3205
        %v3486 = vpack.c.b16 %v3210, %v3208
        %v3487 = vpack.c.b16 %v3211, %v3209
        %v3488 = vpack.c.b16 %v3214, %v3212
        %v3489 = vpack.c.b16 %v3215, %v3213
        %v3490 = vpack.c.b16 %v3218, %v3216
        %v3491 = vpack.c.b16 %v3219, %v3217
        %v3492 = vpack.c.b16 %v3222, %v3220
        %v3493 = vpack.c.b16 %v3223, %v3221
        %v3494 = vpack.c.b16 %v3226, %v3224
        %v3495 = vpack.c.b16 %v3227, %v3225
        %v3496 = vpack.c.b16 %v3230, %v3228
        %v3497 = vpack.c.b16 %v3231, %v3229
        %v3498 = vpack.c.b16 %v3234, %v3232
        %v3499 = vpack.c.b16 %v3235, %v3233
        %v3500 = vpack.c.b16 %v3238, %v3236
        %v3501 = vpack.c.b16 %v3239, %v3237
        %v3502 = vpack.c.b16 %v3242, %v3240
        %v3503 = vpack.c.b16 %v3243, %v3241
        %v3504 = vpack.c.b16 %v3246, %v3244
        %v3505 = vpack.c.b16 %v3247, %v3245
        %v3506 = vpack.c.b16 %v3250, %v3248
        %v3507 = vpack.c.b16 %v3251, %v3249
        %v3508 = vpack.c.b16 %v3254, %v3252
        %v3509 = vpack.c.b16 %v3255, %v3253
        %v3510 = vpack.c.b16 %v3258, %v3256
        %v3511 = vpack.c.b16 %v3259, %v3257
        %v3512 = vpack.c.b16 %v3262, %v3260
        %v3513 = vpack.c.b16 %v3263, %v3261
        %v3514 = vpack.c.b16 %v3266, %v3264
        %v3515 = vpack.c.b16 %v3267, %v3265
        %v3516 = vpack.c.b16 %v3270, %v3268
        %v3517 = vpack.c.b16 %v3271, %v3269
        %v3518 = vpack.c.b16 %v3274, %v3272
        %v3519 = vpack.c.b16 %v3275, %v3273
        %v3520 = vpack.c.b16 %v3278, %v3276
        %v3521 = vpack.c.b16 %v3279, %v3277
        %v3522 = vpack.c.b16 %v3282, %v3280
        %v3523 = vpack.c.b16 %v3283, %v3281
        %v3524 = vpack.c.b16 %v3286, %v3284
        %v3525 = vpack.c.b16 %v3287, %v3285
        %v3526 = vpack.c.b16 %v3290, %v3288
        %v3527 = vpack.c.b16 %v3291, %v3289
        %v3528 = vpack.c.b16 %v3294, %v3292
        %v3529 = vpack.c.b16 %v3295, %v3293
        %v3530 = vpack.c.b16 %v3298, %v3296
        %v3531 = vpack.c.b16 %v3299, %v3297
        %v3532 = vpack.c.b16 %v3302, %v3300
        %v3533 = vpack.c.b16 %v3303, %v3301
        %v3534 = vpack.c.b16 %v3306, %v3304
        %v3535 = vpack.c.b16 %v3307, %v3305
        %v3536 = vpack.c.b16 %v3310, %v3308
        %v3537 = vpack.c.b16 %v3311, %v3309
        %v3538 = vpack.c.b16 %v3314, %v3312
        %v3539 = vpack.c.b16 %v3315, %v3313
        %v3540 = vpack.c.b16 %v3318, %v3316
        %v3541 = vpack.c.b16 %v3319, %v3317
        %v3542 = vpack.c.b16 %v3322, %v3320
        %v3543 = vpack.c.b16 %v3323, %v3321
        %v3544 = vpack.c.b16 %v3326, %v3324
        %v3545 = vpack.c.b16 %v3327, %v3325
        %v3546 = vpack.c.b16 %v3330, %v3328
        %v3547 = vpack.c.b16 %v3331, %v3329
        %v3548 = vpack.c.b16 %v3334, %v3332
        %v3549 = vpack.c.b16 %v3335, %v3333
        %v3550 = vpack.c.b16 %v3338, %v3336
        %v3551 = vpack.c.b16 %v3339, %v3337
        %v3552 = vpack.c.b16 %v3342, %v3340
        %v3553 = vpack.c.b16 %v3343, %v3341
        %v3554 = vpack.c.b16 %v3346, %v3344
        %v3555 = vpack.c.b16 %v3347, %v3345
        %v3556 = vpack.c.b16 %v3350, %v3348
        %v3557 = vpack.c.b16 %v3351, %v3349
        %v3558 = vpack.c.b16 %v3354, %v3352
        %v3559 = vpack.c.b16 %v3355, %v3353
        %v3560 = vpack.c.b16 %v3358, %v3356
        %v3561 = vpack.c.b16 %v3359, %v3357
        %v3562 = vpack.c.b16 %v3362, %v3360
        %v3563 = vpack.c.b16 %v3363, %v3361
        %v3564 = vpack.c.b16 %v3366, %v3364
        %v3565 = vpack.c.b16 %v3367, %v3365
        %v3566 = vpack.c.b16 %v3370, %v3368
        %v3567 = vpack.c.b16 %v3371, %v3369
        %v3568 = vpack.c.b16 %v3374, %v3372
        %v3569 = vpack.c.b16 %v3375, %v3373
        %v3570 = vpack.c.b16 %v3378, %v3376
        %v3571 = vpack.c.b16 %v3379, %v3377
        %v3572 = vpack.c.b16 %v3382, %v3380
        %v3573 = vpack.c.b16 %v3383, %v3381
        %v3574 = vpack.c.b16 %v3386, %v3384
        %v3575 = vpack.c.b16 %v3387, %v3385
        %v3576 = vpack.c.b16 %v3390, %v3388
        %v3577 = vpack.c.b16 %v3391, %v3389
        %v3578 = vpack.c.b16 %v3394, %v3392
        %v3579 = vpack.c.b16 %v3395, %v3393
        %v3580 = vpack.c.b16 %v3398, %v3396
        %v3581 = vpack.c.b16 %v3399, %v3397
        %v3582 = vpack.c.b16 %v3402, %v3400
        %v3583 = vpack.c.b16 %v3403, %v3401
        %v3584 = vpack.c.b16 %v3406, %v3404
        %v3585 = vpack.c.b16 %v3407, %v3405
        %v3586 = vpack.c.b16 %v3410, %v3408
        %v3587 = vpack.c.b16 %v3411, %v3409
        %v3588 = vpack.c.b16 %v3414, %v3412
        %v3589 = vpack.c.b16 %v3415, %v3413
        %v3590 = vpack.c.b16 %v3418, %v3416
        %v3591 = vpack.c.b16 %v3419, %v3417
        %v3592 = vpack.c.b16 %v3422, %v3420
        %v3593 = vpack.c.b16 %v3423, %v3421
        %v3594 = vpack.c.b16 %v3426, %v3424
        %v3595 = vpack.c.b16 %v3427, %v3425
        %v3596 = vpack.c.b16 %v3430, %v3428
        %v3597 = vpack.c.b16 %v3431, %v3429
        %v3598 = vpack.c.b16 %v3434, %v3432
        %v3599 = vpack.c.b16 %v3435, %v3433
        %v3600 = vpack.c.b16 %v3438, %v3436
        %v3601 = vpack.c.b16 %v3439, %v3437
        %v3602 = vpack.c.b16 %v3442, %v3440
        %v3603 = vpack.c.b16 %v3443, %v3441
        %3764 = vmatpush.bf16.msra.mxu0 %v3458
        %3765 = vmatpush.bf16.msra.mxu0 %v3456
        %3766 = vmatpush.bf16.msra.mxu0 %v3454
        %3767 = vmatpush.bf16.msra.mxu0 %v3452
        %3768 = vmatpush.bf16.msra.mxu0 %v3450
        %3769 = vmatpush.bf16.msra.mxu0 %v3448
        %3770 = vmatpush.bf16.msra.mxu0 %v3446
        %3771 = vmatpush.bf16.msra.mxu0 %v3444
        %3772 = vmatmul.bf16.gmra.mxu0 %v2944
        %v3773 = vpop.f32.mrf.mxu0
        %v3774 = vadd.f32 %v2910, %v3773
        %v3775 = vpop.f32.mrf.mxu0
        %v3776 = vadd.f32 %v2910, %v3775
        %3777 = vdwg.mxu0
        %3778 = vmatpush.bf16.msra.mxu0 %v3474
        %3779 = vmatpush.bf16.msra.mxu0 %v3472
        %3780 = vmatpush.bf16.msra.mxu0 %v3470
        %3781 = vmatpush.bf16.msra.mxu0 %v3468
        %3782 = vmatpush.bf16.msra.mxu0 %v3466
        %3783 = vmatpush.bf16.msra.mxu0 %v3464
        %3784 = vmatpush.bf16.msra.mxu0 %v3462
        %3785 = vmatpush.bf16.msra.mxu0 %v3460
        %3786 = vmatmul.bf16.gmra.mxu0 %v2945
        %v3787 = vpop.f32.mrf.mxu0
        %v3788 = vadd.f32 %v3774, %v3787
        %v3789 = vpop.f32.mrf.mxu0
        %v3790 = vadd.f32 %v3776, %v3789
        %3791 = vdwg.mxu0
        %3792 = vmatpush.bf16.msra.mxu0 %v3490
        %3793 = vmatpush.bf16.msra.mxu0 %v3488
        %3794 = vmatpush.bf16.msra.mxu0 %v3486
        %3795 = vmatpush.bf16.msra.mxu0 %v3484
        %3796 = vmatpush.bf16.msra.mxu0 %v3482
        %3797 = vmatpush.bf16.msra.mxu0 %v3480
        %3798 = vmatpush.bf16.msra.mxu0 %v3478
        %3799 = vmatpush.bf16.msra.mxu0 %v3476
        %3800 = vmatmul.bf16.gmra.mxu0 %v2946
        %v3801 = vpop.f32.mrf.mxu0
        %v3802 = vadd.f32 %v3788, %v3801
        %v3803 = vpop.f32.mrf.mxu0
        %v3804 = vadd.f32 %v3790, %v3803
        %3805 = vdwg.mxu0
        %3806 = vmatpush.bf16.msra.mxu0 %v3506
        %3807 = vmatpush.bf16.msra.mxu0 %v3504
        %3808 = vmatpush.bf16.msra.mxu0 %v3502
        %3809 = vmatpush.bf16.msra.mxu0 %v3500
        %3810 = vmatpush.bf16.msra.mxu0 %v3498
        %3811 = vmatpush.bf16.msra.mxu0 %v3496
        %3812 = vmatpush.bf16.msra.mxu0 %v3494
        %3813 = vmatpush.bf16.msra.mxu0 %v3492
        %3814 = vmatmul.bf16.gmra.mxu0 %v2947
        %v3815 = vpop.f32.mrf.mxu0
        %v3816 = vadd.f32 %v3802, %v3815
        %v3817 = vpop.f32.mrf.mxu0
        %v3818 = vadd.f32 %v3804, %v3817
        %3819 = vdwg.mxu0
        %3820 = vmatpush.bf16.msra.mxu0 %v3522
        %3821 = vmatpush.bf16.msra.mxu0 %v3520
        %3822 = vmatpush.bf16.msra.mxu0 %v3518
        %3823 = vmatpush.bf16.msra.mxu0 %v3516
        %3824 = vmatpush.bf16.msra.mxu0 %v3514
        %3825 = vmatpush.bf16.msra.mxu0 %v3512
        %3826 = vmatpush.bf16.msra.mxu0 %v3510
        %3827 = vmatpush.bf16.msra.mxu0 %v3508
        %3828 = vmatmul.bf16.gmra.mxu0 %v2948
        %v3829 = vpop.f32.mrf.mxu0
        %v3830 = vadd.f32 %v3816, %v3829
        %v3831 = vpop.f32.mrf.mxu0
        %v3832 = vadd.f32 %v3818, %v3831
        %3833 = vdwg.mxu0
        %3834 = vmatpush.bf16.msra.mxu0 %v3538
        %3835 = vmatpush.bf16.msra.mxu0 %v3536
        %3836 = vmatpush.bf16.msra.mxu0 %v3534
        %3837 = vmatpush.bf16.msra.mxu0 %v3532
        %3838 = vmatpush.bf16.msra.mxu0 %v3530
        %3839 = vmatpush.bf16.msra.mxu0 %v3528
        %3840 = vmatpush.bf16.msra.mxu0 %v3526
        %3841 = vmatpush.bf16.msra.mxu0 %v3524
        %3842 = vmatmul.bf16.gmra.mxu0 %v2949
        %v3843 = vpop.f32.mrf.mxu0
        %v3844 = vadd.f32 %v3830, %v3843
        %v3845 = vpop.f32.mrf.mxu0
        %v3846 = vadd.f32 %v3832, %v3845
        %3847 = vdwg.mxu0
        %3848 = vmatpush.bf16.msra.mxu0 %v3554
        %3849 = vmatpush.bf16.msra.mxu0 %v3552
        %3850 = vmatpush.bf16.msra.mxu0 %v3550
        %3851 = vmatpush.bf16.msra.mxu0 %v3548
        %3852 = vmatpush.bf16.msra.mxu0 %v3546
        %3853 = vmatpush.bf16.msra.mxu0 %v3544
        %3854 = vmatpush.bf16.msra.mxu0 %v3542
        %3855 = vmatpush.bf16.msra.mxu0 %v3540
        %3856 = vmatmul.bf16.gmra.mxu0 %v2950
        %v3857 = vpop.f32.mrf.mxu0
        %v3858 = vadd.f32 %v3844, %v3857
        %v3859 = vpop.f32.mrf.mxu0
        %v3860 = vadd.f32 %v3846, %v3859
        %3861 = vdwg.mxu0
        %3862 = vmatpush.bf16.msra.mxu0 %v3570
        %3863 = vmatpush.bf16.msra.mxu0 %v3568
        %3864 = vmatpush.bf16.msra.mxu0 %v3566
        %3865 = vmatpush.bf16.msra.mxu0 %v3564
        %3866 = vmatpush.bf16.msra.mxu0 %v3562
        %3867 = vmatpush.bf16.msra.mxu0 %v3560
        %3868 = vmatpush.bf16.msra.mxu0 %v3558
        %3869 = vmatpush.bf16.msra.mxu0 %v3556
        %3870 = vmatmul.bf16.gmra.mxu0 %v2951
        %v3871 = vpop.f32.mrf.mxu0
        %v3872 = vadd.f32 %v3858, %v3871
        %v3873 = vpop.f32.mrf.mxu0
        %v3874 = vadd.f32 %v3860, %v3873
        %3875 = vdwg.mxu0
        %3876 = vmatpush.bf16.msra.mxu0 %v3586
        %3877 = vmatpush.bf16.msra.mxu0 %v3584
        %3878 = vmatpush.bf16.msra.mxu0 %v3582
        %3879 = vmatpush.bf16.msra.mxu0 %v3580
        %3880 = vmatpush.bf16.msra.mxu0 %v3578
        %3881 = vmatpush.bf16.msra.mxu0 %v3576
        %3882 = vmatpush.bf16.msra.mxu0 %v3574
        %3883 = vmatpush.bf16.msra.mxu0 %v3572
        %3884 = vmatmul.bf16.gmra.mxu0 %v2952
        %v3885 = vpop.f32.mrf.mxu0
        %v3886 = vadd.f32 %v3872, %v3885
        %v3887 = vpop.f32.mrf.mxu0
        %v3888 = vadd.f32 %v3874, %v3887
        %3889 = vdwg.mxu0
        %3890 = vmatpush.bf16.msra.mxu0 %v3602
        %3891 = vmatpush.bf16.msra.mxu0 %v3600
        %3892 = vmatpush.bf16.msra.mxu0 %v3598
        %3893 = vmatpush.bf16.msra.mxu0 %v3596
        %3894 = vmatpush.bf16.msra.mxu0 %v3594
        %3895 = vmatpush.bf16.msra.mxu0 %v3592
        %3896 = vmatpush.bf16.msra.mxu0 %v3590
        %3897 = vmatpush.bf16.msra.mxu0 %v3588
        %3898 = vmatmul.bf16.gmra.mxu0 %v2953
        %v3899 = vpop.f32.mrf.mxu0
        %v3900 = vadd.f32 %v3886, %v3899
        %v3901 = vpop.f32.mrf.mxu0
        %v3902 = vadd.f32 %v3888, %v3901
        %3903 = vdwg.mxu0
        %3904 = vmatpush.bf16.msra.mxu0 %v3459
        %3905 = vmatpush.bf16.msra.mxu0 %v3457
        %3906 = vmatpush.bf16.msra.mxu0 %v3455
        %3907 = vmatpush.bf16.msra.mxu0 %v3453
        %3908 = vmatpush.bf16.msra.mxu0 %v3451
        %3909 = vmatpush.bf16.msra.mxu0 %v3449
        %3910 = vmatpush.bf16.msra.mxu0 %v3447
        %3911 = vmatpush.bf16.msra.mxu0 %v3445
        %3912 = vmatmul.bf16.gmra.mxu0 %v2944
        %v3913 = vpop.f32.mrf.mxu0
        %v3914 = vadd.f32 %v2911, %v3913
        %v3915 = vpop.f32.mrf.mxu0
        %v3916 = vadd.f32 %v2911, %v3915
        %3917 = vdwg.mxu0
        %3918 = vmatpush.bf16.msra.mxu0 %v3475
        %3919 = vmatpush.bf16.msra.mxu0 %v3473
        %3920 = vmatpush.bf16.msra.mxu0 %v3471
        %3921 = vmatpush.bf16.msra.mxu0 %v3469
        %3922 = vmatpush.bf16.msra.mxu0 %v3467
        %3923 = vmatpush.bf16.msra.mxu0 %v3465
        %3924 = vmatpush.bf16.msra.mxu0 %v3463
        %3925 = vmatpush.bf16.msra.mxu0 %v3461
        %3926 = vmatmul.bf16.gmra.mxu0 %v2945
        %v3927 = vpop.f32.mrf.mxu0
        %v3928 = vadd.f32 %v3914, %v3927
        %v3929 = vpop.f32.mrf.mxu0
        %v3930 = vadd.f32 %v3916, %v3929
        %3931 = vdwg.mxu0
        %3932 = vmatpush.bf16.msra.mxu0 %v3491
        %3933 = vmatpush.bf16.msra.mxu0 %v3489
        %3934 = vmatpush.bf16.msra.mxu0 %v3487
        %3935 = vmatpush.bf16.msra.mxu0 %v3485
        %3936 = vmatpush.bf16.msra.mxu0 %v3483
        %3937 = vmatpush.bf16.msra.mxu0 %v3481
        %3938 = vmatpush.bf16.msra.mxu0 %v3479
        %3939 = vmatpush.bf16.msra.mxu0 %v3477
        %3940 = vmatmul.bf16.gmra.mxu0 %v2946
        %v3941 = vpop.f32.mrf.mxu0
        %v3942 = vadd.f32 %v3928, %v3941
        %v3943 = vpop.f32.mrf.mxu0
        %v3944 = vadd.f32 %v3930, %v3943
        %3945 = vdwg.mxu0
        %3946 = vmatpush.bf16.msra.mxu0 %v3507
        %3947 = vmatpush.bf16.msra.mxu0 %v3505
        %3948 = vmatpush.bf16.msra.mxu0 %v3503
        %3949 = vmatpush.bf16.msra.mxu0 %v3501
        %3950 = vmatpush.bf16.msra.mxu0 %v3499
        %3951 = vmatpush.bf16.msra.mxu0 %v3497
        %3952 = vmatpush.bf16.msra.mxu0 %v3495
        %3953 = vmatpush.bf16.msra.mxu0 %v3493
        %3954 = vmatmul.bf16.gmra.mxu0 %v2947
        %v3955 = vpop.f32.mrf.mxu0
        %v3956 = vadd.f32 %v3942, %v3955
        %v3957 = vpop.f32.mrf.mxu0
        %v3958 = vadd.f32 %v3944, %v3957
        %3959 = vdwg.mxu0
        %3960 = vmatpush.bf16.msra.mxu0 %v3523
        %3961 = vmatpush.bf16.msra.mxu0 %v3521
        %3962 = vmatpush.bf16.msra.mxu0 %v3519
        %3963 = vmatpush.bf16.msra.mxu0 %v3517
        %3964 = vmatpush.bf16.msra.mxu0 %v3515
        %3965 = vmatpush.bf16.msra.mxu0 %v3513
        %3966 = vmatpush.bf16.msra.mxu0 %v3511
        %3967 = vmatpush.bf16.msra.mxu0 %v3509
        %3968 = vmatmul.bf16.gmra.mxu0 %v2948
        %v3969 = vpop.f32.mrf.mxu0
        %v3970 = vadd.f32 %v3956, %v3969
        %v3971 = vpop.f32.mrf.mxu0
        %v3972 = vadd.f32 %v3958, %v3971
        %3973 = vdwg.mxu0
        %3974 = vmatpush.bf16.msra.mxu0 %v3539
        %3975 = vmatpush.bf16.msra.mxu0 %v3537
        %3976 = vmatpush.bf16.msra.mxu0 %v3535
        %3977 = vmatpush.bf16.msra.mxu0 %v3533
        %3978 = vmatpush.bf16.msra.mxu0 %v3531
        %3979 = vmatpush.bf16.msra.mxu0 %v3529
        %3980 = vmatpush.bf16.msra.mxu0 %v3527
        %3981 = vmatpush.bf16.msra.mxu0 %v3525
        %3982 = vmatmul.bf16.gmra.mxu0 %v2949
        %v3983 = vpop.f32.mrf.mxu0
        %v3984 = vadd.f32 %v3970, %v3983
        %v3985 = vpop.f32.mrf.mxu0
        %v3986 = vadd.f32 %v3972, %v3985
        %3987 = vdwg.mxu0
        %3988 = vmatpush.bf16.msra.mxu0 %v3555
        %3989 = vmatpush.bf16.msra.mxu0 %v3553
        %3990 = vmatpush.bf16.msra.mxu0 %v3551
        %3991 = vmatpush.bf16.msra.mxu0 %v3549
        %3992 = vmatpush.bf16.msra.mxu0 %v3547
        %3993 = vmatpush.bf16.msra.mxu0 %v3545
        %3994 = vmatpush.bf16.msra.mxu0 %v3543
        %3995 = vmatpush.bf16.msra.mxu0 %v3541
        %3996 = vmatmul.bf16.gmra.mxu0 %v2950
        %v3997 = vpop.f32.mrf.mxu0
        %v3998 = vadd.f32 %v3984, %v3997
        %v3999 = vpop.f32.mrf.mxu0
        %v4000 = vadd.f32 %v3986, %v3999
        %4001 = vdwg.mxu0
        %4002 = vmatpush.bf16.msra.mxu0 %v3571
        %4003 = vmatpush.bf16.msra.mxu0 %v3569
        %4004 = vmatpush.bf16.msra.mxu0 %v3567
        %4005 = vmatpush.bf16.msra.mxu0 %v3565
        %4006 = vmatpush.bf16.msra.mxu0 %v3563
        %4007 = vmatpush.bf16.msra.mxu0 %v3561
        %4008 = vmatpush.bf16.msra.mxu0 %v3559
        %4009 = vmatpush.bf16.msra.mxu0 %v3557
        %4010 = vmatmul.bf16.gmra.mxu0 %v2951
        %v4011 = vpop.f32.mrf.mxu0
        %v4012 = vadd.f32 %v3998, %v4011
        %v4013 = vpop.f32.mrf.mxu0
        %v4014 = vadd.f32 %v4000, %v4013
        %4015 = vdwg.mxu0
        %4016 = vmatpush.bf16.msra.mxu0 %v3587
        %4017 = vmatpush.bf16.msra.mxu0 %v3585
        %4018 = vmatpush.bf16.msra.mxu0 %v3583
        %4019 = vmatpush.bf16.msra.mxu0 %v3581
        %4020 = vmatpush.bf16.msra.mxu0 %v3579
        %4021 = vmatpush.bf16.msra.mxu0 %v3577
        %4022 = vmatpush.bf16.msra.mxu0 %v3575
        %4023 = vmatpush.bf16.msra.mxu0 %v3573
        %4024 = vmatmul.bf16.gmra.mxu0 %v2952
        %v4025 = vpop.f32.mrf.mxu0
        %v4026 = vadd.f32 %v4012, %v4025
        %v4027 = vpop.f32.mrf.mxu0
        %v4028 = vadd.f32 %v4014, %v4027
        %4029 = vdwg.mxu0
        %4030 = vmatpush.bf16.msra.mxu0 %v3603
        %4031 = vmatpush.bf16.msra.mxu0 %v3601
        %4032 = vmatpush.bf16.msra.mxu0 %v3599
        %4033 = vmatpush.bf16.msra.mxu0 %v3597
        %4034 = vmatpush.bf16.msra.mxu0 %v3595
        %4035 = vmatpush.bf16.msra.mxu0 %v3593
        %4036 = vmatpush.bf16.msra.mxu0 %v3591
        %4037 = vmatpush.bf16.msra.mxu0 %v3589
        %4038 = vmatmul.bf16.gmra.mxu0 %v2953
        %v4039 = vpop.f32.mrf.mxu0
        %v4040 = vadd.f32 %v4026, %v4039
        %v4041 = vpop.f32.mrf.mxu0
        %v4042 = vadd.f32 %v4028, %v4041
        %4043 = vdwg.mxu0
        %v4044 = vmax.f32 %v3900, 0.0
        %v4045 = vmax.f32 %v4040, 0.0
        %v4046 = vmax.f32 %v3902, 0.0
        %v4047 = vmax.f32 %v4042, 0.0
        %v4048 = vpack.c.bf16 %v4045, %v4044
        %v4049 = vpack.c.bf16 %v4047, %v4046
        %v4052 = vrot.slane %v4048, 7
        %v4053 = vrot.slane %v4052, 4
        %v4054 = vrot.slane %v4049, 7
        %v4055 = vsel %vm555, %v4053, %v4054
        %4058 = vst [vmem:[#allocation3] sm:$0xee] %v4052
        %4059 = vst [vmem:[#allocation3 + $0x28] sm:$0xff] %v4055
        %v4061 = vshrl.u32 %v4048, 16
        %v4063 = vrot.slane %v4061, 7
        %v4064 = vshll.u32 %v4048, 16
        %v4066 = vor.u32 %v4063, %v4064
        %v4067 = vrot.slane %v4063, 4
        %v4069 = vshrl.u32 %v4049, 16
        %v4071 = vrot.slane %v4069, 7
        %v4072 = vshll.u32 %v4049, 16
        %v4074 = vor.u32 %v4071, %v4072
        %v4075 = vsel %vm565, %v4067, %v4074
        %v4078 = vld [vmem:[#allocation3 + $0x8] sm:$0xff]
        %v4079 = vsel %vm1334, %v4066, %v4078
        %4080 = vst [vmem:[#allocation3 + $0x8] sm:$0xff] %v4079
        %4081 = vst [vmem:[#allocation3 + $0x30] sm:$0xff] %v4075
        %4082 = vst [vmem:[#allocation3 + $0x10] sm:$0xff] %v4048
        %4083 = vst [vmem:[#allocation3 + $0x38] sm:$0xff] %v4049
        %v4084 = vrot.slane %v4061, 4
        %v4085 = vrot.slane %v4064, 5
        %v4086 = vor.u32 %v4084, %v4085
        %v4087 = vrot.slane %v4086, 4
        %v4088 = vrot.slane %v4072, 5
        %v4089 = vsel %vm595, %v4087, %v4088
        %v4090 = vrot.slane %v4069, 4
        %v4091 = vor.u32 %v4090, %v4088
        %v4092 = vrot.slane %v4091, 4
        %4095 = vst [vmem:[#allocation3 + $0x18] sm:$0xff] %v4089
        %v4096 = vld [vmem:[#allocation3 + $0x40] sm:$0xff]
        %v4097 = vsel %vm1355, %v4092, %v4096
        %4098 = vst [vmem:[#allocation3 + $0x40] sm:$0xff] %v4097
        %v4099 = vrot.slane %v4048, 5
        %v4100 = vrot.slane %v4099, 4
        %v4101 = vrot.slane %v4049, 5
        %v4102 = vsel %vm614, %v4100, %v4101
        %v4103 = vrot.slane %v4101, 4
        %4106 = vst [vmem:[#allocation3 + $0x20] sm:$0xff] %v4102
        %4107 = vst [vmem:[#allocation3 + $0x48] sm:$0x77] %v4103
        %v4108 = vld [vmem:[#allocation3] sm:$0xff]
        %v4109 = vld [vmem:[#allocation3 + $0x8] sm:$0xff]
        %v4110 = vld [vmem:[#allocation3 + $0x10] sm:$0xff]
        %v4111 = vld [vmem:[#allocation3 + $0x18] sm:$0xff]
        %v4112 = vld [vmem:[#allocation3 + $0x20] sm:$0xff]
        %v4113 = vld [vmem:[#allocation3 + $0x28] sm:$0xff]
        %v4114 = vld [vmem:[#allocation3 + $0x30] sm:$0xff]
        %v4115 = vld [vmem:[#allocation3 + $0x38] sm:$0xff]
        %v4116 = vld [vmem:[#allocation3 + $0x40] sm:$0xff]
        %v4117 = vld [vmem:[#allocation3 + $0x48] sm:$0xff]
        %v4118 = vld [vmem:[#allocation9] sm:$0xff]
        %v4119 = vld [vmem:[#allocation9 + $0x8] sm:$0xff]
        %v4120 = vld [vmem:[#allocation9 + $0x10] sm:$0xff]
        %v4121 = vld [vmem:[#allocation9 + $0x18] sm:$0xff]
        %v4122 = vld [vmem:[#allocation9 + $0x20] sm:$0xff]
        %v4123 = vld [vmem:[#allocation9 + $0x28] sm:$0xff]
        %v4124 = vld [vmem:[#allocation9 + $0x30] sm:$0xff]
        %v4125 = vld [vmem:[#allocation9 + $0x38] sm:$0xff]
        %v4126 = vld [vmem:[#allocation9 + $0x40] sm:$0xff]
        %v4127 = vld [vmem:[#allocation9 + $0x48] sm:$0xff]
        %v4128 = vld [vmem:[#allocation9 + $0x50] sm:$0xff]
        %v4129 = vld [vmem:[#allocation9 + $0x58] sm:$0xff]
        %v4130 = vld [vmem:[#allocation9 + $0x60] sm:$0xff]
        %v4131 = vld [vmem:[#allocation9 + $0x68] sm:$0xff]
        %v4132 = vld [vmem:[#allocation9 + $0x70] sm:$0xff]
        %v4133 = vld [vmem:[#allocation9 + $0x78] sm:$0xff]
        %v4134 = vld [vmem:[#allocation9 + $0x80] sm:$0xff]
        %v4135 = vld [vmem:[#allocation9 + $0x88] sm:$0xff]
        %v4136 = vld [vmem:[#allocation9 + $0x90] sm:$0xff]
        %v4137 = vld [vmem:[#allocation9 + $0x98] sm:$0xff]
        %v4138 = vld [vmem:[#allocation9 + $0xa0] sm:$0xff]
        %v4139 = vld [vmem:[#allocation9 + $0xa8] sm:$0xff]
        %v4140 = vld [vmem:[#allocation9 + $0xb0] sm:$0xff]
        %v4141 = vld [vmem:[#allocation9 + $0xb8] sm:$0xff]
        %v4142 = vld [vmem:[#allocation9 + $0xc0] sm:$0xff]
        %v4143 = vld [vmem:[#allocation9 + $0xc8] sm:$0xff]
        %v4144 = vld [vmem:[#allocation9 + $0xd0] sm:$0xff]
        %v4145 = vld [vmem:[#allocation9 + $0xd8] sm:$0xff]
        %v4146 = vld [vmem:[#allocation9 + $0xe0] sm:$0xff]
        %v4147 = vld [vmem:[#allocation9 + $0xe8] sm:$0xff]
        %v4148 = vld [vmem:[#allocation9 + $0xf0] sm:$0xff]
        %v4149 = vld [vmem:[#allocation9 + $0xf8] sm:$0xff]
        %v4150 = vld [vmem:[#allocation9 + $0x100] sm:$0xff]
        %v4151 = vld [vmem:[#allocation9 + $0x108] sm:$0xff]
        %v4152 = vld [vmem:[#allocation9 + $0x110] sm:$0xff]
        %v4153 = vld [vmem:[#allocation9 + $0x118] sm:$0xff]
        %v4154 = vld [vmem:[#allocation9 + $0x120] sm:$0xff]
        %v4155 = vld [vmem:[#allocation9 + $0x128] sm:$0xff]
        %v4156 = vld [vmem:[#allocation9 + $0x130] sm:$0xff]
        %v4157 = vld [vmem:[#allocation9 + $0x138] sm:$0xff]
        %v4158 = vld [vmem:[#allocation9 + $0x140] sm:$0xff]
        %v4159 = vld [vmem:[#allocation9 + $0x148] sm:$0xff]
        %v4160 = vld [vmem:[#allocation9 + $0x150] sm:$0xff]
        %v4161 = vld [vmem:[#allocation9 + $0x158] sm:$0xff]
        %v4162 = vld [vmem:[#allocation9 + $0x160] sm:$0xff]
        %v4163 = vld [vmem:[#allocation9 + $0x168] sm:$0xff]
        %v4164 = vld [vmem:[#allocation9 + $0x170] sm:$0xff]
        %v4165 = vld [vmem:[#allocation9 + $0x178] sm:$0xff]
        %v4166 = vld [vmem:[#allocation9 + $0x180] sm:$0xff]
        %v4167 = vld [vmem:[#allocation9 + $0x188] sm:$0xff]
        %v4168 = vld [vmem:[#allocation9 + $0x190] sm:$0xff]
        %v4169 = vld [vmem:[#allocation9 + $0x198] sm:$0xff]
        %v4170 = vld [vmem:[#allocation9 + $0x1a0] sm:$0xff]
        %v4171 = vld [vmem:[#allocation9 + $0x1a8] sm:$0xff]
        %v4172 = vld [vmem:[#allocation9 + $0x1b0] sm:$0xff]
        %v4173 = vld [vmem:[#allocation9 + $0x1b8] sm:$0xff]
        %v4174 = vld [vmem:[#allocation9 + $0x1c0] sm:$0xff]
        %v4175 = vld [vmem:[#allocation9 + $0x1c8] sm:$0xff]
        %v4176 = vld [vmem:[#allocation9 + $0x1d0] sm:$0xff]
        %v4177 = vld [vmem:[#allocation9 + $0x1d8] sm:$0xff]
        %v4178 = vld [vmem:[#allocation9 + $0x1e0] sm:$0xff]
        %v4179 = vld [vmem:[#allocation9 + $0x1e8] sm:$0xff]
        %v4180 = vld [vmem:[#allocation9 + $0x1f0] sm:$0xff]
        %v4181 = vld [vmem:[#allocation9 + $0x1f8] sm:$0xff]
        %v4182 = vld [vmem:[#allocation9 + $0x200] sm:$0xff]
        %v4183 = vld [vmem:[#allocation9 + $0x208] sm:$0xff]
        %v4184 = vld [vmem:[#allocation9 + $0x210] sm:$0xff]
        %v4185 = vld [vmem:[#allocation9 + $0x218] sm:$0xff]
        %v4186 = vld [vmem:[#allocation9 + $0x220] sm:$0xff]
        %v4187 = vld [vmem:[#allocation9 + $0x228] sm:$0xff]
        %v4188 = vld [vmem:[#allocation9 + $0x230] sm:$0xff]
        %v4189 = vld [vmem:[#allocation9 + $0x238] sm:$0xff]
        %v4190 = vld [vmem:[#allocation9 + $0x240] sm:$0xff]
        %v4191 = vld [vmem:[#allocation9 + $0x248] sm:$0xff]
        %v4192 = vld [vmem:[#allocation9 + $0x250] sm:$0xff]
        %v4193 = vld [vmem:[#allocation9 + $0x258] sm:$0xff]
        %v4194 = vld [vmem:[#allocation9 + $0x260] sm:$0xff]
        %v4195 = vld [vmem:[#allocation9 + $0x268] sm:$0xff]
        %v4196 = vld [vmem:[#allocation9 + $0x270] sm:$0xff]
        %v4197 = vld [vmem:[#allocation9 + $0x278] sm:$0xff]
        %v4198 = vld [vmem:[#allocation9 + $0x280] sm:$0xff]
        %v4199 = vld [vmem:[#allocation9 + $0x288] sm:$0xff]
        %v4200 = vld [vmem:[#allocation9 + $0x290] sm:$0xff]
        %v4201 = vld [vmem:[#allocation9 + $0x298] sm:$0xff]
        %v4202 = vld [vmem:[#allocation9 + $0x2a0] sm:$0xff]
        %v4203 = vld [vmem:[#allocation9 + $0x2a8] sm:$0xff]
        %v4204 = vld [vmem:[#allocation9 + $0x2b0] sm:$0xff]
        %v4205 = vld [vmem:[#allocation9 + $0x2b8] sm:$0xff]
        %v4206 = vld [vmem:[#allocation9 + $0x2c0] sm:$0xff]
        %v4207 = vld [vmem:[#allocation9 + $0x2c8] sm:$0xff]
        %v4208 = vld [vmem:[#allocation9 + $0x2d0] sm:$0xff]
        %v4209 = vld [vmem:[#allocation9 + $0x2d8] sm:$0xff]
        %v4210 = vld [vmem:[#allocation9 + $0x2e0] sm:$0xff]
        %v4211 = vld [vmem:[#allocation9 + $0x2e8] sm:$0xff]
        %v4212 = vld [vmem:[#allocation9 + $0x2f0] sm:$0xff]
        %v4213 = vld [vmem:[#allocation9 + $0x2f8] sm:$0xff]
        %v4214 = vld [vmem:[#allocation9 + $0x300] sm:$0xff]
        %v4215 = vld [vmem:[#allocation9 + $0x308] sm:$0xff]
        %v4216 = vld [vmem:[#allocation9 + $0x310] sm:$0xff]
        %v4217 = vld [vmem:[#allocation9 + $0x318] sm:$0xff]
        %v4218 = vld [vmem:[#allocation9 + $0x320] sm:$0xff]
        %v4219 = vld [vmem:[#allocation9 + $0x328] sm:$0xff]
        %v4220 = vld [vmem:[#allocation9 + $0x330] sm:$0xff]
        %v4221 = vld [vmem:[#allocation9 + $0x338] sm:$0xff]
        %v4222 = vld [vmem:[#allocation9 + $0x340] sm:$0xff]
        %v4223 = vld [vmem:[#allocation9 + $0x348] sm:$0xff]
        %v4224 = vld [vmem:[#allocation9 + $0x350] sm:$0xff]
        %v4225 = vld [vmem:[#allocation9 + $0x358] sm:$0xff]
        %v4226 = vld [vmem:[#allocation9 + $0x360] sm:$0xff]
        %v4227 = vld [vmem:[#allocation9 + $0x368] sm:$0xff]
        %v4228 = vld [vmem:[#allocation9 + $0x370] sm:$0xff]
        %v4229 = vld [vmem:[#allocation9 + $0x378] sm:$0xff]
        %v4230 = vld [vmem:[#allocation9 + $0x380] sm:$0xff]
        %v4231 = vld [vmem:[#allocation9 + $0x388] sm:$0xff]
        %v4232 = vld [vmem:[#allocation9 + $0x390] sm:$0xff]
        %v4233 = vld [vmem:[#allocation9 + $0x398] sm:$0xff]
        %v4234 = vld [vmem:[#allocation9 + $0x3a0] sm:$0xff]
        %v4235 = vld [vmem:[#allocation9 + $0x3a8] sm:$0xff]
        %v4236 = vld [vmem:[#allocation9 + $0x3b0] sm:$0xff]
        %v4237 = vld [vmem:[#allocation9 + $0x3b8] sm:$0xff]
        %v4238 = vld [vmem:[#allocation9 + $0x3c0] sm:$0xff]
        %v4239 = vld [vmem:[#allocation9 + $0x3c8] sm:$0xff]
        %v4240 = vld [vmem:[#allocation9 + $0x3d0] sm:$0xff]
        %v4241 = vld [vmem:[#allocation9 + $0x3d8] sm:$0xff]
        %v4242 = vld [vmem:[#allocation9 + $0x3e0] sm:$0xff]
        %v4243 = vld [vmem:[#allocation9 + $0x3e8] sm:$0xff]
        %v4244 = vld [vmem:[#allocation9 + $0x3f0] sm:$0xff]
        %v4245 = vld [vmem:[#allocation9 + $0x3f8] sm:$0xff]
        %v4246 = vld [vmem:[#allocation9 + $0x400] sm:$0xff]
        %v4247 = vld [vmem:[#allocation9 + $0x408] sm:$0xff]
        %v4248 = vld [vmem:[#allocation9 + $0x410] sm:$0xff]
        %v4249 = vld [vmem:[#allocation9 + $0x418] sm:$0xff]
        %v4250 = vld [vmem:[#allocation9 + $0x420] sm:$0xff]
        %v4251 = vld [vmem:[#allocation9 + $0x428] sm:$0xff]
        %v4252 = vld [vmem:[#allocation9 + $0x430] sm:$0xff]
        %v4253 = vld [vmem:[#allocation9 + $0x438] sm:$0xff]
        %v4254 = vld [vmem:[#allocation9 + $0x440] sm:$0xff]
        %v4255 = vld [vmem:[#allocation9 + $0x448] sm:$0xff]
        %v4256 = vld [vmem:[#allocation9 + $0x450] sm:$0xff]
        %v4257 = vld [vmem:[#allocation9 + $0x458] sm:$0xff]
        %v4258 = vld [vmem:[#allocation9 + $0x460] sm:$0xff]
        %v4259 = vld [vmem:[#allocation9 + $0x468] sm:$0xff]
        %v4260 = vld [vmem:[#allocation9 + $0x470] sm:$0xff]
        %v4261 = vld [vmem:[#allocation9 + $0x478] sm:$0xff]
        %v4262 = vld [vmem:[#allocation9 + $0x480] sm:$0xff]
        %v4263 = vld [vmem:[#allocation9 + $0x488] sm:$0xff]
        %v4264 = vld [vmem:[#allocation9 + $0x490] sm:$0xff]
        %v4265 = vld [vmem:[#allocation9 + $0x498] sm:$0xff]
        %v4266 = vld [vmem:[#allocation9 + $0x4a0] sm:$0xff]
        %v4267 = vld [vmem:[#allocation9 + $0x4a8] sm:$0xff]
        %v4268 = vld [vmem:[#allocation9 + $0x4b0] sm:$0xff]
        %v4269 = vld [vmem:[#allocation9 + $0x4b8] sm:$0xff]
        %v4270 = vld [vmem:[#allocation9 + $0x4c0] sm:$0xff]
        %v4271 = vld [vmem:[#allocation9 + $0x4c8] sm:$0xff]
        %v4272 = vld [vmem:[#allocation9 + $0x4d0] sm:$0xff]
        %v4273 = vld [vmem:[#allocation9 + $0x4d8] sm:$0xff]
        %v4274 = vld [vmem:[#allocation9 + $0x4e0] sm:$0xff]
        %v4275 = vld [vmem:[#allocation9 + $0x4e8] sm:$0xff]
        %v4276 = vld [vmem:[#allocation9 + $0x4f0] sm:$0xff]
        %v4277 = vld [vmem:[#allocation9 + $0x4f8] sm:$0xff]
        %v4278 = vld [vmem:[%s8] sm:$0x3]
        %v4280 = vperm.slane %v4278, 0
        %v4281 = vperm.slane %v4278, 1
        %v4294 = vunpack.c.l.b16 %v4108
        %v4295 = vunpack.c.h.b16 %v4108
        %v4296 = vunpack.c.l.b16 %v4109
        %v4297 = vunpack.c.h.b16 %v4109
        %v4298 = vunpack.c.l.b16 %v4110
        %v4299 = vunpack.c.h.b16 %v4110
        %v4300 = vunpack.c.l.b16 %v4111
        %v4301 = vunpack.c.h.b16 %v4111
        %v4302 = vunpack.c.l.b16 %v4112
        %v4303 = vunpack.c.h.b16 %v4112
        %v4304 = vunpack.c.l.b16 %v4113
        %v4305 = vunpack.c.h.b16 %v4113
        %v4306 = vunpack.c.l.b16 %v4114
        %v4307 = vunpack.c.h.b16 %v4114
        %v4308 = vunpack.c.l.b16 %v4115
        %v4309 = vunpack.c.h.b16 %v4115
        %v4310 = vunpack.c.l.b16 %v4116
        %v4311 = vunpack.c.h.b16 %v4116
        %v4312 = vunpack.c.l.b16 %v4117
        %v4313 = vunpack.c.h.b16 %v4117
        %v4314 = vpack.c.b16 %v4304, %v4294
        %v4315 = vpack.c.b16 %v4305, %v4295
        %v4316 = vpack.c.b16 %v4306, %v4296
        %v4317 = vpack.c.b16 %v4307, %v4297
        %v4318 = vpack.c.b16 %v4308, %v4298
        %v4319 = vpack.c.b16 %v4309, %v4299
        %v4320 = vpack.c.b16 %v4310, %v4300
        %v4321 = vpack.c.b16 %v4311, %v4301
        %v4322 = vpack.c.b16 %v4312, %v4302
        %v4323 = vpack.c.b16 %v4313, %v4303
        %v4494 = vunpack.c.l.b16 %v4118
        %v4495 = vunpack.c.h.b16 %v4118
        %v4496 = vunpack.c.l.b16 %v4119
        %v4497 = vunpack.c.h.b16 %v4119
        %v4498 = vunpack.c.l.b16 %v4120
        %v4499 = vunpack.c.h.b16 %v4120
        %v4500 = vunpack.c.l.b16 %v4121
        %v4501 = vunpack.c.h.b16 %v4121
        %v4502 = vunpack.c.l.b16 %v4122
        %v4503 = vunpack.c.h.b16 %v4122
        %v4504 = vunpack.c.l.b16 %v4123
        %v4505 = vunpack.c.h.b16 %v4123
        %v4506 = vunpack.c.l.b16 %v4124
        %v4507 = vunpack.c.h.b16 %v4124
        %v4508 = vunpack.c.l.b16 %v4125
        %v4509 = vunpack.c.h.b16 %v4125
        %v4510 = vunpack.c.l.b16 %v4126
        %v4511 = vunpack.c.h.b16 %v4126
        %v4512 = vunpack.c.l.b16 %v4127
        %v4513 = vunpack.c.h.b16 %v4127
        %v4514 = vunpack.c.l.b16 %v4128
        %v4515 = vunpack.c.h.b16 %v4128
        %v4516 = vunpack.c.l.b16 %v4129
        %v4517 = vunpack.c.h.b16 %v4129
        %v4518 = vunpack.c.l.b16 %v4130
        %v4519 = vunpack.c.h.b16 %v4130
        %v4520 = vunpack.c.l.b16 %v4131
        %v4521 = vunpack.c.h.b16 %v4131
        %v4522 = vunpack.c.l.b16 %v4132
        %v4523 = vunpack.c.h.b16 %v4132
        %v4524 = vunpack.c.l.b16 %v4133
        %v4525 = vunpack.c.h.b16 %v4133
        %v4526 = vunpack.c.l.b16 %v4134
        %v4527 = vunpack.c.h.b16 %v4134
        %v4528 = vunpack.c.l.b16 %v4135
        %v4529 = vunpack.c.h.b16 %v4135
        %v4530 = vunpack.c.l.b16 %v4136
        %v4531 = vunpack.c.h.b16 %v4136
        %v4532 = vunpack.c.l.b16 %v4137
        %v4533 = vunpack.c.h.b16 %v4137
        %v4534 = vunpack.c.l.b16 %v4138
        %v4535 = vunpack.c.h.b16 %v4138
        %v4536 = vunpack.c.l.b16 %v4139
        %v4537 = vunpack.c.h.b16 %v4139
        %v4538 = vunpack.c.l.b16 %v4140
        %v4539 = vunpack.c.h.b16 %v4140
        %v4540 = vunpack.c.l.b16 %v4141
        %v4541 = vunpack.c.h.b16 %v4141
        %v4542 = vunpack.c.l.b16 %v4142
        %v4543 = vunpack.c.h.b16 %v4142
        %v4544 = vunpack.c.l.b16 %v4143
        %v4545 = vunpack.c.h.b16 %v4143
        %v4546 = vunpack.c.l.b16 %v4144
        %v4547 = vunpack.c.h.b16 %v4144
        %v4548 = vunpack.c.l.b16 %v4145
        %v4549 = vunpack.c.h.b16 %v4145
        %v4550 = vunpack.c.l.b16 %v4146
        %v4551 = vunpack.c.h.b16 %v4146
        %v4552 = vunpack.c.l.b16 %v4147
        %v4553 = vunpack.c.h.b16 %v4147
        %v4554 = vunpack.c.l.b16 %v4148
        %v4555 = vunpack.c.h.b16 %v4148
        %v4556 = vunpack.c.l.b16 %v4149
        %v4557 = vunpack.c.h.b16 %v4149
        %v4558 = vunpack.c.l.b16 %v4150
        %v4559 = vunpack.c.h.b16 %v4150
        %v4560 = vunpack.c.l.b16 %v4151
        %v4561 = vunpack.c.h.b16 %v4151
        %v4562 = vunpack.c.l.b16 %v4152
        %v4563 = vunpack.c.h.b16 %v4152
        %v4564 = vunpack.c.l.b16 %v4153
        %v4565 = vunpack.c.h.b16 %v4153
        %v4566 = vunpack.c.l.b16 %v4154
        %v4567 = vunpack.c.h.b16 %v4154
        %v4568 = vunpack.c.l.b16 %v4155
        %v4569 = vunpack.c.h.b16 %v4155
        %v4570 = vunpack.c.l.b16 %v4156
        %v4571 = vunpack.c.h.b16 %v4156
        %v4572 = vunpack.c.l.b16 %v4157
        %v4573 = vunpack.c.h.b16 %v4157
        %v4574 = vunpack.c.l.b16 %v4158
        %v4575 = vunpack.c.h.b16 %v4158
        %v4576 = vunpack.c.l.b16 %v4159
        %v4577 = vunpack.c.h.b16 %v4159
        %v4578 = vunpack.c.l.b16 %v4160
        %v4579 = vunpack.c.h.b16 %v4160
        %v4580 = vunpack.c.l.b16 %v4161
        %v4581 = vunpack.c.h.b16 %v4161
        %v4582 = vunpack.c.l.b16 %v4162
        %v4583 = vunpack.c.h.b16 %v4162
        %v4584 = vunpack.c.l.b16 %v4163
        %v4585 = vunpack.c.h.b16 %v4163
        %v4586 = vunpack.c.l.b16 %v4164
        %v4587 = vunpack.c.h.b16 %v4164
        %v4588 = vunpack.c.l.b16 %v4165
        %v4589 = vunpack.c.h.b16 %v4165
        %v4590 = vunpack.c.l.b16 %v4166
        %v4591 = vunpack.c.h.b16 %v4166
        %v4592 = vunpack.c.l.b16 %v4167
        %v4593 = vunpack.c.h.b16 %v4167
        %v4594 = vunpack.c.l.b16 %v4168
        %v4595 = vunpack.c.h.b16 %v4168
        %v4596 = vunpack.c.l.b16 %v4169
        %v4597 = vunpack.c.h.b16 %v4169
        %v4598 = vunpack.c.l.b16 %v4170
        %v4599 = vunpack.c.h.b16 %v4170
        %v4600 = vunpack.c.l.b16 %v4171
        %v4601 = vunpack.c.h.b16 %v4171
        %v4602 = vunpack.c.l.b16 %v4172
        %v4603 = vunpack.c.h.b16 %v4172
        %v4604 = vunpack.c.l.b16 %v4173
        %v4605 = vunpack.c.h.b16 %v4173
        %v4606 = vunpack.c.l.b16 %v4174
        %v4607 = vunpack.c.h.b16 %v4174
        %v4608 = vunpack.c.l.b16 %v4175
        %v4609 = vunpack.c.h.b16 %v4175
        %v4610 = vunpack.c.l.b16 %v4176
        %v4611 = vunpack.c.h.b16 %v4176
        %v4612 = vunpack.c.l.b16 %v4177
        %v4613 = vunpack.c.h.b16 %v4177
        %v4614 = vunpack.c.l.b16 %v4178
        %v4615 = vunpack.c.h.b16 %v4178
        %v4616 = vunpack.c.l.b16 %v4179
        %v4617 = vunpack.c.h.b16 %v4179
        %v4618 = vunpack.c.l.b16 %v4180
        %v4619 = vunpack.c.h.b16 %v4180
        %v4620 = vunpack.c.l.b16 %v4181
        %v4621 = vunpack.c.h.b16 %v4181
        %v4622 = vunpack.c.l.b16 %v4182
        %v4623 = vunpack.c.h.b16 %v4182
        %v4624 = vunpack.c.l.b16 %v4183
        %v4625 = vunpack.c.h.b16 %v4183
        %v4626 = vunpack.c.l.b16 %v4184
        %v4627 = vunpack.c.h.b16 %v4184
        %v4628 = vunpack.c.l.b16 %v4185
        %v4629 = vunpack.c.h.b16 %v4185
        %v4630 = vunpack.c.l.b16 %v4186
        %v4631 = vunpack.c.h.b16 %v4186
        %v4632 = vunpack.c.l.b16 %v4187
        %v4633 = vunpack.c.h.b16 %v4187
        %v4634 = vunpack.c.l.b16 %v4188
        %v4635 = vunpack.c.h.b16 %v4188
        %v4636 = vunpack.c.l.b16 %v4189
        %v4637 = vunpack.c.h.b16 %v4189
        %v4638 = vunpack.c.l.b16 %v4190
        %v4639 = vunpack.c.h.b16 %v4190
        %v4640 = vunpack.c.l.b16 %v4191
        %v4641 = vunpack.c.h.b16 %v4191
        %v4642 = vunpack.c.l.b16 %v4192
        %v4643 = vunpack.c.h.b16 %v4192
        %v4644 = vunpack.c.l.b16 %v4193
        %v4645 = vunpack.c.h.b16 %v4193
        %v4646 = vunpack.c.l.b16 %v4194
        %v4647 = vunpack.c.h.b16 %v4194
        %v4648 = vunpack.c.l.b16 %v4195
        %v4649 = vunpack.c.h.b16 %v4195
        %v4650 = vunpack.c.l.b16 %v4196
        %v4651 = vunpack.c.h.b16 %v4196
        %v4652 = vunpack.c.l.b16 %v4197
        %v4653 = vunpack.c.h.b16 %v4197
        %v4654 = vunpack.c.l.b16 %v4198
        %v4655 = vunpack.c.h.b16 %v4198
        %v4656 = vunpack.c.l.b16 %v4199
        %v4657 = vunpack.c.h.b16 %v4199
        %v4658 = vunpack.c.l.b16 %v4200
        %v4659 = vunpack.c.h.b16 %v4200
        %v4660 = vunpack.c.l.b16 %v4201
        %v4661 = vunpack.c.h.b16 %v4201
        %v4662 = vunpack.c.l.b16 %v4202
        %v4663 = vunpack.c.h.b16 %v4202
        %v4664 = vunpack.c.l.b16 %v4203
        %v4665 = vunpack.c.h.b16 %v4203
        %v4666 = vunpack.c.l.b16 %v4204
        %v4667 = vunpack.c.h.b16 %v4204
        %v4668 = vunpack.c.l.b16 %v4205
        %v4669 = vunpack.c.h.b16 %v4205
        %v4670 = vunpack.c.l.b16 %v4206
        %v4671 = vunpack.c.h.b16 %v4206
        %v4672 = vunpack.c.l.b16 %v4207
        %v4673 = vunpack.c.h.b16 %v4207
        %v4674 = vunpack.c.l.b16 %v4208
        %v4675 = vunpack.c.h.b16 %v4208
        %v4676 = vunpack.c.l.b16 %v4209
        %v4677 = vunpack.c.h.b16 %v4209
        %v4678 = vunpack.c.l.b16 %v4210
        %v4679 = vunpack.c.h.b16 %v4210
        %v4680 = vunpack.c.l.b16 %v4211
        %v4681 = vunpack.c.h.b16 %v4211
        %v4682 = vunpack.c.l.b16 %v4212
        %v4683 = vunpack.c.h.b16 %v4212
        %v4684 = vunpack.c.l.b16 %v4213
        %v4685 = vunpack.c.h.b16 %v4213
        %v4686 = vunpack.c.l.b16 %v4214
        %v4687 = vunpack.c.h.b16 %v4214
        %v4688 = vunpack.c.l.b16 %v4215
        %v4689 = vunpack.c.h.b16 %v4215
        %v4690 = vunpack.c.l.b16 %v4216
        %v4691 = vunpack.c.h.b16 %v4216
        %v4692 = vunpack.c.l.b16 %v4217
        %v4693 = vunpack.c.h.b16 %v4217
        %v4694 = vunpack.c.l.b16 %v4218
        %v4695 = vunpack.c.h.b16 %v4218
        %v4696 = vunpack.c.l.b16 %v4219
        %v4697 = vunpack.c.h.b16 %v4219
        %v4698 = vunpack.c.l.b16 %v4220
        %v4699 = vunpack.c.h.b16 %v4220
        %v4700 = vunpack.c.l.b16 %v4221
        %v4701 = vunpack.c.h.b16 %v4221
        %v4702 = vunpack.c.l.b16 %v4222
        %v4703 = vunpack.c.h.b16 %v4222
        %v4704 = vunpack.c.l.b16 %v4223
        %v4705 = vunpack.c.h.b16 %v4223
        %v4706 = vunpack.c.l.b16 %v4224
        %v4707 = vunpack.c.h.b16 %v4224
        %v4708 = vunpack.c.l.b16 %v4225
        %v4709 = vunpack.c.h.b16 %v4225
        %v4710 = vunpack.c.l.b16 %v4226
        %v4711 = vunpack.c.h.b16 %v4226
        %v4712 = vunpack.c.l.b16 %v4227
        %v4713 = vunpack.c.h.b16 %v4227
        %v4714 = vunpack.c.l.b16 %v4228
        %v4715 = vunpack.c.h.b16 %v4228
        %v4716 = vunpack.c.l.b16 %v4229
        %v4717 = vunpack.c.h.b16 %v4229
        %v4718 = vunpack.c.l.b16 %v4230
        %v4719 = vunpack.c.h.b16 %v4230
        %v4720 = vunpack.c.l.b16 %v4231
        %v4721 = vunpack.c.h.b16 %v4231
        %v4722 = vunpack.c.l.b16 %v4232
        %v4723 = vunpack.c.h.b16 %v4232
        %v4724 = vunpack.c.l.b16 %v4233
        %v4725 = vunpack.c.h.b16 %v4233
        %v4726 = vunpack.c.l.b16 %v4234
        %v4727 = vunpack.c.h.b16 %v4234
        %v4728 = vunpack.c.l.b16 %v4235
        %v4729 = vunpack.c.h.b16 %v4235
        %v4730 = vunpack.c.l.b16 %v4236
        %v4731 = vunpack.c.h.b16 %v4236
        %v4732 = vunpack.c.l.b16 %v4237
        %v4733 = vunpack.c.h.b16 %v4237
        %v4734 = vunpack.c.l.b16 %v4238
        %v4735 = vunpack.c.h.b16 %v4238
        %v4736 = vunpack.c.l.b16 %v4239
        %v4737 = vunpack.c.h.b16 %v4239
        %v4738 = vunpack.c.l.b16 %v4240
        %v4739 = vunpack.c.h.b16 %v4240
        %v4740 = vunpack.c.l.b16 %v4241
        %v4741 = vunpack.c.h.b16 %v4241
        %v4742 = vunpack.c.l.b16 %v4242
        %v4743 = vunpack.c.h.b16 %v4242
        %v4744 = vunpack.c.l.b16 %v4243
        %v4745 = vunpack.c.h.b16 %v4243
        %v4746 = vunpack.c.l.b16 %v4244
        %v4747 = vunpack.c.h.b16 %v4244
        %v4748 = vunpack.c.l.b16 %v4245
        %v4749 = vunpack.c.h.b16 %v4245
        %v4750 = vunpack.c.l.b16 %v4246
        %v4751 = vunpack.c.h.b16 %v4246
        %v4752 = vunpack.c.l.b16 %v4247
        %v4753 = vunpack.c.h.b16 %v4247
        %v4754 = vunpack.c.l.b16 %v4248
        %v4755 = vunpack.c.h.b16 %v4248
        %v4756 = vunpack.c.l.b16 %v4249
        %v4757 = vunpack.c.h.b16 %v4249
        %v4758 = vunpack.c.l.b16 %v4250
        %v4759 = vunpack.c.h.b16 %v4250
        %v4760 = vunpack.c.l.b16 %v4251
        %v4761 = vunpack.c.h.b16 %v4251
        %v4762 = vunpack.c.l.b16 %v4252
        %v4763 = vunpack.c.h.b16 %v4252
        %v4764 = vunpack.c.l.b16 %v4253
        %v4765 = vunpack.c.h.b16 %v4253
        %v4766 = vunpack.c.l.b16 %v4254
        %v4767 = vunpack.c.h.b16 %v4254
        %v4768 = vunpack.c.l.b16 %v4255
        %v4769 = vunpack.c.h.b16 %v4255
        %v4770 = vunpack.c.l.b16 %v4256
        %v4771 = vunpack.c.h.b16 %v4256
        %v4772 = vunpack.c.l.b16 %v4257
        %v4773 = vunpack.c.h.b16 %v4257
        %v4774 = vunpack.c.l.b16 %v4258
        %v4775 = vunpack.c.h.b16 %v4258
        %v4776 = vunpack.c.l.b16 %v4259
        %v4777 = vunpack.c.h.b16 %v4259
        %v4778 = vunpack.c.l.b16 %v4260
        %v4779 = vunpack.c.h.b16 %v4260
        %v4780 = vunpack.c.l.b16 %v4261
        %v4781 = vunpack.c.h.b16 %v4261
        %v4782 = vunpack.c.l.b16 %v4262
        %v4783 = vunpack.c.h.b16 %v4262
        %v4784 = vunpack.c.l.b16 %v4263
        %v4785 = vunpack.c.h.b16 %v4263
        %v4786 = vunpack.c.l.b16 %v4264
        %v4787 = vunpack.c.h.b16 %v4264
        %v4788 = vunpack.c.l.b16 %v4265
        %v4789 = vunpack.c.h.b16 %v4265
        %v4790 = vunpack.c.l.b16 %v4266
        %v4791 = vunpack.c.h.b16 %v4266
        %v4792 = vunpack.c.l.b16 %v4267
        %v4793 = vunpack.c.h.b16 %v4267
        %v4794 = vunpack.c.l.b16 %v4268
        %v4795 = vunpack.c.h.b16 %v4268
        %v4796 = vunpack.c.l.b16 %v4269
        %v4797 = vunpack.c.h.b16 %v4269
        %v4798 = vunpack.c.l.b16 %v4270
        %v4799 = vunpack.c.h.b16 %v4270
        %v4800 = vunpack.c.l.b16 %v4271
        %v4801 = vunpack.c.h.b16 %v4271
        %v4802 = vunpack.c.l.b16 %v4272
        %v4803 = vunpack.c.h.b16 %v4272
        %v4804 = vunpack.c.l.b16 %v4273
        %v4805 = vunpack.c.h.b16 %v4273
        %v4806 = vunpack.c.l.b16 %v4274
        %v4807 = vunpack.c.h.b16 %v4274
        %v4808 = vunpack.c.l.b16 %v4275
        %v4809 = vunpack.c.h.b16 %v4275
        %v4810 = vunpack.c.l.b16 %v4276
        %v4811 = vunpack.c.h.b16 %v4276
        %v4812 = vunpack.c.l.b16 %v4277
        %v4813 = vunpack.c.h.b16 %v4277
        %v4814 = vpack.c.b16 %v4496, %v4494
        %v4815 = vpack.c.b16 %v4497, %v4495
        %v4816 = vpack.c.b16 %v4500, %v4498
        %v4817 = vpack.c.b16 %v4501, %v4499
        %v4818 = vpack.c.b16 %v4504, %v4502
        %v4819 = vpack.c.b16 %v4505, %v4503
        %v4820 = vpack.c.b16 %v4508, %v4506
        %v4821 = vpack.c.b16 %v4509, %v4507
        %v4822 = vpack.c.b16 %v4512, %v4510
        %v4823 = vpack.c.b16 %v4513, %v4511
        %v4824 = vpack.c.b16 %v4516, %v4514
        %v4825 = vpack.c.b16 %v4517, %v4515
        %v4826 = vpack.c.b16 %v4520, %v4518
        %v4827 = vpack.c.b16 %v4521, %v4519
        %v4828 = vpack.c.b16 %v4524, %v4522
        %v4829 = vpack.c.b16 %v4525, %v4523
        %v4830 = vpack.c.b16 %v4528, %v4526
        %v4831 = vpack.c.b16 %v4529, %v4527
        %v4832 = vpack.c.b16 %v4532, %v4530
        %v4833 = vpack.c.b16 %v4533, %v4531
        %v4834 = vpack.c.b16 %v4536, %v4534
        %v4835 = vpack.c.b16 %v4537, %v4535
        %v4836 = vpack.c.b16 %v4540, %v4538
        %v4837 = vpack.c.b16 %v4541, %v4539
        %v4838 = vpack.c.b16 %v4544, %v4542
        %v4839 = vpack.c.b16 %v4545, %v4543
        %v4840 = vpack.c.b16 %v4548, %v4546
        %v4841 = vpack.c.b16 %v4549, %v4547
        %v4842 = vpack.c.b16 %v4552, %v4550
        %v4843 = vpack.c.b16 %v4553, %v4551
        %v4844 = vpack.c.b16 %v4556, %v4554
        %v4845 = vpack.c.b16 %v4557, %v4555
        %v4846 = vpack.c.b16 %v4560, %v4558
        %v4847 = vpack.c.b16 %v4561, %v4559
        %v4848 = vpack.c.b16 %v4564, %v4562
        %v4849 = vpack.c.b16 %v4565, %v4563
        %v4850 = vpack.c.b16 %v4568, %v4566
        %v4851 = vpack.c.b16 %v4569, %v4567
        %v4852 = vpack.c.b16 %v4572, %v4570
        %v4853 = vpack.c.b16 %v4573, %v4571
        %v4854 = vpack.c.b16 %v4576, %v4574
        %v4855 = vpack.c.b16 %v4577, %v4575
        %v4856 = vpack.c.b16 %v4580, %v4578
        %v4857 = vpack.c.b16 %v4581, %v4579
        %v4858 = vpack.c.b16 %v4584, %v4582
        %v4859 = vpack.c.b16 %v4585, %v4583
        %v4860 = vpack.c.b16 %v4588, %v4586
        %v4861 = vpack.c.b16 %v4589, %v4587
        %v4862 = vpack.c.b16 %v4592, %v4590
        %v4863 = vpack.c.b16 %v4593, %v4591
        %v4864 = vpack.c.b16 %v4596, %v4594
        %v4865 = vpack.c.b16 %v4597, %v4595
        %v4866 = vpack.c.b16 %v4600, %v4598
        %v4867 = vpack.c.b16 %v4601, %v4599
        %v4868 = vpack.c.b16 %v4604, %v4602
        %v4869 = vpack.c.b16 %v4605, %v4603
        %v4870 = vpack.c.b16 %v4608, %v4606
        %v4871 = vpack.c.b16 %v4609, %v4607
        %v4872 = vpack.c.b16 %v4612, %v4610
        %v4873 = vpack.c.b16 %v4613, %v4611
        %v4874 = vpack.c.b16 %v4616, %v4614
        %v4875 = vpack.c.b16 %v4617, %v4615
        %v4876 = vpack.c.b16 %v4620, %v4618
        %v4877 = vpack.c.b16 %v4621, %v4619
        %v4878 = vpack.c.b16 %v4624, %v4622
        %v4879 = vpack.c.b16 %v4625, %v4623
        %v4880 = vpack.c.b16 %v4628, %v4626
        %v4881 = vpack.c.b16 %v4629, %v4627
        %v4882 = vpack.c.b16 %v4632, %v4630
        %v4883 = vpack.c.b16 %v4633, %v4631
        %v4884 = vpack.c.b16 %v4636, %v4634
        %v4885 = vpack.c.b16 %v4637, %v4635
        %v4886 = vpack.c.b16 %v4640, %v4638
        %v4887 = vpack.c.b16 %v4641, %v4639
        %v4888 = vpack.c.b16 %v4644, %v4642
        %v4889 = vpack.c.b16 %v4645, %v4643
        %v4890 = vpack.c.b16 %v4648, %v4646
        %v4891 = vpack.c.b16 %v4649, %v4647
        %v4892 = vpack.c.b16 %v4652, %v4650
        %v4893 = vpack.c.b16 %v4653, %v4651
        %v4894 = vpack.c.b16 %v4656, %v4654
        %v4895 = vpack.c.b16 %v4657, %v4655
        %v4896 = vpack.c.b16 %v4660, %v4658
        %v4897 = vpack.c.b16 %v4661, %v4659
        %v4898 = vpack.c.b16 %v4664, %v4662
        %v4899 = vpack.c.b16 %v4665, %v4663
        %v4900 = vpack.c.b16 %v4668, %v4666
        %v4901 = vpack.c.b16 %v4669, %v4667
        %v4902 = vpack.c.b16 %v4672, %v4670
        %v4903 = vpack.c.b16 %v4673, %v4671
        %v4904 = vpack.c.b16 %v4676, %v4674
        %v4905 = vpack.c.b16 %v4677, %v4675
        %v4906 = vpack.c.b16 %v4680, %v4678
        %v4907 = vpack.c.b16 %v4681, %v4679
        %v4908 = vpack.c.b16 %v4684, %v4682
        %v4909 = vpack.c.b16 %v4685, %v4683
        %v4910 = vpack.c.b16 %v4688, %v4686
        %v4911 = vpack.c.b16 %v4689, %v4687
        %v4912 = vpack.c.b16 %v4692, %v4690
        %v4913 = vpack.c.b16 %v4693, %v4691
        %v4914 = vpack.c.b16 %v4696, %v4694
        %v4915 = vpack.c.b16 %v4697, %v4695
        %v4916 = vpack.c.b16 %v4700, %v4698
        %v4917 = vpack.c.b16 %v4701, %v4699
        %v4918 = vpack.c.b16 %v4704, %v4702
        %v4919 = vpack.c.b16 %v4705, %v4703
        %v4920 = vpack.c.b16 %v4708, %v4706
        %v4921 = vpack.c.b16 %v4709, %v4707
        %v4922 = vpack.c.b16 %v4712, %v4710
        %v4923 = vpack.c.b16 %v4713, %v4711
        %v4924 = vpack.c.b16 %v4716, %v4714
        %v4925 = vpack.c.b16 %v4717, %v4715
        %v4926 = vpack.c.b16 %v4720, %v4718
        %v4927 = vpack.c.b16 %v4721, %v4719
        %v4928 = vpack.c.b16 %v4724, %v4722
        %v4929 = vpack.c.b16 %v4725, %v4723
        %v4930 = vpack.c.b16 %v4728, %v4726
        %v4931 = vpack.c.b16 %v4729, %v4727
        %v4932 = vpack.c.b16 %v4732, %v4730
        %v4933 = vpack.c.b16 %v4733, %v4731
        %v4934 = vpack.c.b16 %v4736, %v4734
        %v4935 = vpack.c.b16 %v4737, %v4735
        %v4936 = vpack.c.b16 %v4740, %v4738
        %v4937 = vpack.c.b16 %v4741, %v4739
        %v4938 = vpack.c.b16 %v4744, %v4742
        %v4939 = vpack.c.b16 %v4745, %v4743
        %v4940 = vpack.c.b16 %v4748, %v4746
        %v4941 = vpack.c.b16 %v4749, %v4747
        %v4942 = vpack.c.b16 %v4752, %v4750
        %v4943 = vpack.c.b16 %v4753, %v4751
        %v4944 = vpack.c.b16 %v4756, %v4754
        %v4945 = vpack.c.b16 %v4757, %v4755
        %v4946 = vpack.c.b16 %v4760, %v4758
        %v4947 = vpack.c.b16 %v4761, %v4759
        %v4948 = vpack.c.b16 %v4764, %v4762
        %v4949 = vpack.c.b16 %v4765, %v4763
        %v4950 = vpack.c.b16 %v4768, %v4766
        %v4951 = vpack.c.b16 %v4769, %v4767
        %v4952 = vpack.c.b16 %v4772, %v4770
        %v4953 = vpack.c.b16 %v4773, %v4771
        %v4954 = vpack.c.b16 %v4776, %v4774
        %v4955 = vpack.c.b16 %v4777, %v4775
        %v4956 = vpack.c.b16 %v4780, %v4778
        %v4957 = vpack.c.b16 %v4781, %v4779
        %v4958 = vpack.c.b16 %v4784, %v4782
        %v4959 = vpack.c.b16 %v4785, %v4783
        %v4960 = vpack.c.b16 %v4788, %v4786
        %v4961 = vpack.c.b16 %v4789, %v4787
        %v4962 = vpack.c.b16 %v4792, %v4790
        %v4963 = vpack.c.b16 %v4793, %v4791
        %v4964 = vpack.c.b16 %v4796, %v4794
        %v4965 = vpack.c.b16 %v4797, %v4795
        %v4966 = vpack.c.b16 %v4800, %v4798
        %v4967 = vpack.c.b16 %v4801, %v4799
        %v4968 = vpack.c.b16 %v4804, %v4802
        %v4969 = vpack.c.b16 %v4805, %v4803
        %v4970 = vpack.c.b16 %v4808, %v4806
        %v4971 = vpack.c.b16 %v4809, %v4807
        %v4972 = vpack.c.b16 %v4812, %v4810
        %v4973 = vpack.c.b16 %v4813, %v4811
        %5134 = vmatpush.bf16.msra.mxu0 %v4828
        %5135 = vmatpush.bf16.msra.mxu0 %v4826
        %5136 = vmatpush.bf16.msra.mxu0 %v4824
        %5137 = vmatpush.bf16.msra.mxu0 %v4822
        %5138 = vmatpush.bf16.msra.mxu0 %v4820
        %5139 = vmatpush.bf16.msra.mxu0 %v4818
        %5140 = vmatpush.bf16.msra.mxu0 %v4816
        %5141 = vmatpush.bf16.msra.mxu0 %v4814
        %5142 = vmatmul.bf16.gmra.mxu0 %v4314
        %v5143 = vpop.f32.mrf.mxu0
        %v5144 = vadd.f32 %v4280, %v5143
        %v5145 = vpop.f32.mrf.mxu0
        %v5146 = vadd.f32 %v4280, %v5145
        %5147 = vdwg.mxu0
        %5148 = vmatpush.bf16.msra.mxu0 %v4844
        %5149 = vmatpush.bf16.msra.mxu0 %v4842
        %5150 = vmatpush.bf16.msra.mxu0 %v4840
        %5151 = vmatpush.bf16.msra.mxu0 %v4838
        %5152 = vmatpush.bf16.msra.mxu0 %v4836
        %5153 = vmatpush.bf16.msra.mxu0 %v4834
        %5154 = vmatpush.bf16.msra.mxu0 %v4832
        %5155 = vmatpush.bf16.msra.mxu0 %v4830
        %5156 = vmatmul.bf16.gmra.mxu0 %v4315
        %v5157 = vpop.f32.mrf.mxu0
        %v5158 = vadd.f32 %v5144, %v5157
        %v5159 = vpop.f32.mrf.mxu0
        %v5160 = vadd.f32 %v5146, %v5159
        %5161 = vdwg.mxu0
        %5162 = vmatpush.bf16.msra.mxu0 %v4860
        %5163 = vmatpush.bf16.msra.mxu0 %v4858
        %5164 = vmatpush.bf16.msra.mxu0 %v4856
        %5165 = vmatpush.bf16.msra.mxu0 %v4854
        %5166 = vmatpush.bf16.msra.mxu0 %v4852
        %5167 = vmatpush.bf16.msra.mxu0 %v4850
        %5168 = vmatpush.bf16.msra.mxu0 %v4848
        %5169 = vmatpush.bf16.msra.mxu0 %v4846
        %5170 = vmatmul.bf16.gmra.mxu0 %v4316
        %v5171 = vpop.f32.mrf.mxu0
        %v5172 = vadd.f32 %v5158, %v5171
        %v5173 = vpop.f32.mrf.mxu0
        %v5174 = vadd.f32 %v5160, %v5173
        %5175 = vdwg.mxu0
        %5176 = vmatpush.bf16.msra.mxu0 %v4876
        %5177 = vmatpush.bf16.msra.mxu0 %v4874
        %5178 = vmatpush.bf16.msra.mxu0 %v4872
        %5179 = vmatpush.bf16.msra.mxu0 %v4870
        %5180 = vmatpush.bf16.msra.mxu0 %v4868
        %5181 = vmatpush.bf16.msra.mxu0 %v4866
        %5182 = vmatpush.bf16.msra.mxu0 %v4864
        %5183 = vmatpush.bf16.msra.mxu0 %v4862
        %5184 = vmatmul.bf16.gmra.mxu0 %v4317
        %v5185 = vpop.f32.mrf.mxu0
        %v5186 = vadd.f32 %v5172, %v5185
        %v5187 = vpop.f32.mrf.mxu0
        %v5188 = vadd.f32 %v5174, %v5187
        %5189 = vdwg.mxu0
        %5190 = vmatpush.bf16.msra.mxu0 %v4892
        %5191 = vmatpush.bf16.msra.mxu0 %v4890
        %5192 = vmatpush.bf16.msra.mxu0 %v4888
        %5193 = vmatpush.bf16.msra.mxu0 %v4886
        %5194 = vmatpush.bf16.msra.mxu0 %v4884
        %5195 = vmatpush.bf16.msra.mxu0 %v4882
        %5196 = vmatpush.bf16.msra.mxu0 %v4880
        %5197 = vmatpush.bf16.msra.mxu0 %v4878
        %5198 = vmatmul.bf16.gmra.mxu0 %v4318
        %v5199 = vpop.f32.mrf.mxu0
        %v5200 = vadd.f32 %v5186, %v5199
        %v5201 = vpop.f32.mrf.mxu0
        %v5202 = vadd.f32 %v5188, %v5201
        %5203 = vdwg.mxu0
        %5204 = vmatpush.bf16.msra.mxu0 %v4908
        %5205 = vmatpush.bf16.msra.mxu0 %v4906
        %5206 = vmatpush.bf16.msra.mxu0 %v4904
        %5207 = vmatpush.bf16.msra.mxu0 %v4902
        %5208 = vmatpush.bf16.msra.mxu0 %v4900
        %5209 = vmatpush.bf16.msra.mxu0 %v4898
        %5210 = vmatpush.bf16.msra.mxu0 %v4896
        %5211 = vmatpush.bf16.msra.mxu0 %v4894
        %5212 = vmatmul.bf16.gmra.mxu0 %v4319
        %v5213 = vpop.f32.mrf.mxu0
        %v5214 = vadd.f32 %v5200, %v5213
        %v5215 = vpop.f32.mrf.mxu0
        %v5216 = vadd.f32 %v5202, %v5215
        %5217 = vdwg.mxu0
        %5218 = vmatpush.bf16.msra.mxu0 %v4924
        %5219 = vmatpush.bf16.msra.mxu0 %v4922
        %5220 = vmatpush.bf16.msra.mxu0 %v4920
        %5221 = vmatpush.bf16.msra.mxu0 %v4918
        %5222 = vmatpush.bf16.msra.mxu0 %v4916
        %5223 = vmatpush.bf16.msra.mxu0 %v4914
        %5224 = vmatpush.bf16.msra.mxu0 %v4912
        %5225 = vmatpush.bf16.msra.mxu0 %v4910
        %5226 = vmatmul.bf16.gmra.mxu0 %v4320
        %v5227 = vpop.f32.mrf.mxu0
        %v5228 = vadd.f32 %v5214, %v5227
        %v5229 = vpop.f32.mrf.mxu0
        %v5230 = vadd.f32 %v5216, %v5229
        %5231 = vdwg.mxu0
        %5232 = vmatpush.bf16.msra.mxu0 %v4940
        %5233 = vmatpush.bf16.msra.mxu0 %v4938
        %5234 = vmatpush.bf16.msra.mxu0 %v4936
        %5235 = vmatpush.bf16.msra.mxu0 %v4934
        %5236 = vmatpush.bf16.msra.mxu0 %v4932
        %5237 = vmatpush.bf16.msra.mxu0 %v4930
        %5238 = vmatpush.bf16.msra.mxu0 %v4928
        %5239 = vmatpush.bf16.msra.mxu0 %v4926
        %5240 = vmatmul.bf16.gmra.mxu0 %v4321
        %v5241 = vpop.f32.mrf.mxu0
        %v5242 = vadd.f32 %v5228, %v5241
        %v5243 = vpop.f32.mrf.mxu0
        %v5244 = vadd.f32 %v5230, %v5243
        %5245 = vdwg.mxu0
        %5246 = vmatpush.bf16.msra.mxu0 %v4956
        %5247 = vmatpush.bf16.msra.mxu0 %v4954
        %5248 = vmatpush.bf16.msra.mxu0 %v4952
        %5249 = vmatpush.bf16.msra.mxu0 %v4950
        %5250 = vmatpush.bf16.msra.mxu0 %v4948
        %5251 = vmatpush.bf16.msra.mxu0 %v4946
        %5252 = vmatpush.bf16.msra.mxu0 %v4944
        %5253 = vmatpush.bf16.msra.mxu0 %v4942
        %5254 = vmatmul.bf16.gmra.mxu0 %v4322
        %v5255 = vpop.f32.mrf.mxu0
        %v5256 = vadd.f32 %v5242, %v5255
        %v5257 = vpop.f32.mrf.mxu0
        %v5258 = vadd.f32 %v5244, %v5257
        %5259 = vdwg.mxu0
        %5260 = vmatpush.bf16.msra.mxu0 %v4972
        %5261 = vmatpush.bf16.msra.mxu0 %v4970
        %5262 = vmatpush.bf16.msra.mxu0 %v4968
        %5263 = vmatpush.bf16.msra.mxu0 %v4966
        %5264 = vmatpush.bf16.msra.mxu0 %v4964
        %5265 = vmatpush.bf16.msra.mxu0 %v4962
        %5266 = vmatpush.bf16.msra.mxu0 %v4960
        %5267 = vmatpush.bf16.msra.mxu0 %v4958
        %5268 = vmatmul.bf16.gmra.mxu0 %v4323
        %v5269 = vpop.f32.mrf.mxu0
        %v5270 = vadd.f32 %v5256, %v5269
        %v5271 = vpop.f32.mrf.mxu0
        %v5272 = vadd.f32 %v5258, %v5271
        %5273 = vdwg.mxu0
        %5274 = vmatpush.bf16.msra.mxu0 %v4829
        %5275 = vmatpush.bf16.msra.mxu0 %v4827
        %5276 = vmatpush.bf16.msra.mxu0 %v4825
        %5277 = vmatpush.bf16.msra.mxu0 %v4823
        %5278 = vmatpush.bf16.msra.mxu0 %v4821
        %5279 = vmatpush.bf16.msra.mxu0 %v4819
        %5280 = vmatpush.bf16.msra.mxu0 %v4817
        %5281 = vmatpush.bf16.msra.mxu0 %v4815
        %5282 = vmatmul.bf16.gmra.mxu0 %v4314
        %v5283 = vpop.f32.mrf.mxu0
        %v5284 = vadd.f32 %v4281, %v5283
        %v5285 = vpop.f32.mrf.mxu0
        %v5286 = vadd.f32 %v4281, %v5285
        %5287 = vdwg.mxu0
        %5288 = vmatpush.bf16.msra.mxu0 %v4845
        %5289 = vmatpush.bf16.msra.mxu0 %v4843
        %5290 = vmatpush.bf16.msra.mxu0 %v4841
        %5291 = vmatpush.bf16.msra.mxu0 %v4839
        %5292 = vmatpush.bf16.msra.mxu0 %v4837
        %5293 = vmatpush.bf16.msra.mxu0 %v4835
        %5294 = vmatpush.bf16.msra.mxu0 %v4833
        %5295 = vmatpush.bf16.msra.mxu0 %v4831
        %5296 = vmatmul.bf16.gmra.mxu0 %v4315
        %v5297 = vpop.f32.mrf.mxu0
        %v5298 = vadd.f32 %v5284, %v5297
        %v5299 = vpop.f32.mrf.mxu0
        %v5300 = vadd.f32 %v5286, %v5299
        %5301 = vdwg.mxu0
        %5302 = vmatpush.bf16.msra.mxu0 %v4861
        %5303 = vmatpush.bf16.msra.mxu0 %v4859
        %5304 = vmatpush.bf16.msra.mxu0 %v4857
        %5305 = vmatpush.bf16.msra.mxu0 %v4855
        %5306 = vmatpush.bf16.msra.mxu0 %v4853
        %5307 = vmatpush.bf16.msra.mxu0 %v4851
        %5308 = vmatpush.bf16.msra.mxu0 %v4849
        %5309 = vmatpush.bf16.msra.mxu0 %v4847
        %5310 = vmatmul.bf16.gmra.mxu0 %v4316
        %v5311 = vpop.f32.mrf.mxu0
        %v5312 = vadd.f32 %v5298, %v5311
        %v5313 = vpop.f32.mrf.mxu0
        %v5314 = vadd.f32 %v5300, %v5313
        %5315 = vdwg.mxu0
        %5316 = vmatpush.bf16.msra.mxu0 %v4877
        %5317 = vmatpush.bf16.msra.mxu0 %v4875
        %5318 = vmatpush.bf16.msra.mxu0 %v4873
        %5319 = vmatpush.bf16.msra.mxu0 %v4871
        %5320 = vmatpush.bf16.msra.mxu0 %v4869
        %5321 = vmatpush.bf16.msra.mxu0 %v4867
        %5322 = vmatpush.bf16.msra.mxu0 %v4865
        %5323 = vmatpush.bf16.msra.mxu0 %v4863
        %5324 = vmatmul.bf16.gmra.mxu0 %v4317
        %v5325 = vpop.f32.mrf.mxu0
        %v5326 = vadd.f32 %v5312, %v5325
        %v5327 = vpop.f32.mrf.mxu0
        %v5328 = vadd.f32 %v5314, %v5327
        %5329 = vdwg.mxu0
        %5330 = vmatpush.bf16.msra.mxu0 %v4893
        %5331 = vmatpush.bf16.msra.mxu0 %v4891
        %5332 = vmatpush.bf16.msra.mxu0 %v4889
        %5333 = vmatpush.bf16.msra.mxu0 %v4887
        %5334 = vmatpush.bf16.msra.mxu0 %v4885
        %5335 = vmatpush.bf16.msra.mxu0 %v4883
        %5336 = vmatpush.bf16.msra.mxu0 %v4881
        %5337 = vmatpush.bf16.msra.mxu0 %v4879
        %5338 = vmatmul.bf16.gmra.mxu0 %v4318
        %v5339 = vpop.f32.mrf.mxu0
        %v5340 = vadd.f32 %v5326, %v5339
        %v5341 = vpop.f32.mrf.mxu0
        %v5342 = vadd.f32 %v5328, %v5341
        %5343 = vdwg.mxu0
        %5344 = vmatpush.bf16.msra.mxu0 %v4909
        %5345 = vmatpush.bf16.msra.mxu0 %v4907
        %5346 = vmatpush.bf16.msra.mxu0 %v4905
        %5347 = vmatpush.bf16.msra.mxu0 %v4903
        %5348 = vmatpush.bf16.msra.mxu0 %v4901
        %5349 = vmatpush.bf16.msra.mxu0 %v4899
        %5350 = vmatpush.bf16.msra.mxu0 %v4897
        %5351 = vmatpush.bf16.msra.mxu0 %v4895
        %5352 = vmatmul.bf16.gmra.mxu0 %v4319
        %v5353 = vpop.f32.mrf.mxu0
        %v5354 = vadd.f32 %v5340, %v5353
        %v5355 = vpop.f32.mrf.mxu0
        %v5356 = vadd.f32 %v5342, %v5355
        %5357 = vdwg.mxu0
        %5358 = vmatpush.bf16.msra.mxu0 %v4925
        %5359 = vmatpush.bf16.msra.mxu0 %v4923
        %5360 = vmatpush.bf16.msra.mxu0 %v4921
        %5361 = vmatpush.bf16.msra.mxu0 %v4919
        %5362 = vmatpush.bf16.msra.mxu0 %v4917
        %5363 = vmatpush.bf16.msra.mxu0 %v4915
        %5364 = vmatpush.bf16.msra.mxu0 %v4913
        %5365 = vmatpush.bf16.msra.mxu0 %v4911
        %5366 = vmatmul.bf16.gmra.mxu0 %v4320
        %v5367 = vpop.f32.mrf.mxu0
        %v5368 = vadd.f32 %v5354, %v5367
        %v5369 = vpop.f32.mrf.mxu0
        %v5370 = vadd.f32 %v5356, %v5369
        %5371 = vdwg.mxu0
        %5372 = vmatpush.bf16.msra.mxu0 %v4941
        %5373 = vmatpush.bf16.msra.mxu0 %v4939
        %5374 = vmatpush.bf16.msra.mxu0 %v4937
        %5375 = vmatpush.bf16.msra.mxu0 %v4935
        %5376 = vmatpush.bf16.msra.mxu0 %v4933
        %5377 = vmatpush.bf16.msra.mxu0 %v4931
        %5378 = vmatpush.bf16.msra.mxu0 %v4929
        %5379 = vmatpush.bf16.msra.mxu0 %v4927
        %5380 = vmatmul.bf16.gmra.mxu0 %v4321
        %v5381 = vpop.f32.mrf.mxu0
        %v5382 = vadd.f32 %v5368, %v5381
        %v5383 = vpop.f32.mrf.mxu0
        %v5384 = vadd.f32 %v5370, %v5383
        %5385 = vdwg.mxu0
        %5386 = vmatpush.bf16.msra.mxu0 %v4957
        %5387 = vmatpush.bf16.msra.mxu0 %v4955
        %5388 = vmatpush.bf16.msra.mxu0 %v4953
        %5389 = vmatpush.bf16.msra.mxu0 %v4951
        %5390 = vmatpush.bf16.msra.mxu0 %v4949
        %5391 = vmatpush.bf16.msra.mxu0 %v4947
        %5392 = vmatpush.bf16.msra.mxu0 %v4945
        %5393 = vmatpush.bf16.msra.mxu0 %v4943
        %5394 = vmatmul.bf16.gmra.mxu0 %v4322
        %v5395 = vpop.f32.mrf.mxu0
        %v5396 = vadd.f32 %v5382, %v5395
        %v5397 = vpop.f32.mrf.mxu0
        %v5398 = vadd.f32 %v5384, %v5397
        %5399 = vdwg.mxu0
        %5400 = vmatpush.bf16.msra.mxu0 %v4973
        %5401 = vmatpush.bf16.msra.mxu0 %v4971
        %5402 = vmatpush.bf16.msra.mxu0 %v4969
        %5403 = vmatpush.bf16.msra.mxu0 %v4967
        %5404 = vmatpush.bf16.msra.mxu0 %v4965
        %5405 = vmatpush.bf16.msra.mxu0 %v4963
        %5406 = vmatpush.bf16.msra.mxu0 %v4961
        %5407 = vmatpush.bf16.msra.mxu0 %v4959
        %5408 = vmatmul.bf16.gmra.mxu0 %v4323
        %v5409 = vpop.f32.mrf.mxu0
        %v5410 = vadd.f32 %v5396, %v5409
        %v5411 = vpop.f32.mrf.mxu0
        %v5412 = vadd.f32 %v5398, %v5411
        %5413 = vdwg.mxu0
        %v5414 = vmax.f32 %v5270, 0.0
        %v5415 = vmax.f32 %v5410, 0.0
        %v5416 = vmax.f32 %v5272, 0.0
        %v5417 = vmax.f32 %v5412, 0.0
        %v5418 = vpack.c.bf16 %v5416, %v5414
        %v5419 = vpack.c.bf16 %v5417, %v5415
        %v5420 = vld [vmem:[%s9] sm:$0xf]
        %v5421 = vld [vmem:[%s9 + $0x4] sm:$0xf]
        %v5422 = vld [vmem:[%s9 + $0x8] sm:$0xf]
        %v5423 = vld [vmem:[%s9 + $0xc] sm:$0xf]
        %v5424 = vld [vmem:[%s9 + $0x10] sm:$0xf]
        %v5425 = vld [vmem:[%s9 + $0x14] sm:$0xf]
        %v5426 = vld [vmem:[%s9 + $0x18] sm:$0xf]
        %v5427 = vld [vmem:[%s9 + $0x1c] sm:$0xf]
        %v5428 = vld [vmem:[%s9 + $0x20] sm:$0xf]
        %v5429 = vld [vmem:[%s9 + $0x24] sm:$0xf]
        %v5430 = vld [vmem:[%s9 + $0x28] sm:$0xf]
        %v5431 = vld [vmem:[%s9 + $0x2c] sm:$0xf]
        %v5432 = vld [vmem:[%s9 + $0x30] sm:$0xf]
        %v5433 = vld [vmem:[%s9 + $0x34] sm:$0xf]
        %v5434 = vld [vmem:[%s9 + $0x38] sm:$0xf]
        %v5435 = vld [vmem:[%s9 + $0x3c] sm:$0xf]
        %v5436 = vld [vmem:[%s9 + $0x40] sm:$0xf]
        %v5437 = vld [vmem:[%s9 + $0x44] sm:$0xf]
        %v5438 = vld [vmem:[%s9 + $0x48] sm:$0xf]
        %v5439 = vld [vmem:[%s9 + $0x4c] sm:$0xf]
        %v5440 = vld [vmem:[%s9 + $0x50] sm:$0xf]
        %v5441 = vld [vmem:[%s9 + $0x54] sm:$0xf]
        %v5442 = vld [vmem:[%s9 + $0x58] sm:$0xf]
        %v5443 = vld [vmem:[%s9 + $0x5c] sm:$0xf]
        %v5444 = vld [vmem:[%s9 + $0x60] sm:$0xf]
        %v5445 = vld [vmem:[%s9 + $0x64] sm:$0xf]
        %v5446 = vld [vmem:[%s9 + $0x68] sm:$0xf]
        %v5447 = vld [vmem:[%s9 + $0x6c] sm:$0xf]
        %v5448 = vld [vmem:[%s9 + $0x70] sm:$0xf]
        %v5449 = vld [vmem:[%s9 + $0x74] sm:$0xf]
        %v5450 = vld [vmem:[%s9 + $0x78] sm:$0xf]
        %v5451 = vld [vmem:[%s9 + $0x7c] sm:$0xf]
        %v5452 = vld [vmem:[%s10] sm:$0xf]
        %v5453 = vld [vmem:[%s10 + $0x4] sm:$0xf]
        %v5454 = vld [vmem:[%s10 + $0x8] sm:$0xf]
        %v5455 = vld [vmem:[%s10 + $0xc] sm:$0xf]
        %v5456 = vld [vmem:[%s10 + $0x10] sm:$0xf]
        %v5457 = vld [vmem:[%s10 + $0x14] sm:$0xf]
        %v5458 = vld [vmem:[%s10 + $0x18] sm:$0xf]
        %v5459 = vld [vmem:[%s10 + $0x1c] sm:$0xf]
        %v5460 = vld [vmem:[%s10 + $0x20] sm:$0xf]
        %v5461 = vld [vmem:[%s10 + $0x24] sm:$0xf]
        %v5462 = vld [vmem:[%s10 + $0x28] sm:$0xf]
        %v5463 = vld [vmem:[%s10 + $0x2c] sm:$0xf]
        %v5464 = vld [vmem:[%s10 + $0x30] sm:$0xf]
        %v5465 = vld [vmem:[%s10 + $0x34] sm:$0xf]
        %v5466 = vld [vmem:[%s10 + $0x38] sm:$0xf]
        %v5467 = vld [vmem:[%s10 + $0x3c] sm:$0xf]
        %v5468 = vunpack.c.l.b16 %v536
        %v5469 = vunpack.c.l.b16 %v537
        %v5470 = vpack.c.b16 %v5469, %v5468
        %v5488 = vunpack.c.l.b16 %v5452
        %v5489 = vunpack.c.l.b16 %v5453
        %v5490 = vunpack.c.l.b16 %v5454
        %v5491 = vunpack.c.l.b16 %v5455
        %v5492 = vunpack.c.l.b16 %v5456
        %v5493 = vunpack.c.l.b16 %v5457
        %v5494 = vunpack.c.l.b16 %v5458
        %v5495 = vunpack.c.l.b16 %v5459
        %v5496 = vunpack.c.l.b16 %v5460
        %v5497 = vunpack.c.l.b16 %v5461
        %v5498 = vunpack.c.l.b16 %v5462
        %v5499 = vunpack.c.l.b16 %v5463
        %v5500 = vunpack.c.l.b16 %v5464
        %v5501 = vunpack.c.l.b16 %v5465
        %v5502 = vunpack.c.l.b16 %v5466
        %v5503 = vunpack.c.l.b16 %v5467
        %v5504 = vpack.c.b16 %v5489, %v5488
        %v5505 = vpack.c.b16 %v5491, %v5490
        %v5506 = vpack.c.b16 %v5493, %v5492
        %v5507 = vpack.c.b16 %v5495, %v5494
        %v5508 = vpack.c.b16 %v5497, %v5496
        %v5509 = vpack.c.b16 %v5499, %v5498
        %v5510 = vpack.c.b16 %v5501, %v5500
        %v5511 = vpack.c.b16 %v5503, %v5502
        %5520 = vmatpush.bf16.msra.mxu0 %v5511
        %5521 = vmatpush.bf16.msra.mxu0 %v5510
        %5522 = vmatpush.bf16.msra.mxu0 %v5509
        %5523 = vmatpush.bf16.msra.mxu0 %v5508
        %5524 = vmatpush.bf16.msra.mxu0 %v5507
        %5525 = vmatpush.bf16.msra.mxu0 %v5506
        %5526 = vmatpush.bf16.msra.mxu0 %v5505
        %5527 = vmatpush.bf16.msra.mxu0 %v5504
        %5528 = vmatmul.bf16.gmra.mxu0 %v5470
        %v5529 = vpop.f32.mrf.mxu0
        %v5530 = vadd.f32 0.0, %v5529
        %v5531 = vpop.f32.mrf.mxu0
        %v5532 = vadd.f32 0.0, %v5531
        %5533 = vdwg.mxu0
        %v5566 = vunpack.c.l.b16 %v5420
        %v5567 = vunpack.c.l.b16 %v5421
        %v5568 = vunpack.c.l.b16 %v5422
        %v5569 = vunpack.c.l.b16 %v5423
        %v5570 = vunpack.c.l.b16 %v5424
        %v5571 = vunpack.c.l.b16 %v5425
        %v5572 = vunpack.c.l.b16 %v5426
        %v5573 = vunpack.c.l.b16 %v5427
        %v5574 = vunpack.c.l.b16 %v5428
        %v5575 = vunpack.c.l.b16 %v5429
        %v5576 = vunpack.c.l.b16 %v5430
        %v5577 = vunpack.c.l.b16 %v5431
        %v5578 = vunpack.c.l.b16 %v5432
        %v5579 = vunpack.c.l.b16 %v5433
        %v5580 = vunpack.c.l.b16 %v5434
        %v5581 = vunpack.c.l.b16 %v5435
        %v5582 = vunpack.c.l.b16 %v5436
        %v5583 = vunpack.c.l.b16 %v5437
        %v5584 = vunpack.c.l.b16 %v5438
        %v5585 = vunpack.c.l.b16 %v5439
        %v5586 = vunpack.c.l.b16 %v5440
        %v5587 = vunpack.c.l.b16 %v5441
        %v5588 = vunpack.c.l.b16 %v5442
        %v5589 = vunpack.c.l.b16 %v5443
        %v5590 = vunpack.c.l.b16 %v5444
        %v5591 = vunpack.c.l.b16 %v5445
        %v5592 = vunpack.c.l.b16 %v5446
        %v5593 = vunpack.c.l.b16 %v5447
        %v5594 = vunpack.c.l.b16 %v5448
        %v5595 = vunpack.c.l.b16 %v5449
        %v5596 = vunpack.c.l.b16 %v5450
        %v5597 = vunpack.c.l.b16 %v5451
        %v5598 = vpack.c.b16 %v5567, %v5566
        %v5599 = vpack.c.b16 %v5569, %v5568
        %v5600 = vpack.c.b16 %v5571, %v5570
        %v5601 = vpack.c.b16 %v5573, %v5572
        %v5602 = vpack.c.b16 %v5575, %v5574
        %v5603 = vpack.c.b16 %v5577, %v5576
        %v5604 = vpack.c.b16 %v5579, %v5578
        %v5605 = vpack.c.b16 %v5581, %v5580
        %v5606 = vpack.c.b16 %v5583, %v5582
        %v5607 = vpack.c.b16 %v5585, %v5584
        %v5608 = vpack.c.b16 %v5587, %v5586
        %v5609 = vpack.c.b16 %v5589, %v5588
        %v5610 = vpack.c.b16 %v5591, %v5590
        %v5611 = vpack.c.b16 %v5593, %v5592
        %v5612 = vpack.c.b16 %v5595, %v5594
        %v5613 = vpack.c.b16 %v5597, %v5596
        %5630 = vmatpush.bf16.msra.mxu0 %v5605
        %5631 = vmatpush.bf16.msra.mxu0 %v5604
        %5632 = vmatpush.bf16.msra.mxu0 %v5603
        %5633 = vmatpush.bf16.msra.mxu0 %v5602
        %5634 = vmatpush.bf16.msra.mxu0 %v5601
        %5635 = vmatpush.bf16.msra.mxu0 %v5600
        %5636 = vmatpush.bf16.msra.mxu0 %v5599
        %5637 = vmatpush.bf16.msra.mxu0 %v5598
        %5638 = vmatmul.bf16.gmra.mxu0 %v5418
        %v5639 = vpop.f32.mrf.mxu0
        %v5640 = vadd.f32 %v5530, %v5639
        %v5641 = vpop.f32.mrf.mxu0
        %v5642 = vadd.f32 %v5532, %v5641
        %5643 = vdwg.mxu0
        %5644 = vmatpush.bf16.msra.mxu0 %v5613
        %5645 = vmatpush.bf16.msra.mxu0 %v5612
        %5646 = vmatpush.bf16.msra.mxu0 %v5611
        %5647 = vmatpush.bf16.msra.mxu0 %v5610
        %5648 = vmatpush.bf16.msra.mxu0 %v5609
        %5649 = vmatpush.bf16.msra.mxu0 %v5608
        %5650 = vmatpush.bf16.msra.mxu0 %v5607
        %5651 = vmatpush.bf16.msra.mxu0 %v5606
        %5652 = vmatmul.bf16.gmra.mxu0 %v5419
        %v5653 = vpop.f32.mrf.mxu0
        %v5654 = vadd.f32 %v5640, %v5653
        %v5655 = vpop.f32.mrf.mxu0
        %v5656 = vadd.f32 %v5642, %v5655
        %5657 = vdwg.mxu0
        %v5658 = vld [vmem:[%s11] sm:$0x1]
        %v5660 = vperm.slane %v5658, 0
        %v5662 = vadd.f32 %v5654, %v5660
        %v5663 = vadd.f32 %v5656, %v5660
        %v5664 = vmax.f32 %v5662, 0.0
        %v5665 = vmax.f32 %v5663, 0.0
        %v5666 = vpack.c.bf16 %v5665, %v5664
        %v5667 = vld [vmem:[%s12] sm:$0xf]
        %v5668 = vld [vmem:[%s12 + $0x4] sm:$0xf]
        %v5669 = vld [vmem:[%s12 + $0x8] sm:$0xf]
        %v5670 = vld [vmem:[%s12 + $0xc] sm:$0xf]
        %v5671 = vld [vmem:[%s12 + $0x10] sm:$0xf]
        %v5672 = vld [vmem:[%s12 + $0x14] sm:$0xf]
        %v5673 = vld [vmem:[%s12 + $0x18] sm:$0xf]
        %v5674 = vld [vmem:[%s12 + $0x1c] sm:$0xf]
        %v5675 = vld [vmem:[%s12 + $0x20] sm:$0xf]
        %v5676 = vld [vmem:[%s12 + $0x24] sm:$0xf]
        %v5677 = vld [vmem:[%s12 + $0x28] sm:$0xf]
        %v5678 = vld [vmem:[%s12 + $0x2c] sm:$0xf]
        %v5679 = vld [vmem:[%s12 + $0x30] sm:$0xf]
        %v5680 = vld [vmem:[%s12 + $0x34] sm:$0xf]
        %v5681 = vld [vmem:[%s12 + $0x38] sm:$0xf]
        %v5682 = vld [vmem:[%s12 + $0x3c] sm:$0xf]
        %v5683 = vld [vmem:[%s13] sm:$0x1]
        %v5685 = vperm.slane %v5683, 0
        %v5703 = vunpack.c.l.b16 %v5667
        %v5704 = vunpack.c.l.b16 %v5668
        %v5705 = vunpack.c.l.b16 %v5669
        %v5706 = vunpack.c.l.b16 %v5670
        %v5707 = vunpack.c.l.b16 %v5671
        %v5708 = vunpack.c.l.b16 %v5672
        %v5709 = vunpack.c.l.b16 %v5673
        %v5710 = vunpack.c.l.b16 %v5674
        %v5711 = vunpack.c.l.b16 %v5675
        %v5712 = vunpack.c.l.b16 %v5676
        %v5713 = vunpack.c.l.b16 %v5677
        %v5714 = vunpack.c.l.b16 %v5678
        %v5715 = vunpack.c.l.b16 %v5679
        %v5716 = vunpack.c.l.b16 %v5680
        %v5717 = vunpack.c.l.b16 %v5681
        %v5718 = vunpack.c.l.b16 %v5682
        %v5719 = vpack.c.b16 %v5704, %v5703
        %v5720 = vpack.c.b16 %v5706, %v5705
        %v5721 = vpack.c.b16 %v5708, %v5707
        %v5722 = vpack.c.b16 %v5710, %v5709
        %v5723 = vpack.c.b16 %v5712, %v5711
        %v5724 = vpack.c.b16 %v5714, %v5713
        %v5725 = vpack.c.b16 %v5716, %v5715
        %v5726 = vpack.c.b16 %v5718, %v5717
        %5735 = vmatpush.bf16.msra.mxu0 %v5726
        %5736 = vmatpush.bf16.msra.mxu0 %v5725
        %5737 = vmatpush.bf16.msra.mxu0 %v5724
        %5738 = vmatpush.bf16.msra.mxu0 %v5723
        %5739 = vmatpush.bf16.msra.mxu0 %v5722
        %5740 = vmatpush.bf16.msra.mxu0 %v5721
        %5741 = vmatpush.bf16.msra.mxu0 %v5720
        %5742 = vmatpush.bf16.msra.mxu0 %v5719
        %5743 = vmatmul.bf16.gmra.mxu0 %v5666
        %v5744 = vpop.f32.mrf.mxu0
        %v5745 = vadd.f32 %v5685, %v5744
        %v5746 = vpop.f32.mrf.mxu0
        %v5747 = vadd.f32 %v5685, %v5746
        %5748 = vdwg.mxu0
        %5749 = vmax.xlane.f32.xlu0 %v5745
        %v5750 = vpop.xlane.xlu0 %5749
        %5751 = vmax.xlane.f32.xlu0 %v5747
        %v5752 = vpop.xlane.xlu0 %5751
        %v5753 = vsub.f32 %v5745, %v5750
        %v5754 = vsub.f32 %v5747, %v5752
        %v5755 = vmul.f32 %v5753, 1.442695
        %v5756 = vpow.pop %v5755
        %v5757 = vmul.f32 %v5754, 1.442695
        %v5758 = vpow.pop %v5757
        %5759 = vadd.xlane.f32.xlu0 %v5756
        %v5760 = vpop.xlane.xlu0 %5759
        %5761 = vadd.xlane.f32.xlu0 %v5758
        %v5762 = vpop.xlane.xlu0 %5761
        %v5763 = vlog2.pop %v5760
        %v5764 = vmul.f32 %v5763, 0.6931472
        %v5765 = vlog2.pop %v5762
        %v5766 = vmul.f32 %v5765, 0.6931472
        %v5767 = vsub.f32 %v5753, %v5764
        %v5768 = vsub.f32 %v5754, %v5766
        %5769 = vst [vmem:[%s534] sm:$0xff] %v5767
        %5770 = vst [vmem:[%s534 + $0x8] sm:$0xff] %v5768
        %p5771 = scmp.lt.s32.totalorder %s28, 1
        %s5772 = scalar_select %p5771, %s28, 1
        %s5773 = smul.addr %s5772, 2
        %s5774 = smul.addr %s5773, 8
        %s5775 = scalar_lea.vmem %s14, %s5774
        // Predicated region
        $region93: #{decnn_forward.1} parent=75 // pred_check
          %p5776 = pneg %p345
        $region94: #{decnn_forward.1} parent=75 // pred_check_branch
          %5778 = sbr.rel (%p5776) target = $region96
        $region95: #{decnn_forward.1} parent=75 // pred_region
          _
        $region96: #{decnn_forward.1} parent=75 // pred_fallthru
          _
      $region76: #{decnn_forward.1} parent=5 // pred_fallthru
        _
      %p5779 = scmp.le.s32.totalorder 2, %s23
      // Predicated region
      $region97: #{decnn_forward.1} parent=5 // pred_check
        %p5780 = pneg %p5779
      $region98: #{decnn_forward.1} parent=5 // pred_check_branch
        %5782 = sbr.rel (%p5780) target = $region100
      $region99: #{decnn_forward.1} parent=5 // pred_region
        %s5783 = ssub.s32 %s23, 2
        // Predicated region
        $region101: #{decnn_forward.1} parent=99 // pred_check
          %p5784 = pneg %p351
        $region102: #{decnn_forward.1} parent=99 // pred_check_branch
          %5786 = sbr.rel (%p5784) target = $region104
        $region103: #{decnn_forward.1} parent=99 // pred_region
          %p5787 = scmp.lt.s32.totalorder %s29, 1
          %s5788 = scalar_select %p5787, %s29, 1
          %s5789 = smul.addr %s5788, 2
          %s5790 = smul.addr %s5789, 8
          %s5791 = scalar_lea.vmem %s14, %s5790
        $region104: #{decnn_forward.1} parent=99 // pred_fallthru
          _
      $region100: #{decnn_forward.1} parent=5 // pred_fallthru
        _
    $region6: #{decnn_forward.1} parent=1 // loop_footer
      %s27 = sadd.s32 1, %s23
    $region7: #{decnn_forward.1} parent=1 // loop_footer_branch
      %22 = sbr.rel target = $region3
    $region8: #{decnn_forward.1} parent=1 // loop_exit
      _
    %5792 = vsyncpa [#allocation5], 1
    %s5793 = scalar_lea.sflag [#allocation5], 1
    %5794 = vsyncpa %s5793, 1
    %5795 = vsyncpa [#allocation7], 1
    %5796 = vsyncpa [#allocation10], 1

</llo_original>
